<compile_context>
chip_gen: v7x
topology: tpu7x:2x2x1
jax: 0.10.0
libtpu: 0.0.40
codegen_flags: <defaults>
</compile_context>

<pallas_src>
import numpy as np
import jax
import jax.numpy as jnp
from jax.experimental import pallas as pl
from jax.experimental.pallas import tpu as pltpu


def _pick_tile_h(H2, W2, Cmid, Cp, n_batch, target_rows=1024, vmem_budget=24 << 20):
    """Largest even divisor TH of H2 whose (TH*W2)-row tile fits the VMEM budget,
    gives lane-dense stores (TH*W2 % 128 == 0, or the whole image), and sits near
    the 512-1024 row sweet spot.  Prefers >=2 total grid steps (v7x megacore)."""
    feasible = []
    for th in range(H2, 0, -1):
        if H2 % th or th % 2:
            continue
        tm = th * W2
        live = (3 * (th + 2) * (W2 + 2) * Cmid * 2      # main+halo (2x buffered) + scratch
                + 2 * 9 * Cmid * Cp * 2                  # weights
                + 2 * tm * Cp * (4 + 2 + 4))             # f32 acc + bf16 act + f32 out
        if live > vmem_budget:
            continue
        if tm % 128 != 0 and th != H2:
            continue
        feasible.append(th)
    if not feasible:
        return 2 if H2 % 2 == 0 else H2
    if n_batch * (H2 // feasible[0]) < 2:               # keep both v7x cores busy
        multi = [t for t in feasible if n_batch * (H2 // t) >= 2]
        if multi:
            feasible = multi
    for th in feasible:                                  # descending
        if th * W2 <= target_rows:
            return th
    return feasible[-1]


def upblock_forward(x, skip, conv_w, conv_b, gamma, beta):
    """x: (N, Cin, H, W); skip: (N, Cskip, 2H, 2W); conv_w: (Cout, Cmid, 3, 3)."""
    N, Cin, H, W = x.shape
    r = 2
    Cps = Cin // (r * r)
    H2, W2 = H * r, W * r
    Cskip = skip.shape[1]
    Cmid = Cps + Cskip
    Cout = conv_w.shape[0]
    HW2 = H2 * W2

    # ---- glue (pure data movement, bf16 from the start): PixelShuffle, concat,
    #      NHWC, 1-pixel spatial zero pad.  No im2col.
    upA = x.reshape(N, Cps, r, r, H, W).transpose(0, 1, 4, 2, 5, 3)
    upA = upA.reshape(N, Cps, H2, W2)
    upB = jnp.concatenate([upA, skip], axis=1).astype(jnp.bfloat16)     # (N,Cmid,H2,W2)
    upB_nhwc = jnp.transpose(upB, (0, 2, 3, 1))                          # (N,H2,W2,Cmid)
    upB_pad = jnp.pad(upB_nhwc, ((0, 0), (1, 1), (1, 1), (0, 0)))        # (N,H2+2,W2+2,Cmid)

    # channel padding only to the 8-sublane granule (channels live on sublanes;
    # the lane-dense axis is the flattened spatial dim)
    Cp = ((Cout + 7) // 8) * 8
    w_k = jnp.transpose(conv_w, (2, 3, 1, 0)).reshape(9, Cmid, Cout)     # tap-major
    w_k = jnp.pad(w_k, ((0, 0), (0, 0), (0, Cp - Cout))).astype(jnp.bfloat16)
    b_p = jnp.pad(conv_b, (0, Cp - Cout)).reshape(1, Cp).astype(jnp.float32)

    TH = _pick_tile_h(H2, W2, Cmid, Cp, N)
    n_h = H2 // TH
    TM = TH * W2

    # ---- pass 1: 3x3 conv as 9 shifted-slice MXU matmuls from a VMEM halo slab,
    #      + bias + LeakyReLU + per-tile BN stats; bf16 channel-major activations.
    def conv_act_kernel(main_ref, halo_ref, w_ref, b_ref, act_ref, stats_ref, buf_ref):
        # assemble the (TH+2, W2+2, Cmid) halo slab in VMEM
        buf_ref[0:TH, :, :] = main_ref[0]            # padded rows [h0, h0+TH)
        buf_ref[TH:TH + 2, :, :] = halo_ref[0]       # padded rows [h0+TH, h0+TH+2)
        acc = jnp.zeros((TM, Cp), jnp.float32)
        for t in range(9):                            # unrolled: 9 taps -> 9 MXU matmuls
            dy, dx = t // 3, t % 3
            slab = buf_ref[dy:dy + TH, dx:dx + W2, :]          # (TH, W2, Cmid) bf16
            acc = acc + jnp.dot(slab.reshape(TM, Cmid), w_ref[t],
                                preferred_element_type=jnp.float32)
        a = acc + b_ref[...]
        a = jnp.where(a > 0, a, 0.01 * a)             # LeakyReLU(negative_slope=0.01)
        # per-tile BN statistics from the f32 (pre-cast) activations
        s = jnp.sum(a, axis=0, keepdims=True)          # (1, Cp)
        sq = jnp.sum(a * a, axis=0, keepdims=True)     # (1, Cp)
        row = jax.lax.broadcasted_iota(jnp.int32, (8, Cp), 0)
        stats_ref[0, 0] = jnp.where(
            row == 0, jnp.broadcast_to(s, (8, Cp)),
            jnp.where(row == 1, jnp.broadcast_to(sq, (8, Cp)), 0.0))
        # channel-major bf16 activation -> lane-dense (Cp, TM) store
        act_ref[0] = jnp.transpose(a).astype(jnp.bfloat16)

    act, stats = pl.pallas_call(
        conv_act_kernel,
        out_shape=(
            jax.ShapeDtypeStruct((N, Cp, HW2), jnp.bfloat16),
            jax.ShapeDtypeStruct((N, n_h, 8, Cp), jnp.float32),
        ),
        grid=(N, n_h),
        in_specs=[
            # main rows of the padded input ...
            pl.BlockSpec((1, TH, W2 + 2, Cmid), lambda n, j: (n, j, 0, 0)),
            # ... plus a 2-row halo just below them (same array, second view)
            pl.BlockSpec((1, 2, W2 + 2, Cmid),
                         lambda n, j: (n, (j + 1) * (TH // 2), 0, 0)),
            pl.BlockSpec((9, Cmid, Cp), lambda n, j: (0, 0, 0)),
            pl.BlockSpec((1, Cp), lambda n, j: (0, 0)),
        ],
        out_specs=(
            pl.BlockSpec((1, Cp, TM), lambda n, j: (n, 0, j)),
            pl.BlockSpec((1, 1, 8, Cp), lambda n, j: (n, j, 0, 0)),
        ),
        scratch_shapes=[pltpu.VMEM((TH + 2, W2 + 2, Cmid), jnp.bfloat16)],
        compiler_params=pltpu.CompilerParams(
            dimension_semantics=("parallel", "parallel"),
            vmem_limit_bytes=48 * 1024 * 1024),
    )(upB_pad, upB_pad, w_k, b_p)

    # ---- global BN scale/shift from the tiny per-tile stats (training-mode BN,
    #      biased variance, eps=1e-5).
    # TODO(synk): E[x^2]-E[x]^2 in f32 can cancel when |mean| >> std; clamped at 0
    # here — switch to centered/shifted sums if tighter accuracy is ever needed.
    count = jnp.float32(N * HW2)
    mean = jnp.sum(stats[:, :, 0, :], axis=(0, 1)) / count               # (Cp,)
    var = jnp.maximum(jnp.sum(stats[:, :, 1, :], axis=(0, 1)) / count
                      - mean * mean, 0.0)
    g_p = jnp.pad(gamma, (0, Cp - Cout)).astype(jnp.float32)
    be_p = jnp.pad(beta, (0, Cp - Cout)).astype(jnp.float32)
    scale_c = g_p * jax.lax.rsqrt(var + jnp.float32(1e-5))
    shift_c = be_p - mean * scale_c
    scale = scale_c.reshape(Cp, 1)
    shift = shift_c.reshape(Cp, 1)

    # ---- pass 2: pure streaming normalize + affine (bf16 in, f32 out) ----
    def bn_apply_kernel(act_ref, scale_ref, shift_ref, out_ref):
        out_ref[0] = act_ref[0].astype(jnp.float32) * scale_ref[...] + shift_ref[...]

    out_cm = pl.pallas_call(
        bn_apply_kernel,
        out_shape=jax.ShapeDtypeStruct((N, Cp, HW2), jnp.float32),
        grid=(N, n_h),
        in_specs=[
            pl.BlockSpec((1, Cp, TM), lambda n, j: (n, 0, j)),
            pl.BlockSpec((Cp, 1), lambda n, j: (0, 0)),
            pl.BlockSpec((Cp, 1), lambda n, j: (0, 0)),
        ],
        out_specs=pl.BlockSpec((1, Cp, TM), lambda n, j: (n, 0, j)),
        compiler_params=pltpu.CompilerParams(
            dimension_semantics=("parallel", "parallel"),
            vmem_limit_bytes=48 * 1024 * 1024),
    )(act, scale, shift)

    # channel-major -> NCHW is a free slice + reshape (no lane-dim transpose)
    return out_cm[:, :Cout, :].reshape(N, Cout, H2, W2)


def upblock_reference(x, skip, conv_w, conv_b, gamma, beta):
    """Pure-JAX reference matching the PyTorch forward (training-mode BN)."""
    N, Cin, H, W = x.shape
    Cps = Cin // 4
    upA = x.reshape(N, Cps, 2, 2, H, W).transpose(0, 1, 4, 2, 5, 3)
    upA = upA.reshape(N, Cps, 2 * H, 2 * W)
    upB = jnp.concatenate([upA, skip], axis=1)
    dn = ('NCHW', 'OIHW', 'NCHW')
    r = jax.lax.conv_general_dilated(upB, conv_w, (1, 1), ((1, 1), (1, 1)),
                                     dimension_numbers=dn,
                                     precision=jax.lax.Precision.HIGHEST)
    r = r + conv_b[None, :, None, None]
    r = jnp.where(r > 0, r, 0.01 * r)
    mean = jnp.mean(r, axis=(0, 2, 3), keepdims=True)
    var = jnp.mean((r - mean) ** 2, axis=(0, 2, 3), keepdims=True)
    return (r - mean) * (gamma[None, :, None, None] * jax.lax.rsqrt(var + 1e-5)) \
           + beta[None, :, None, None]


if __name__ == "__main__":
    # UpBlock(in_filters=16, out_filters=16) -> mid_filters = 16//4 + 2*16 = 36
    N, in_filters, out_filters, H, W = 2, 16, 16, 8, 8
    mid_filters = in_filters // 4 + 2 * out_filters
    skip_ch = mid_filters - in_filters // 4

    key = jax.random.PRNGKey(0)
    ks = jax.random.split(key, 6)
    x = jax.random.normal(ks[0], (N, in_filters, H, W), jnp.float32)
    skip = jax.random.normal(ks[1], (N, skip_ch, 2 * H, 2 * W), jnp.float32)
    conv_w = jax.random.normal(ks[2], (out_filters, mid_filters, 3, 3),
                               jnp.float32) / np.sqrt(mid_filters * 9)
    conv_b = 0.1 * jax.random.normal(ks[3], (out_filters,), jnp.float32)
    gamma = 1.0 + 0.1 * jax.random.normal(ks[4], (out_filters,), jnp.float32)
    beta = 0.1 * jax.random.normal(ks[5], (out_filters,), jnp.float32)

    out = jax.block_until_ready(
        upblock_forward(x, skip, conv_w, conv_b, gamma, beta))
    ref = jax.block_until_ready(
        upblock_reference(x, skip, conv_w, conv_b, gamma, beta))

    assert out.shape == ref.shape == (N, out_filters, 2 * H, 2 * W)
    np.testing.assert_allclose(np.asarray(out), np.asarray(ref),
                               rtol=3e-2, atol=3e-2)
    print("KERNEL_OK")
</pallas_src>

<mosaic_0001>
module attributes {stable_mosaic.version = 11 : i64} {
  func.func @conv_act_kernel(%arg0: i32, %arg1: i32, %arg2: memref<1x16x18x36xbf16, #tpu.memory_space<vmem>>, %arg3: memref<1x2x18x36xbf16, #tpu.memory_space<vmem>>, %arg4: memref<9x36x16xbf16, #tpu.memory_space<vmem>>, %arg5: memref<1x16xf32, #tpu.memory_space<vmem>>, %arg6: memref<1x16x256xbf16, #tpu.memory_space<vmem>>, %arg7: memref<1x1x8x16xf32, #tpu.memory_space<vmem>>, %arg8: memref<18x18x36xbf16, #tpu.memory_space<vmem>>) attributes {dimension_semantics = [#tpu.dimension_semantics<parallel>, #tpu.dimension_semantics<parallel>], iteration_bounds = array<i64: 2, 1>, scalar_prefetch = 0 : i64, scratch_operands = 1 : i64, tpu.core_type = #tpu.core_type<tc>, window_params = [{transform_indices = @transform_0, window_bounds = array<i64: 1, 16, 18, 36>}, {transform_indices = @transform_1, window_bounds = array<i64: 1, 2, 18, 36>}, {pipeline_mode = #tpu.pipeline_mode<synchronous>, transform_indices = @transform_2, window_bounds = array<i64: 9, 36, 16>}, {pipeline_mode = #tpu.pipeline_mode<synchronous>, transform_indices = @transform_3, window_bounds = array<i64: 1, 16>}, {transform_indices = @transform_4, window_bounds = array<i64: 1, 16, 256>}, {transform_indices = @transform_5, window_bounds = array<i64: 1, 1, 8, 16>}]} {
    %c0 = arith.constant 0 : index
    %c0_0 = arith.constant 0 : index
    %c0_1 = arith.constant 0 : index
    %c0_2 = arith.constant 0 : index
    %0 = vector.load %arg2[%c0, %c0_0, %c0_1, %c0_2] : memref<1x16x18x36xbf16, #tpu.memory_space<vmem>>, vector<1x16x18x36xbf16>
    %1 = vector.shape_cast %0 : vector<1x16x18x36xbf16> to vector<16x18x36xbf16>
    %c0_3 = arith.constant 0 : index
    %c0_4 = arith.constant 0 : index
    %c0_5 = arith.constant 0 : index
    %2 = vector.load %arg8[%c0_3, %c0_4, %c0_5] : memref<18x18x36xbf16, #tpu.memory_space<vmem>>, vector<16x18x36xbf16>
    tpu.vector_store %arg8[%c0_3, %c0_4, %c0_5], %1 {strides = array<i32>} : memref<18x18x36xbf16, #tpu.memory_space<vmem>>, vector<16x18x36xbf16>,
    %c0_6 = arith.constant 0 : index
    %c0_7 = arith.constant 0 : index
    %c0_8 = arith.constant 0 : index
    %c0_9 = arith.constant 0 : index
    %3 = vector.load %arg3[%c0_6, %c0_7, %c0_8, %c0_9] : memref<1x2x18x36xbf16, #tpu.memory_space<vmem>>, vector<1x2x18x36xbf16>
    %4 = vector.shape_cast %3 : vector<1x2x18x36xbf16> to vector<2x18x36xbf16>
    %c16 = arith.constant 16 : index
    %c0_10 = arith.constant 0 : index
    %c0_11 = arith.constant 0 : index
    %5 = vector.load %arg8[%c16, %c0_10, %c0_11] : memref<18x18x36xbf16, #tpu.memory_space<vmem>>, vector<2x18x36xbf16>
    tpu.vector_store %arg8[%c16, %c0_10, %c0_11], %4 {strides = array<i32>} : memref<18x18x36xbf16, #tpu.memory_space<vmem>>, vector<2x18x36xbf16>,
    %cst = arith.constant 0.000000e+00 : f32
    %6 = vector.broadcast %cst : f32 to vector<256x16xf32>
    %c0_12 = arith.constant 0 : index
    %c0_13 = arith.constant 0 : index
    %c0_14 = arith.constant 0 : index
    %7 = vector.load %arg8[%c0_12, %c0_13, %c0_14] : memref<18x18x36xbf16, #tpu.memory_space<vmem>>, vector<16x16x36xbf16>
    %8 = vector.shape_cast %7 : vector<16x16x36xbf16> to vector<256x36xbf16>
    %c0_15 = arith.constant 0 : index
    %c0_16 = arith.constant 0 : index
    %c0_17 = arith.constant 0 : index
    %9 = vector.load %arg4[%c0_15, %c0_16, %c0_17] : memref<9x36x16xbf16, #tpu.memory_space<vmem>>, vector<1x36x16xbf16>
    %10 = vector.shape_cast %9 : vector<1x36x16xbf16> to vector<36x16xbf16>
    %cst_18 = arith.constant dense<0.000000e+00> : vector<256x16xf32>
    %11 = tpu.matmul %8, %10, %cst_18 {dimension_numbers = #tpu.dot_dimension_numbers<[1], [0], [0], [1], [0, 0, 1, 1], [], []>} : vector<256x36xbf16>, vector<36x16xbf16>, vector<256x16xf32> -> vector<256x16xf32>
    %12 = arith.addf %6, %11 : vector<256x16xf32>
    %c0_19 = arith.constant 0 : index
    %c1 = arith.constant 1 : index
    %c0_20 = arith.constant 0 : index
    %13 = vector.load %arg8[%c0_19, %c1, %c0_20] : memref<18x18x36xbf16, #tpu.memory_space<vmem>>, vector<16x16x36xbf16>
    %14 = vector.shape_cast %13 : vector<16x16x36xbf16> to vector<256x36xbf16>
    %c1_21 = arith.constant 1 : index
    %c0_22 = arith.constant 0 : index
    %c0_23 = arith.constant 0 : index
    %15 = vector.load %arg4[%c1_21, %c0_22, %c0_23] : memref<9x36x16xbf16, #tpu.memory_space<vmem>>, vector<1x36x16xbf16>
    %16 = vector.shape_cast %15 : vector<1x36x16xbf16> to vector<36x16xbf16>
    %cst_24 = arith.constant dense<0.000000e+00> : vector<256x16xf32>
    %17 = tpu.matmul %14, %16, %cst_24 {dimension_numbers = #tpu.dot_dimension_numbers<[1], [0], [0], [1], [0, 0, 1, 1], [], []>} : vector<256x36xbf16>, vector<36x16xbf16>, vector<256x16xf32> -> vector<256x16xf32>
    %18 = arith.addf %12, %17 : vector<256x16xf32>
    %c0_25 = arith.constant 0 : index
    %c2 = arith.constant 2 : index
    %c0_26 = arith.constant 0 : index
    %19 = vector.load %arg8[%c0_25, %c2, %c0_26] : memref<18x18x36xbf16, #tpu.memory_space<vmem>>, vector<16x16x36xbf16>
    %20 = vector.shape_cast %19 : vector<16x16x36xbf16> to vector<256x36xbf16>
    %c2_27 = arith.constant 2 : index
    %c0_28 = arith.constant 0 : index
    %c0_29 = arith.constant 0 : index
    %21 = vector.load %arg4[%c2_27, %c0_28, %c0_29] : memref<9x36x16xbf16, #tpu.memory_space<vmem>>, vector<1x36x16xbf16>
    %22 = vector.shape_cast %21 : vector<1x36x16xbf16> to vector<36x16xbf16>
    %cst_30 = arith.constant dense<0.000000e+00> : vector<256x16xf32>
    %23 = tpu.matmul %20, %22, %cst_30 {dimension_numbers = #tpu.dot_dimension_numbers<[1], [0], [0], [1], [0, 0, 1, 1], [], []>} : vector<256x36xbf16>, vector<36x16xbf16>, vector<256x16xf32> -> vector<256x16xf32>
    %24 = arith.addf %18, %23 : vector<256x16xf32>
    %c1_31 = arith.constant 1 : index
    %c0_32 = arith.constant 0 : index
    %c0_33 = arith.constant 0 : index
    %25 = vector.load %arg8[%c1_31, %c0_32, %c0_33] : memref<18x18x36xbf16, #tpu.memory_space<vmem>>, vector<16x16x36xbf16>
    %26 = vector.shape_cast %25 : vector<16x16x36xbf16> to vector<256x36xbf16>
    %c3 = arith.constant 3 : index
    %c0_34 = arith.constant 0 : index
    %c0_35 = arith.constant 0 : index
    %27 = vector.load %arg4[%c3, %c0_34, %c0_35] : memref<9x36x16xbf16, #tpu.memory_space<vmem>>, vector<1x36x16xbf16>
    %28 = vector.shape_cast %27 : vector<1x36x16xbf16> to vector<36x16xbf16>
    %cst_36 = arith.constant dense<0.000000e+00> : vector<256x16xf32>
    %29 = tpu.matmul %26, %28, %cst_36 {dimension_numbers = #tpu.dot_dimension_numbers<[1], [0], [0], [1], [0, 0, 1, 1], [], []>} : vector<256x36xbf16>, vector<36x16xbf16>, vector<256x16xf32> -> vector<256x16xf32>
    %30 = arith.addf %24, %29 : vector<256x16xf32>
    %c1_37 = arith.constant 1 : index
    %c1_38 = arith.constant 1 : index
    %c0_39 = arith.constant 0 : index
    %31 = vector.load %arg8[%c1_37, %c1_38, %c0_39] : memref<18x18x36xbf16, #tpu.memory_space<vmem>>, vector<16x16x36xbf16>
    %32 = vector.shape_cast %31 : vector<16x16x36xbf16> to vector<256x36xbf16>
    %c4 = arith.constant 4 : index
    %c0_40 = arith.constant 0 : index
    %c0_41 = arith.constant 0 : index
    %33 = vector.load %arg4[%c4, %c0_40, %c0_41] : memref<9x36x16xbf16, #tpu.memory_space<vmem>>, vector<1x36x16xbf16>
    %34 = vector.shape_cast %33 : vector<1x36x16xbf16> to vector<36x16xbf16>
    %cst_42 = arith.constant dense<0.000000e+00> : vector<256x16xf32>
    %35 = tpu.matmul %32, %34, %cst_42 {dimension_numbers = #tpu.dot_dimension_numbers<[1], [0], [0], [1], [0, 0, 1, 1], [], []>} : vector<256x36xbf16>, vector<36x16xbf16>, vector<256x16xf32> -> vector<256x16xf32>
    %36 = arith.addf %30, %35 : vector<256x16xf32>
    %c1_43 = arith.constant 1 : index
    %c2_44 = arith.constant 2 : index
    %c0_45 = arith.constant 0 : index
    %37 = vector.load %arg8[%c1_43, %c2_44, %c0_45] : memref<18x18x36xbf16, #tpu.memory_space<vmem>>, vector<16x16x36xbf16>
    %38 = vector.shape_cast %37 : vector<16x16x36xbf16> to vector<256x36xbf16>
    %c5 = arith.constant 5 : index
    %c0_46 = arith.constant 0 : index
    %c0_47 = arith.constant 0 : index
    %39 = vector.load %arg4[%c5, %c0_46, %c0_47] : memref<9x36x16xbf16, #tpu.memory_space<vmem>>, vector<1x36x16xbf16>
    %40 = vector.shape_cast %39 : vector<1x36x16xbf16> to vector<36x16xbf16>
    %cst_48 = arith.constant dense<0.000000e+00> : vector<256x16xf32>
    %41 = tpu.matmul %38, %40, %cst_48 {dimension_numbers = #tpu.dot_dimension_numbers<[1], [0], [0], [1], [0, 0, 1, 1], [], []>} : vector<256x36xbf16>, vector<36x16xbf16>, vector<256x16xf32> -> vector<256x16xf32>
    %42 = arith.addf %36, %41 : vector<256x16xf32>
    %c2_49 = arith.constant 2 : index
    %c0_50 = arith.constant 0 : index
    %c0_51 = arith.constant 0 : index
    %43 = vector.load %arg8[%c2_49, %c0_50, %c0_51] : memref<18x18x36xbf16, #tpu.memory_space<vmem>>, vector<16x16x36xbf16>
    %44 = vector.shape_cast %43 : vector<16x16x36xbf16> to vector<256x36xbf16>
    %c6 = arith.constant 6 : index
    %c0_52 = arith.constant 0 : index
    %c0_53 = arith.constant 0 : index
    %45 = vector.load %arg4[%c6, %c0_52, %c0_53] : memref<9x36x16xbf16, #tpu.memory_space<vmem>>, vector<1x36x16xbf16>
    %46 = vector.shape_cast %45 : vector<1x36x16xbf16> to vector<36x16xbf16>
    %cst_54 = arith.constant dense<0.000000e+00> : vector<256x16xf32>
    %47 = tpu.matmul %44, %46, %cst_54 {dimension_numbers = #tpu.dot_dimension_numbers<[1], [0], [0], [1], [0, 0, 1, 1], [], []>} : vector<256x36xbf16>, vector<36x16xbf16>, vector<256x16xf32> -> vector<256x16xf32>
    %48 = arith.addf %42, %47 : vector<256x16xf32>
    %c2_55 = arith.constant 2 : index
    %c1_56 = arith.constant 1 : index
    %c0_57 = arith.constant 0 : index
    %49 = vector.load %arg8[%c2_55, %c1_56, %c0_57] : memref<18x18x36xbf16, #tpu.memory_space<vmem>>, vector<16x16x36xbf16>
    %50 = vector.shape_cast %49 : vector<16x16x36xbf16> to vector<256x36xbf16>
    %c7 = arith.constant 7 : index
    %c0_58 = arith.constant 0 : index
    %c0_59 = arith.constant 0 : index
    %51 = vector.load %arg4[%c7, %c0_58, %c0_59] : memref<9x36x16xbf16, #tpu.memory_space<vmem>>, vector<1x36x16xbf16>
    %52 = vector.shape_cast %51 : vector<1x36x16xbf16> to vector<36x16xbf16>
    %cst_60 = arith.constant dense<0.000000e+00> : vector<256x16xf32>
    %53 = tpu.matmul %50, %52, %cst_60 {dimension_numbers = #tpu.dot_dimension_numbers<[1], [0], [0], [1], [0, 0, 1, 1], [], []>} : vector<256x36xbf16>, vector<36x16xbf16>, vector<256x16xf32> -> vector<256x16xf32>
    %54 = arith.addf %48, %53 : vector<256x16xf32>
    %c2_61 = arith.constant 2 : index
    %c2_62 = arith.constant 2 : index
    %c0_63 = arith.constant 0 : index
    %55 = vector.load %arg8[%c2_61, %c2_62, %c0_63] : memref<18x18x36xbf16, #tpu.memory_space<vmem>>, vector<16x16x36xbf16>
    %56 = vector.shape_cast %55 : vector<16x16x36xbf16> to vector<256x36xbf16>
    %c8 = arith.constant 8 : index
    %c0_64 = arith.constant 0 : index
    %c0_65 = arith.constant 0 : index
    %57 = vector.load %arg4[%c8, %c0_64, %c0_65] : memref<9x36x16xbf16, #tpu.memory_space<vmem>>, vector<1x36x16xbf16>
    %58 = vector.shape_cast %57 : vector<1x36x16xbf16> to vector<36x16xbf16>
    %cst_66 = arith.constant dense<0.000000e+00> : vector<256x16xf32>
    %59 = tpu.matmul %56, %58, %cst_66 {dimension_numbers = #tpu.dot_dimension_numbers<[1], [0], [0], [1], [0, 0, 1, 1], [], []>} : vector<256x36xbf16>, vector<36x16xbf16>, vector<256x16xf32> -> vector<256x16xf32>
    %60 = arith.addf %54, %59 : vector<256x16xf32>
    %c0_67 = arith.constant 0 : index
    %c0_68 = arith.constant 0 : index
    %61 = vector.load %arg5[%c0_67, %c0_68] : memref<1x16xf32, #tpu.memory_space<vmem>>, vector<1x16xf32>
    %62 = vector.broadcast %61 : vector<1x16xf32> to vector<256x16xf32>
    %63 = arith.addf %60, %62 : vector<256x16xf32>
    %cst_69 = arith.constant 0.000000e+00 : f32
    %64 = vector.broadcast %cst_69 : f32 to vector<256x16xf32>
    %65 = arith.cmpf ogt, %63, %64 : vector<256x16xf32>
    %cst_70 = arith.constant 0.00999999977 : f32
    %66 = vector.broadcast %cst_70 : f32 to vector<256x16xf32>
    %67 = arith.mulf %66, %63 : vector<256x16xf32>
    %68 = arith.select %65, %63, %67 : vector<256x16xi1>, vector<256x16xf32>
    %cst_71 = arith.constant dense<0.000000e+00> : vector<16xf32>
    %69 = vector.multi_reduction <add>, %68, %cst_71 [0] : vector<256x16xf32> to vector<16xf32>
    %70 = vector.shape_cast %69 : vector<16xf32> to vector<1x16xf32>
    %71 = arith.mulf %68, %68 : vector<256x16xf32>
    %cst_72 = arith.constant dense<0.000000e+00> : vector<16xf32>
    %72 = vector.multi_reduction <add>, %71, %cst_72 [0] : vector<256x16xf32> to vector<16xf32>
    %73 = vector.shape_cast %72 : vector<16xf32> to vector<1x16xf32>
    %74 = tpu.iota {dimensions = array<i32: 0>} : vector<8x16xi32>
    %c0_i32 = arith.constant 0 : i32
    %75 = vector.broadcast %c0_i32 : i32 to vector<8x16xi32>
    %76 = arith.cmpi eq, %74, %75 : vector<8x16xi32>
    %77 = vector.shape_cast %70 : vector<1x16xf32> to vector<1x16xf32>
    %78 = vector.broadcast %77 : vector<1x16xf32> to vector<8x16xf32>
    %c1_i32 = arith.constant 1 : i32
    %79 = vector.broadcast %c1_i32 : i32 to vector<8x16xi32>
    %80 = arith.cmpi eq, %74, %79 : vector<8x16xi32>
    %81 = vector.shape_cast %73 : vector<1x16xf32> to vector<1x16xf32>
    %82 = vector.broadcast %81 : vector<1x16xf32> to vector<8x16xf32>
    %cst_73 = arith.constant 0.000000e+00 : f32
    %83 = vector.broadcast %cst_73 : f32 to vector<8x16xf32>
    %84 = arith.select %80, %82, %83 : vector<8x16xi1>, vector<8x16xf32>
    %85 = arith.select %76, %78, %84 : vector<8x16xi1>, vector<8x16xf32>
    %c0_74 = arith.constant 0 : index
    %c0_75 = arith.constant 0 : index
    %c0_76 = arith.constant 0 : index
    %c0_77 = arith.constant 0 : index
    %86 = vector.load %arg7[%c0_74, %c0_75, %c0_76, %c0_77] : memref<1x1x8x16xf32, #tpu.memory_space<vmem>>, vector<1x1x8x16xf32>
    %87 = vector.shape_cast %86 : vector<1x1x8x16xf32> to vector<8x16xf32>
    %88 = vector.shape_cast %85 : vector<8x16xf32> to vector<1x1x8x16xf32>
    tpu.vector_store %arg7[%c0_74, %c0_75, %c0_76, %c0_77], %88 {strides = array<i32>} : memref<1x1x8x16xf32, #tpu.memory_space<vmem>>, vector<1x1x8x16xf32>,
    %89 = tpu.transpose %68, [1, 0] : vector<256x16xf32> -> vector<16x256xf32>
    %90 = arith.truncf %89 : vector<16x256xf32> to vector<16x256xbf16>
    %c0_78 = arith.constant 0 : index
    %c0_79 = arith.constant 0 : index
    %c0_80 = arith.constant 0 : index
    %91 = vector.load %arg6[%c0_78, %c0_79, %c0_80] : memref<1x16x256xbf16, #tpu.memory_space<vmem>>, vector<1x16x256xbf16>
    %92 = vector.shape_cast %91 : vector<1x16x256xbf16> to vector<16x256xbf16>
    %93 = vector.shape_cast %90 : vector<16x256xbf16> to vector<1x16x256xbf16>
    tpu.vector_store %arg6[%c0_78, %c0_79, %c0_80], %93 {strides = array<i32>} : memref<1x16x256xbf16, #tpu.memory_space<vmem>>, vector<1x16x256xbf16>,
    return
  }
  func.func @transform_0(%arg0: i32, %arg1: i32) -> (i32, i32, i32, i32) {
    %c0_i32 = arith.constant 0 : i32
    %c0_i32_0 = arith.constant 0 : i32
    %c0_i32_1 = arith.constant 0 : i32
    return %arg0, %arg1, %c0_i32, %c0_i32_0 : i32, i32, i32, i32
  }
  func.func @transform_1(%arg0: i32, %arg1: i32) -> (i32, i32, i32, i32) {
    %c1_i32 = arith.constant 1 : i32
    %0 = arith.addi %arg1, %c1_i32 : i32
    %c8_i32 = arith.constant 8 : i32
    %1 = arith.muli %0, %c8_i32 : i32
    %c0_i32 = arith.constant 0 : i32
    %c0_i32_0 = arith.constant 0 : i32
    %c0_i32_1 = arith.constant 0 : i32
    return %arg0, %1, %c0_i32, %c0_i32_0 : i32, i32, i32, i32
  }
  func.func @transform_2(%arg0: i32, %arg1: i32) -> (i32, i32, i32) {
    %c0_i32 = arith.constant 0 : i32
    %c0_i32_0 = arith.constant 0 : i32
    %c0_i32_1 = arith.constant 0 : i32
    %c0_i32_2 = arith.constant 0 : i32
    return %c0_i32, %c0_i32_0, %c0_i32_1 : i32, i32, i32
  }
  func.func @transform_3(%arg0: i32, %arg1: i32) -> (i32, i32) {
    %c0_i32 = arith.constant 0 : i32
    %c0_i32_0 = arith.constant 0 : i32
    %c0_i32_1 = arith.constant 0 : i32
    return %c0_i32, %c0_i32_0 : i32, i32
  }
  func.func @transform_4(%arg0: i32, %arg1: i32) -> (i32, i32, i32) {
    %c0_i32 = arith.constant 0 : i32
    %c0_i32_0 = arith.constant 0 : i32
    return %arg0, %c0_i32, %arg1 : i32, i32, i32
  }
  func.func @transform_5(%arg0: i32, %arg1: i32) -> (i32, i32, i32, i32) {
    %c0_i32 = arith.constant 0 : i32
    %c0_i32_0 = arith.constant 0 : i32
    %c0_i32_1 = arith.constant 0 : i32
    return %arg0, %arg1, %c0_i32, %c0_i32_0 : i32, i32, i32, i32
  }
}

</mosaic_0001>

<llo_original>
// kernel: tpu_custom_call.1
$region0: #{tpu_custom_call.1}
  #allocation0 [shape = 'u32[]', space=smem, size = 0x4, offset = 0x4, fixed_abs, tag = 'smem constant byte address 0x4 - core index']
  #allocation1 [shape = 'u32[144,128]{1,0:T(1,128)}', space=vmem, size = 0x12000, scoped, tag = 'internal scratch']
  #allocation2 [shape = 'bf16[18,18,36]{2,1,0:T(8,128)(2,1)}', space=vmem, size = 0x1b000, scoped, tag = 'scratch operand']
  %s0 = inlined_call_operand.vmem [shape: bf16[2,18,18,36], index: 0, kind: input, shape index: {}]
  %s1 = inlined_call_operand.vmem [shape: bf16[2,18,18,36], index: 1, kind: input, shape index: {}]
  %s2 = inlined_call_operand.vmem [shape: bf16[9,36,16], index: 2, kind: input, shape index: {}]
  %s3 = inlined_call_operand.vmem [shape: f32[1,16], index: 3, kind: input, shape index: {}]
  %s4 = inlined_call_operand.hbm [shape: bf16[2,16,256], index: 4, kind: output, shape index: {0}]
  %s5 = inlined_call_operand.hbm [shape: f32[2,1,8,16], index: 5, kind: output, shape index: {1}]
  %6 = xla_tuple %s4, %s5
  %s7 = sld [smem:[#allocation0]]
  $region57: #{tpu_custom_call.1} parent=0
    _
  %s9 = ssub.s32 1, %s7
  %s10 = scalar_select 0, %s9, %s7
  $region1: #{tpu_custom_call.1} parent=0
    #allocation3 [shape = 'u8[16384]{0}', space=vmem, size = 0x4000, scoped, tag = 'output window, operand 0']
    #allocation4 [shape = 's32[2]{0}', space=sflag, size = 0x8, scoped, tag = 'scoped memory for tpu_custom_call.1']
    #allocation5 [shape = 'u8[8192]{0}', space=vmem, size = 0x2000, scoped, tag = 'output window, operand 1']
    #allocation6 [shape = 's32[2]{0}', space=sflag, size = 0x8, scoped, tag = 'scoped memory for tpu_custom_call.1']
    %11 = vsyncpa [#allocation4], 0
    %s12 = scalar_lea.sflag [#allocation4], 1
    %13 = vsyncpa %s12, 0
    %14 = vsyncpa [#allocation6], 0
    %s15 = scalar_lea.sflag [#allocation6], 1
    %16 = vsyncpa %s15, 0
    loop: start=0, step=1, limit=4
    $region2: #{tpu_custom_call.1} parent=1 // loop_pre_header
      _
    $region3: #{tpu_custom_call.1} parent=1 // loop_header
      %s18 = sphi 0, %s22
      %p19 = scmp.ge.s32.totalorder %s18, 4
      %s25 = sphi 0, %s37
      %s26 = sphi 0, %s33
      %s27 = sphi 0, %s25
      %s28 = sphi 0, %s26
      %s29 = sphi 0, %s27
      %s30 = sphi 0, %s28
      %s42 = sphi 0, %s44
      %s45 = sphi 0, %s42
      %s46 = sphi 0, %s45
      %s62 = sphi 0, %s46
      %s74 = sphi 0, %s76
      %s77 = sphi 0, %s74
      %s78 = sphi 0, %s77
      %s94 = sphi 0, %s78
      %s98 = sphi 0, %s98
      %s100 = sphi 0, %s98
      %s101 = sphi 0, %s100
      %s115 = sphi 0, %s101
      %s119 = sphi 0, %s119
      %s121 = sphi 0, %s119
      %s122 = sphi 0, %s121
      %s136 = sphi 0, %s122
      %s144 = sphi 0, %s146
      %s147 = sphi 0, %s144
      %s148 = sphi 0, %s147
      %s164 = sphi 0, %s148
      %s172 = sphi 0, %s174
      %s175 = sphi 0, %s172
      %s176 = sphi 0, %s175
      %s192 = sphi 0, %s176
    $region4: #{tpu_custom_call.1} parent=1 // loop_header_branch
      %21 = sbr.rel (%p19) target = $region8
    $region5: #{tpu_custom_call.1} parent=1 // loop_body
      %s23 = ssub.s32 %s18, 1
      %s24 = ssub.s32 %s18, 2
      %s31 = sadd.s32 1, %s26
      %p32 = scmp.ge.s32.totalorder %s31, 1
      %s33 = scalar_select %p32, 0, %s31
      %s34 = sadd.s32 1, %s25
      %s35 = scalar_select %p32, %s34, %s25
      %p36 = scmp.ge.s32.totalorder %s35, 2
      %s37 = scalar_select %p36, 0, %s35
      %s38 = ssub.s32 %s25, %s37
      %s39 = ssub.s32 %s26, %s33
      %s40 = sor.u32 %s38, %s39
      %p41 = scmp.eq.s32.totalorder %s40, 0
      %s43 = sadd.s32 %s42, 1
      %s44 = scalar_select %p41, %s42, %s43
      %p47 = pneg %p41
      %p48 = scmp.eq.s32.totalorder %s18, 1
      %p49 = por %p47, %p48
      %p50 = scmp.ne.s32.totalorder %s42, %s45
      %p51 = scmp.eq.s32.totalorder %s18, 0
      %p52 = por %p50, %p51
      %p53 = scmp.ne.s32.totalorder %s42, %s45
      %p54 = scmp.eq.s32.totalorder %s23, 1
      %p55 = por %p53, %p54
      %p56 = scmp.ne.s32.totalorder %s45, %s46
      %p57 = scmp.eq.s32.totalorder %s23, 0
      %p58 = por %p56, %p57
      %p59 = scmp.ne.s32.totalorder %s45, %s46
      %p60 = scmp.eq.s32.totalorder %s24, 1
      %p61 = por %p59, %p60
      %p63 = scmp.ne.s32.totalorder %s46, %s62
      %p64 = scmp.eq.s32.totalorder %s24, 0
      %p65 = por %p63, %p64
      %s66 = sadd.s32 %s26, 1
      %s67 = smul.u32 %s66, 8
      %s68 = sadd.s32 %s33, 1
      %s69 = smul.u32 %s68, 8
      %s70 = ssub.s32 %s25, %s37
      %s71 = ssub.s32 %s67, %s69
      %s72 = sor.u32 %s70, %s71
      %p73 = scmp.eq.s32.totalorder %s72, 0
      %s75 = sadd.s32 %s74, 1
      %s76 = scalar_select %p73, %s74, %s75
      %p79 = pneg %p73
      %p80 = scmp.eq.s32.totalorder %s18, 1
      %p81 = por %p79, %p80
      %p82 = scmp.ne.s32.totalorder %s74, %s77
      %p83 = scmp.eq.s32.totalorder %s18, 0
      %p84 = por %p82, %p83
      %p85 = scmp.ne.s32.totalorder %s74, %s77
      %p86 = scmp.eq.s32.totalorder %s23, 1
      %p87 = por %p85, %p86
      %p88 = scmp.ne.s32.totalorder %s77, %s78
      %p89 = scmp.eq.s32.totalorder %s23, 0
      %p90 = por %p88, %p89
      %p91 = scmp.ne.s32.totalorder %s77, %s78
      %p92 = scmp.eq.s32.totalorder %s24, 1
      %p93 = por %p91, %p92
      %p95 = scmp.ne.s32.totalorder %s78, %s94
      %p96 = scmp.eq.s32.totalorder %s24, 0
      %p97 = por %p95, %p96
      %s99 = sadd.s32 %s98, 1
      %p102 = scmp.eq.s32.totalorder %s18, 1
      %p103 = scmp.ne.s32.totalorder %s98, %s100
      %p104 = scmp.eq.s32.totalorder %s18, 0
      %p105 = por %p103, %p104
      %p106 = scmp.ne.s32.totalorder %s98, %s100
      %p107 = scmp.eq.s32.totalorder %s23, 1
      %p108 = por %p106, %p107
      %p109 = scmp.ne.s32.totalorder %s100, %s101
      %p110 = scmp.eq.s32.totalorder %s23, 0
      %p111 = por %p109, %p110
      %p112 = scmp.ne.s32.totalorder %s100, %s101
      %p113 = scmp.eq.s32.totalorder %s24, 1
      %p114 = por %p112, %p113
      %p116 = scmp.ne.s32.totalorder %s101, %s115
      %p117 = scmp.eq.s32.totalorder %s24, 0
      %p118 = por %p116, %p117
      %s120 = sadd.s32 %s119, 1
      %p123 = scmp.eq.s32.totalorder %s18, 1
      %p124 = scmp.ne.s32.totalorder %s119, %s121
      %p125 = scmp.eq.s32.totalorder %s18, 0
      %p126 = por %p124, %p125
      %p127 = scmp.ne.s32.totalorder %s119, %s121
      %p128 = scmp.eq.s32.totalorder %s23, 1
      %p129 = por %p127, %p128
      %p130 = scmp.ne.s32.totalorder %s121, %s122
      %p131 = scmp.eq.s32.totalorder %s23, 0
      %p132 = por %p130, %p131
      %p133 = scmp.ne.s32.totalorder %s121, %s122
      %p134 = scmp.eq.s32.totalorder %s24, 1
      %p135 = por %p133, %p134
      %p137 = scmp.ne.s32.totalorder %s122, %s136
      %p138 = scmp.eq.s32.totalorder %s24, 0
      %p139 = por %p137, %p138
      %s140 = ssub.s32 %s25, %s37
      %s141 = ssub.s32 %s26, %s33
      %s142 = sor.u32 %s140, %s141
      %p143 = scmp.eq.s32.totalorder %s142, 0
      %s145 = sadd.s32 %s144, 1
      %s146 = scalar_select %p143, %s144, %s145
      %p149 = pneg %p143
      %p150 = scmp.eq.s32.totalorder %s18, 1
      %p151 = por %p149, %p150
      %p152 = scmp.ne.s32.totalorder %s144, %s147
      %p153 = scmp.eq.s32.totalorder %s18, 0
      %p154 = por %p152, %p153
      %p155 = scmp.ne.s32.totalorder %s144, %s147
      %p156 = scmp.eq.s32.totalorder %s23, 1
      %p157 = por %p155, %p156
      %p158 = scmp.ne.s32.totalorder %s147, %s148
      %p159 = scmp.eq.s32.totalorder %s23, 0
      %p160 = por %p158, %p159
      %p161 = scmp.ne.s32.totalorder %s147, %s148
      %p162 = scmp.eq.s32.totalorder %s24, 1
      %p163 = por %p161, %p162
      %p165 = scmp.ne.s32.totalorder %s148, %s164
      %p166 = scmp.eq.s32.totalorder %s24, 0
      %p167 = por %p165, %p166
      %s168 = ssub.s32 %s25, %s37
      %s169 = ssub.s32 %s26, %s33
      %s170 = sor.u32 %s168, %s169
      %p171 = scmp.eq.s32.totalorder %s170, 0
      %s173 = sadd.s32 %s172, 1
      %s174 = scalar_select %p171, %s172, %s173
      %p177 = pneg %p171
      %p178 = scmp.eq.s32.totalorder %s18, 1
      %p179 = por %p177, %p178
      %p180 = scmp.ne.s32.totalorder %s172, %s175
      %p181 = scmp.eq.s32.totalorder %s18, 0
      %p182 = por %p180, %p181
      %p183 = scmp.ne.s32.totalorder %s172, %s175
      %p184 = scmp.eq.s32.totalorder %s23, 1
      %p185 = por %p183, %p184
      %p186 = scmp.ne.s32.totalorder %s175, %s176
      %p187 = scmp.eq.s32.totalorder %s23, 0
      %p188 = por %p186, %p187
      %p189 = scmp.ne.s32.totalorder %s175, %s176
      %p190 = scmp.eq.s32.totalorder %s24, 1
      %p191 = por %p189, %p190
      %p193 = scmp.ne.s32.totalorder %s176, %s192
      %p194 = scmp.eq.s32.totalorder %s24, 0
      %p195 = por %p193, %p194
      %p196 = scmp.le.s32.totalorder 1, %s18
      %p197 = scmp.lt.s32.totalorder %s18, 3
      %p198 = pnand %p196, %p197
      %p199 = pneg %p198
      // Predicated region
      $region9: #{tpu_custom_call.1} parent=5 // pred_check
        _
      $region10: #{tpu_custom_call.1} parent=5 // pred_check_branch
        %201 = sbr.rel (%p198) target = $region12
      $region11: #{tpu_custom_call.1} parent=5 // pred_region
        %s202 = ssub.s32 %s18, 1
        // Predicated region
        $region13: #{tpu_custom_call.1} parent=11 // pred_check
          %p203 = pneg %p111
        $region14: #{tpu_custom_call.1} parent=11 // pred_check_branch
          %205 = sbr.rel (%p203) target = $region16
        $region15: #{tpu_custom_call.1} parent=11 // pred_region
          _
        $region16: #{tpu_custom_call.1} parent=11 // pred_fallthru
          _
        // Predicated region
        $region17: #{tpu_custom_call.1} parent=11 // pred_check
          %p206 = pneg %p132
        $region18: #{tpu_custom_call.1} parent=11 // pred_check_branch
          %208 = sbr.rel (%p206) target = $region20
        $region19: #{tpu_custom_call.1} parent=11 // pred_region
          _
        $region20: #{tpu_custom_call.1} parent=11 // pred_fallthru
          _
      $region12: #{tpu_custom_call.1} parent=5 // pred_fallthru
        _
      %p209 = scmp.lt.s32.totalorder %s18, 2
      // Predicated region
      $region21: #{tpu_custom_call.1} parent=5 // pred_check
        %p210 = pneg %p209
      $region22: #{tpu_custom_call.1} parent=5 // pred_check_branch
        %212 = sbr.rel (%p210) target = $region24
      $region23: #{tpu_custom_call.1} parent=5 // pred_region
        // Predicated region
        $region25: #{tpu_custom_call.1} parent=23 // pred_check
          %p213 = pneg %p52
        $region26: #{tpu_custom_call.1} parent=23 // pred_check_branch
          %215 = sbr.rel (%p213) target = $region28
        $region27: #{tpu_custom_call.1} parent=23 // pred_region
          %s216 = smul.u32 16, %s26
          %s217 = ssub.s32 18, %s216
          %p218 = scmp.lt.s32.totalorder %s217, 16
          %s219 = scalar_select %p218, %s217, 16
          %s220 = smul.u32 64, %s219
          %s221 = smul.u32 %s220, 3
          %p222 = scmp.lt.s32.totalorder %s25, 1
          %s223 = scalar_select %p222, %s25, 1
          %p224 = scmp.lt.s32.totalorder %s216, 17
          %s225 = scalar_select %p224, %s216, 17
          %s226 = smul.addr %s225, 3
          %s227 = smul.addr %s223, 54
          %s228 = sadd.s32 %s226, %s227
          %s229 = smul.addr %s228, 4
          %s230 = scalar_lea.vmem %s0, %s229
          %s231 = smul.u32 16, %s26
          %s232 = ssub.s32 18, %s231
          %p233 = scmp.lt.s32.totalorder %s232, 16
          %s234 = scalar_select %p233, %s232, 16
          %s235 = smul.u32 64, %s234
          %s236 = smul.u32 %s235, 3
        $region28: #{tpu_custom_call.1} parent=23 // pred_fallthru
          _
        // Predicated region
        $region29: #{tpu_custom_call.1} parent=23 // pred_check
          %p237 = pneg %p84
        $region30: #{tpu_custom_call.1} parent=23 // pred_check_branch
          %239 = sbr.rel (%p237) target = $region32
        $region31: #{tpu_custom_call.1} parent=23 // pred_region
          %s240 = sadd.s32 %s26, 1
          %s241 = smul.u32 %s240, 8
          %s242 = smul.u32 2, %s241
          %p243 = scmp.lt.s32.totalorder %s25, 1
          %s244 = scalar_select %p243, %s25, 1
          %p245 = scmp.lt.s32.totalorder %s242, 17
          %s246 = scalar_select %p245, %s242, 17
          %s247 = smul.addr %s246, 3
          %s248 = smul.addr %s244, 54
          %s249 = sadd.s32 %s247, %s248
          %s250 = smul.addr %s249, 4
          %s251 = scalar_lea.vmem %s1, %s250
          %s252 = sadd.s32 %s26, 1
          %s253 = smul.u32 %s252, 8
          %s254 = smul.u32 2, %s253
        $region32: #{tpu_custom_call.1} parent=23 // pred_fallthru
          _
      $region24: #{tpu_custom_call.1} parent=5 // pred_fallthru
        _
      %p255 = scmp.le.s32.totalorder 1, %s18
      %p256 = scmp.lt.s32.totalorder %s18, 3
      %p257 = pnand %p255, %p256
      %p258 = pneg %p257
      // Predicated region
      $region33: #{tpu_custom_call.1} parent=5 // pred_check
        _
      $region34: #{tpu_custom_call.1} parent=5 // pred_check_branch
        %260 = sbr.rel (%p257) target = $region36
      $region35: #{tpu_custom_call.1} parent=5 // pred_region
        %s261 = ssub.s32 %s18, 1
        %s262 = smul.u32 16, %s28
        %s263 = ssub.s32 18, %s262
        %p264 = scmp.lt.s32.totalorder %s263, 16
        %s265 = scalar_select %p264, %s263, 16
        %s266 = smul.u32 64, %s265
        %s267 = smul.u32 %s266, 3
        %p268 = scmp.lt.s32.totalorder %s27, 1
        %s269 = scalar_select %p268, %s27, 1
        %p270 = scmp.lt.s32.totalorder %s262, 17
        %s271 = scalar_select %p270, %s262, 17
        %s272 = smul.addr %s271, 3
        %s273 = smul.addr %s269, 54
        %s274 = sadd.s32 %s272, %s273
        %s275 = smul.addr %s274, 4
        %s276 = scalar_lea.vmem %s0, %s275
        %p277 = pneg %p58
        %p278 = pneg %p55
        %s279 = sadd.s32 %s28, 1
        %s280 = smul.u32 %s279, 8
        %s281 = smul.u32 2, %s280
        %p282 = scmp.lt.s32.totalorder %s27, 1
        %s283 = scalar_select %p282, %s27, 1
        %p284 = scmp.lt.s32.totalorder %s281, 17
        %s285 = scalar_select %p284, %s281, 17
        %s286 = smul.addr %s285, 3
        %s287 = smul.addr %s283, 54
        %s288 = sadd.s32 %s286, %s287
        %s289 = smul.addr %s288, 4
        %s290 = scalar_lea.vmem %s1, %s289
        %p291 = pneg %p90
        %p292 = pneg %p87
        %p293 = pneg %p111
        %p294 = pneg %p108
        %p295 = pneg %p132
        %p296 = pneg %p129
        %p297 = pneg %p160
        %p298 = pneg %p157
        %s299 = sand.u32 %s147, 1
        %s300 = scalar_lea.sflag [#allocation4], %s299
        %s301 = sand.u32 %s147, 1
        %s302 = smul.addr %s301, 16
        %s303 = scalar_lea.vmem [#allocation3], %s302
        %p304 = pneg %p188
        %p305 = pneg %p185
        %s306 = sand.u32 %s175, 1
        %s307 = scalar_lea.sflag [#allocation6], %s306
        %s308 = sand.u32 %s175, 1
        %s309 = smul.addr %s308, 8
        %s310 = scalar_lea.vmem [#allocation5], %s309
        %s311 = smul.u32 16, %s28
        %s312 = ssub.s32 18, %s311
        %p313 = scmp.lt.s32.totalorder %s312, 16
        %s314 = scalar_select %p313, %s312, 16
        %s315 = smul.u32 64, %s314
        %s316 = smul.u32 %s315, 3
        %p317 = scmp.lt.s32.totalorder %s27, 1
        %s318 = scalar_select %p317, %s27, 1
        %p319 = scmp.lt.s32.totalorder %s311, 17
        %s320 = scalar_select %p319, %s311, 17
        %s321 = smul.addr %s320, 3
        %s322 = smul.addr %s318, 54
        %s323 = sadd.s32 %s321, %s322
        %s324 = smul.addr %s323, 4
        %s325 = scalar_lea.vmem %s0, %s324
        %s326 = smul.u32 16, %s28
        %s327 = ssub.s32 18, %s326
        %p328 = scmp.lt.s32.totalorder %s327, 16
        %s329 = scalar_select %p328, %s327, 16
        %s330 = smul.u32 64, %s329
        %s331 = smul.u32 %s330, 3
        %s332 = sadd.s32 %s28, 1
        %s333 = smul.u32 %s332, 8
        %s334 = smul.u32 2, %s333
        %p335 = scmp.lt.s32.totalorder %s27, 1
        %s336 = scalar_select %p335, %s27, 1
        %p337 = scmp.lt.s32.totalorder %s334, 17
        %s338 = scalar_select %p337, %s334, 17
        %s339 = smul.addr %s338, 3
        %s340 = smul.addr %s336, 54
        %s341 = sadd.s32 %s339, %s340
        %s342 = smul.addr %s341, 4
        %s343 = scalar_lea.vmem %s1, %s342
        %s344 = sadd.s32 %s28, 1
        %s345 = smul.u32 %s344, 8
        %s346 = smul.u32 2, %s345
        %s347 = smul.u32 2, %s28
        %v349 = vld [vmem:[%s325] sm:$0xf]
        %v350 = vld [vmem:[%s325 + $0x4] sm:$0xf]
        %v351 = vld [vmem:[%s325 + $0x8] sm:$0x1]
        %v352 = vld [vmem:[%s325 + $0xc] sm:$0xf]
        %v353 = vld [vmem:[%s325 + $0x10] sm:$0xf]
        %v354 = vld [vmem:[%s325 + $0x14] sm:$0x1]
        %v355 = vld [vmem:[%s325 + $0x18] sm:$0xf]
        %v356 = vld [vmem:[%s325 + $0x1c] sm:$0xf]
        %v357 = vld [vmem:[%s325 + $0x20] sm:$0x1]
        %v358 = vld [vmem:[%s325 + $0x24] sm:$0xf]
        %v359 = vld [vmem:[%s325 + $0x28] sm:$0xf]
        %v360 = vld [vmem:[%s325 + $0x2c] sm:$0x1]
        %v361 = vld [vmem:[%s325 + $0x30] sm:$0xf]
        %v362 = vld [vmem:[%s325 + $0x34] sm:$0xf]
        %v363 = vld [vmem:[%s325 + $0x38] sm:$0x1]
        %v364 = vld [vmem:[%s325 + $0x3c] sm:$0xf]
        %v365 = vld [vmem:[%s325 + $0x40] sm:$0xf]
        %v366 = vld [vmem:[%s325 + $0x44] sm:$0x1]
        %v367 = vld [vmem:[%s325 + $0x48] sm:$0xf]
        %v368 = vld [vmem:[%s325 + $0x4c] sm:$0xf]
        %v369 = vld [vmem:[%s325 + $0x50] sm:$0x1]
        %v370 = vld [vmem:[%s325 + $0x54] sm:$0xf]
        %v371 = vld [vmem:[%s325 + $0x58] sm:$0xf]
        %v372 = vld [vmem:[%s325 + $0x5c] sm:$0x1]
        %v373 = vld [vmem:[%s325 + $0x60] sm:$0xf]
        %v374 = vld [vmem:[%s325 + $0x64] sm:$0xf]
        %v375 = vld [vmem:[%s325 + $0x68] sm:$0x1]
        %v376 = vld [vmem:[%s325 + $0x6c] sm:$0xf]
        %v377 = vld [vmem:[%s325 + $0x70] sm:$0xf]
        %v378 = vld [vmem:[%s325 + $0x74] sm:$0x1]
        %v379 = vld [vmem:[%s325 + $0x78] sm:$0xf]
        %v380 = vld [vmem:[%s325 + $0x7c] sm:$0xf]
        %v381 = vld [vmem:[%s325 + $0x80] sm:$0x1]
        %v382 = vld [vmem:[%s325 + $0x84] sm:$0xf]
        %v383 = vld [vmem:[%s325 + $0x88] sm:$0xf]
        %v384 = vld [vmem:[%s325 + $0x8c] sm:$0x1]
        %v385 = vld [vmem:[%s325 + $0x90] sm:$0xf]
        %v386 = vld [vmem:[%s325 + $0x94] sm:$0xf]
        %v387 = vld [vmem:[%s325 + $0x98] sm:$0x1]
        %v388 = vld [vmem:[%s325 + $0x9c] sm:$0xf]
        %v389 = vld [vmem:[%s325 + $0xa0] sm:$0xf]
        %v390 = vld [vmem:[%s325 + $0xa4] sm:$0x1]
        %v391 = vld [vmem:[%s325 + $0xa8] sm:$0xf]
        %v392 = vld [vmem:[%s325 + $0xac] sm:$0xf]
        %v393 = vld [vmem:[%s325 + $0xb0] sm:$0x1]
        %v394 = vld [vmem:[%s325 + $0xb4] sm:$0xf]
        %v395 = vld [vmem:[%s325 + $0xb8] sm:$0xf]
        %v396 = vld [vmem:[%s325 + $0xbc] sm:$0x1]
        %vm397 = vcmask 289792
        %398 = vst.msk [vmem:[#allocation2] sm:$0xf] %vm397, %v349
        %399 = vst.msk [vmem:[#allocation2 + $0x4] sm:$0xf] %vm397, %v350
        %vm400 = vcmask 286720
        %401 = vst.msk [vmem:[#allocation2 + $0x8] sm:$0x1] %vm400, %v351
        %402 = vst.msk [vmem:[#allocation2 + $0xc] sm:$0xf] %vm397, %v352
        %403 = vst.msk [vmem:[#allocation2 + $0x10] sm:$0xf] %vm397, %v353
        %404 = vst.msk [vmem:[#allocation2 + $0x14] sm:$0x1] %vm400, %v354
        %405 = vst.msk [vmem:[#allocation2 + $0x18] sm:$0xf] %vm397, %v355
        %406 = vst.msk [vmem:[#allocation2 + $0x1c] sm:$0xf] %vm397, %v356
        %407 = vst.msk [vmem:[#allocation2 + $0x20] sm:$0x1] %vm400, %v357
        %408 = vst.msk [vmem:[#allocation2 + $0x24] sm:$0xf] %vm397, %v358
        %409 = vst.msk [vmem:[#allocation2 + $0x28] sm:$0xf] %vm397, %v359
        %410 = vst.msk [vmem:[#allocation2 + $0x2c] sm:$0x1] %vm400, %v360
        %411 = vst.msk [vmem:[#allocation2 + $0x30] sm:$0xf] %vm397, %v361
        %412 = vst.msk [vmem:[#allocation2 + $0x34] sm:$0xf] %vm397, %v362
        %413 = vst.msk [vmem:[#allocation2 + $0x38] sm:$0x1] %vm400, %v363
        %414 = vst.msk [vmem:[#allocation2 + $0x3c] sm:$0xf] %vm397, %v364
        %415 = vst.msk [vmem:[#allocation2 + $0x40] sm:$0xf] %vm397, %v365
        %416 = vst.msk [vmem:[#allocation2 + $0x44] sm:$0x1] %vm400, %v366
        %417 = vst.msk [vmem:[#allocation2 + $0x48] sm:$0xf] %vm397, %v367
        %418 = vst.msk [vmem:[#allocation2 + $0x4c] sm:$0xf] %vm397, %v368
        %419 = vst.msk [vmem:[#allocation2 + $0x50] sm:$0x1] %vm400, %v369
        %420 = vst.msk [vmem:[#allocation2 + $0x54] sm:$0xf] %vm397, %v370
        %421 = vst.msk [vmem:[#allocation2 + $0x58] sm:$0xf] %vm397, %v371
        %422 = vst.msk [vmem:[#allocation2 + $0x5c] sm:$0x1] %vm400, %v372
        %423 = vst.msk [vmem:[#allocation2 + $0x60] sm:$0xf] %vm397, %v373
        %424 = vst.msk [vmem:[#allocation2 + $0x64] sm:$0xf] %vm397, %v374
        %425 = vst.msk [vmem:[#allocation2 + $0x68] sm:$0x1] %vm400, %v375
        %426 = vst.msk [vmem:[#allocation2 + $0x6c] sm:$0xf] %vm397, %v376
        %427 = vst.msk [vmem:[#allocation2 + $0x70] sm:$0xf] %vm397, %v377
        %428 = vst.msk [vmem:[#allocation2 + $0x74] sm:$0x1] %vm400, %v378
        %429 = vst.msk [vmem:[#allocation2 + $0x78] sm:$0xf] %vm397, %v379
        %430 = vst.msk [vmem:[#allocation2 + $0x7c] sm:$0xf] %vm397, %v380
        %431 = vst.msk [vmem:[#allocation2 + $0x80] sm:$0x1] %vm400, %v381
        %432 = vst.msk [vmem:[#allocation2 + $0x84] sm:$0xf] %vm397, %v382
        %433 = vst.msk [vmem:[#allocation2 + $0x88] sm:$0xf] %vm397, %v383
        %434 = vst.msk [vmem:[#allocation2 + $0x8c] sm:$0x1] %vm400, %v384
        %435 = vst.msk [vmem:[#allocation2 + $0x90] sm:$0xf] %vm397, %v385
        %436 = vst.msk [vmem:[#allocation2 + $0x94] sm:$0xf] %vm397, %v386
        %437 = vst.msk [vmem:[#allocation2 + $0x98] sm:$0x1] %vm400, %v387
        %438 = vst.msk [vmem:[#allocation2 + $0x9c] sm:$0xf] %vm397, %v388
        %439 = vst.msk [vmem:[#allocation2 + $0xa0] sm:$0xf] %vm397, %v389
        %440 = vst.msk [vmem:[#allocation2 + $0xa4] sm:$0x1] %vm400, %v390
        %441 = vst.msk [vmem:[#allocation2 + $0xa8] sm:$0xf] %vm397, %v391
        %442 = vst.msk [vmem:[#allocation2 + $0xac] sm:$0xf] %vm397, %v392
        %443 = vst.msk [vmem:[#allocation2 + $0xb0] sm:$0x1] %vm400, %v393
        %444 = vst.msk [vmem:[#allocation2 + $0xb4] sm:$0xf] %vm397, %v394
        %445 = vst.msk [vmem:[#allocation2 + $0xb8] sm:$0xf] %vm397, %v395
        %446 = vst.msk [vmem:[#allocation2 + $0xbc] sm:$0x1] %vm400, %v396
        %v447 = vld [vmem:[%s343] sm:$0xf]
        %v448 = vld [vmem:[%s343 + $0x4] sm:$0xf]
        %v449 = vld [vmem:[%s343 + $0x8] sm:$0x1]
        %v450 = vld [vmem:[%s343 + $0xc] sm:$0xf]
        %v451 = vld [vmem:[%s343 + $0x10] sm:$0xf]
        %v452 = vld [vmem:[%s343 + $0x14] sm:$0x1]
        %s453 = scalar_lea.vmem [#allocation2], 192
        %454 = vst.msk [vmem:[%s453] sm:$0xf] %vm397, %v447
        %455 = vst.msk [vmem:[%s453 + $0x4] sm:$0xf] %vm397, %v448
        %456 = vst.msk [vmem:[%s453 + $0x8] sm:$0x1] %vm400, %v449
        %457 = vst.msk [vmem:[%s453 + $0xc] sm:$0xf] %vm397, %v450
        %458 = vst.msk [vmem:[%s453 + $0x10] sm:$0xf] %vm397, %v451
        %459 = vst.msk [vmem:[%s453 + $0x14] sm:$0x1] %vm400, %v452
        %v460 = vld [vmem:[#allocation2] sm:$0xf]
        %v461 = vld [vmem:[#allocation2 + $0x4] sm:$0xf]
        %v462 = vld [vmem:[#allocation2 + $0xc] sm:$0xf]
        %v463 = vld [vmem:[#allocation2 + $0x10] sm:$0xf]
        %v464 = vld [vmem:[#allocation2 + $0x18] sm:$0xf]
        %v465 = vld [vmem:[#allocation2 + $0x1c] sm:$0xf]
        %v466 = vld [vmem:[#allocation2 + $0x24] sm:$0xf]
        %v467 = vld [vmem:[#allocation2 + $0x28] sm:$0xf]
        %v468 = vld [vmem:[#allocation2 + $0x30] sm:$0xf]
        %v469 = vld [vmem:[#allocation2 + $0x34] sm:$0xf]
        %v470 = vld [vmem:[#allocation2 + $0x3c] sm:$0xf]
        %v471 = vld [vmem:[#allocation2 + $0x40] sm:$0xf]
        %v472 = vld [vmem:[#allocation2 + $0x48] sm:$0xf]
        %v473 = vld [vmem:[#allocation2 + $0x4c] sm:$0xf]
        %v474 = vld [vmem:[#allocation2 + $0x54] sm:$0xf]
        %v475 = vld [vmem:[#allocation2 + $0x58] sm:$0xf]
        %v476 = vld [vmem:[#allocation2 + $0x60] sm:$0xf]
        %v477 = vld [vmem:[#allocation2 + $0x64] sm:$0xf]
        %v478 = vld [vmem:[#allocation2 + $0x6c] sm:$0xf]
        %v479 = vld [vmem:[#allocation2 + $0x70] sm:$0xf]
        %v480 = vld [vmem:[#allocation2 + $0x78] sm:$0xf]
        %v481 = vld [vmem:[#allocation2 + $0x7c] sm:$0xf]
        %v482 = vld [vmem:[#allocation2 + $0x84] sm:$0xf]
        %v483 = vld [vmem:[#allocation2 + $0x88] sm:$0xf]
        %v484 = vld [vmem:[#allocation2 + $0x90] sm:$0xf]
        %v485 = vld [vmem:[#allocation2 + $0x94] sm:$0xf]
        %v486 = vld [vmem:[#allocation2 + $0x9c] sm:$0xf]
        %v487 = vld [vmem:[#allocation2 + $0xa0] sm:$0xf]
        %v488 = vld [vmem:[#allocation2 + $0xa8] sm:$0xf]
        %v489 = vld [vmem:[#allocation2 + $0xac] sm:$0xf]
        %v490 = vld [vmem:[#allocation2 + $0xb4] sm:$0xf]
        %v491 = vld [vmem:[#allocation2 + $0xb8] sm:$0xf]
        %v492 = vld [vmem:[%s2] sm:$0xf]
        %v493 = vld [vmem:[%s2 + $0x4] sm:$0xf]
        %v494 = vld [vmem:[%s2 + $0x8] sm:$0xf]
        %v495 = vld [vmem:[%s2 + $0xc] sm:$0xf]
        %v496 = vld [vmem:[%s2 + $0x10] sm:$0x3]
        %v497 = vld [vmem:[#allocation2 + $0x8] sm:$0x1]
        %v498 = vld [vmem:[#allocation2 + $0x14] sm:$0x1]
        %v499 = vld [vmem:[#allocation2 + $0x20] sm:$0x1]
        %v500 = vld [vmem:[#allocation2 + $0x2c] sm:$0x1]
        %v501 = vld [vmem:[#allocation2 + $0x38] sm:$0x1]
        %v502 = vld [vmem:[#allocation2 + $0x44] sm:$0x1]
        %v503 = vld [vmem:[#allocation2 + $0x50] sm:$0x1]
        %v504 = vld [vmem:[#allocation2 + $0x5c] sm:$0x1]
        %v505 = vld [vmem:[#allocation2 + $0x68] sm:$0x1]
        %v506 = vld [vmem:[#allocation2 + $0x74] sm:$0x1]
        %v507 = vld [vmem:[#allocation2 + $0x80] sm:$0x1]
        %v508 = vld [vmem:[#allocation2 + $0x8c] sm:$0x1]
        %v509 = vld [vmem:[#allocation2 + $0x98] sm:$0x1]
        %v510 = vld [vmem:[#allocation2 + $0xa4] sm:$0x1]
        %v511 = vld [vmem:[#allocation2 + $0xb0] sm:$0x1]
        %v512 = vld [vmem:[#allocation2 + $0xbc] sm:$0x1]
        %vm513 = vsmask.f32 3328
        %vm514 = vsmask.f32 7440
        %vm515 = vmor %vm513, %vm514
        %v517 = vshrl.u32 %v460, 16
        %v519 = vrot.slane %v517, 4
        %v520 = vshll.u32 %v460, 16
        %v522 = vrot.slane %v520, 5
        %v523 = vor.u32 %v519, %v522
        %v524 = vrot.slane %v523, 4
        %v526 = vshll.u32 %v461, 16
        %v528 = vrot.slane %v526, 5
        %v529 = vsel %vm515, %v524, %v528
        %v530 = vshrl.u32 %v461, 16
        %v532 = vrot.slane %v530, 4
        %v533 = vor.u32 %v532, %v528
        %v534 = vrot.slane %v533, 4
        %v536 = vshll.u32 %v497, 16
        %v538 = vrot.slane %v536, 5
        %v539 = vsel %vm515, %v534, %v538
        %v541 = vshrl.u32 %v462, 16
        %v543 = vrot.slane %v541, 4
        %v544 = vshll.u32 %v462, 16
        %v546 = vrot.slane %v544, 5
        %v547 = vor.u32 %v543, %v546
        %v548 = vrot.slane %v547, 4
        %v550 = vshll.u32 %v463, 16
        %v552 = vrot.slane %v550, 5
        %v553 = vsel %vm515, %v548, %v552
        %v554 = vshrl.u32 %v463, 16
        %v556 = vrot.slane %v554, 4
        %v557 = vor.u32 %v556, %v552
        %v558 = vrot.slane %v557, 4
        %v560 = vshll.u32 %v498, 16
        %v562 = vrot.slane %v560, 5
        %v563 = vsel %vm515, %v558, %v562
        %v565 = vshrl.u32 %v464, 16
        %v567 = vrot.slane %v565, 4
        %v568 = vshll.u32 %v464, 16
        %v570 = vrot.slane %v568, 5
        %v571 = vor.u32 %v567, %v570
        %v572 = vrot.slane %v571, 4
        %v574 = vshll.u32 %v465, 16
        %v576 = vrot.slane %v574, 5
        %v577 = vsel %vm515, %v572, %v576
        %v578 = vshrl.u32 %v465, 16
        %v580 = vrot.slane %v578, 4
        %v581 = vor.u32 %v580, %v576
        %v582 = vrot.slane %v581, 4
        %v584 = vshll.u32 %v499, 16
        %v586 = vrot.slane %v584, 5
        %v587 = vsel %vm515, %v582, %v586
        %v589 = vshrl.u32 %v466, 16
        %v591 = vrot.slane %v589, 4
        %v592 = vshll.u32 %v466, 16
        %v594 = vrot.slane %v592, 5
        %v595 = vor.u32 %v591, %v594
        %v596 = vrot.slane %v595, 4
        %v598 = vshll.u32 %v467, 16
        %v600 = vrot.slane %v598, 5
        %v601 = vsel %vm515, %v596, %v600
        %v602 = vshrl.u32 %v467, 16
        %v604 = vrot.slane %v602, 4
        %v605 = vor.u32 %v604, %v600
        %v606 = vrot.slane %v605, 4
        %v608 = vshll.u32 %v500, 16
        %v610 = vrot.slane %v608, 5
        %v611 = vsel %vm515, %v606, %v610
        %v613 = vshrl.u32 %v468, 16
        %v615 = vrot.slane %v613, 4
        %v616 = vshll.u32 %v468, 16
        %v618 = vrot.slane %v616, 5
        %v619 = vor.u32 %v615, %v618
        %v620 = vrot.slane %v619, 4
        %v622 = vshll.u32 %v469, 16
        %v624 = vrot.slane %v622, 5
        %v625 = vsel %vm515, %v620, %v624
        %v626 = vshrl.u32 %v469, 16
        %v628 = vrot.slane %v626, 4
        %v629 = vor.u32 %v628, %v624
        %v630 = vrot.slane %v629, 4
        %v632 = vshll.u32 %v501, 16
        %v634 = vrot.slane %v632, 5
        %v635 = vsel %vm515, %v630, %v634
        %v637 = vshrl.u32 %v470, 16
        %v639 = vrot.slane %v637, 4
        %v640 = vshll.u32 %v470, 16
        %v642 = vrot.slane %v640, 5
        %v643 = vor.u32 %v639, %v642
        %v644 = vrot.slane %v643, 4
        %v646 = vshll.u32 %v471, 16
        %v648 = vrot.slane %v646, 5
        %v649 = vsel %vm515, %v644, %v648
        %v650 = vshrl.u32 %v471, 16
        %v652 = vrot.slane %v650, 4
        %v653 = vor.u32 %v652, %v648
        %v654 = vrot.slane %v653, 4
        %v656 = vshll.u32 %v502, 16
        %v658 = vrot.slane %v656, 5
        %v659 = vsel %vm515, %v654, %v658
        %v661 = vshrl.u32 %v472, 16
        %v663 = vrot.slane %v661, 4
        %v664 = vshll.u32 %v472, 16
        %v666 = vrot.slane %v664, 5
        %v667 = vor.u32 %v663, %v666
        %v668 = vrot.slane %v667, 4
        %v670 = vshll.u32 %v473, 16
        %v672 = vrot.slane %v670, 5
        %v673 = vsel %vm515, %v668, %v672
        %v674 = vshrl.u32 %v473, 16
        %v676 = vrot.slane %v674, 4
        %v677 = vor.u32 %v676, %v672
        %v678 = vrot.slane %v677, 4
        %v680 = vshll.u32 %v503, 16
        %v682 = vrot.slane %v680, 5
        %v683 = vsel %vm515, %v678, %v682
        %v685 = vshrl.u32 %v474, 16
        %v687 = vrot.slane %v685, 4
        %v688 = vshll.u32 %v474, 16
        %v690 = vrot.slane %v688, 5
        %v691 = vor.u32 %v687, %v690
        %v692 = vrot.slane %v691, 4
        %v694 = vshll.u32 %v475, 16
        %v696 = vrot.slane %v694, 5
        %v697 = vsel %vm515, %v692, %v696
        %v698 = vshrl.u32 %v475, 16
        %v700 = vrot.slane %v698, 4
        %v701 = vor.u32 %v700, %v696
        %v702 = vrot.slane %v701, 4
        %v704 = vshll.u32 %v504, 16
        %v706 = vrot.slane %v704, 5
        %v707 = vsel %vm515, %v702, %v706
        %v709 = vshrl.u32 %v476, 16
        %v711 = vrot.slane %v709, 4
        %v712 = vshll.u32 %v476, 16
        %v714 = vrot.slane %v712, 5
        %v715 = vor.u32 %v711, %v714
        %v716 = vrot.slane %v715, 4
        %v718 = vshll.u32 %v477, 16
        %v720 = vrot.slane %v718, 5
        %v721 = vsel %vm515, %v716, %v720
        %v722 = vshrl.u32 %v477, 16
        %v724 = vrot.slane %v722, 4
        %v725 = vor.u32 %v724, %v720
        %v726 = vrot.slane %v725, 4
        %v728 = vshll.u32 %v505, 16
        %v730 = vrot.slane %v728, 5
        %v731 = vsel %vm515, %v726, %v730
        %v733 = vshrl.u32 %v478, 16
        %v735 = vrot.slane %v733, 4
        %v736 = vshll.u32 %v478, 16
        %v738 = vrot.slane %v736, 5
        %v739 = vor.u32 %v735, %v738
        %v740 = vrot.slane %v739, 4
        %v742 = vshll.u32 %v479, 16
        %v744 = vrot.slane %v742, 5
        %v745 = vsel %vm515, %v740, %v744
        %v746 = vshrl.u32 %v479, 16
        %v748 = vrot.slane %v746, 4
        %v749 = vor.u32 %v748, %v744
        %v750 = vrot.slane %v749, 4
        %v752 = vshll.u32 %v506, 16
        %v754 = vrot.slane %v752, 5
        %v755 = vsel %vm515, %v750, %v754
        %v757 = vshrl.u32 %v480, 16
        %v759 = vrot.slane %v757, 4
        %v760 = vshll.u32 %v480, 16
        %v762 = vrot.slane %v760, 5
        %v763 = vor.u32 %v759, %v762
        %v764 = vrot.slane %v763, 4
        %v766 = vshll.u32 %v481, 16
        %v768 = vrot.slane %v766, 5
        %v769 = vsel %vm515, %v764, %v768
        %v770 = vshrl.u32 %v481, 16
        %v772 = vrot.slane %v770, 4
        %v773 = vor.u32 %v772, %v768
        %v774 = vrot.slane %v773, 4
        %v776 = vshll.u32 %v507, 16
        %v778 = vrot.slane %v776, 5
        %v779 = vsel %vm515, %v774, %v778
        %v781 = vshrl.u32 %v482, 16
        %v783 = vrot.slane %v781, 4
        %v784 = vshll.u32 %v482, 16
        %v786 = vrot.slane %v784, 5
        %v787 = vor.u32 %v783, %v786
        %v788 = vrot.slane %v787, 4
        %v790 = vshll.u32 %v483, 16
        %v792 = vrot.slane %v790, 5
        %v793 = vsel %vm515, %v788, %v792
        %v794 = vshrl.u32 %v483, 16
        %v796 = vrot.slane %v794, 4
        %v797 = vor.u32 %v796, %v792
        %v798 = vrot.slane %v797, 4
        %v800 = vshll.u32 %v508, 16
        %v802 = vrot.slane %v800, 5
        %v803 = vsel %vm515, %v798, %v802
        %v805 = vshrl.u32 %v484, 16
        %v807 = vrot.slane %v805, 4
        %v808 = vshll.u32 %v484, 16
        %v810 = vrot.slane %v808, 5
        %v811 = vor.u32 %v807, %v810
        %v812 = vrot.slane %v811, 4
        %v814 = vshll.u32 %v485, 16
        %v816 = vrot.slane %v814, 5
        %v817 = vsel %vm515, %v812, %v816
        %v818 = vshrl.u32 %v485, 16
        %v820 = vrot.slane %v818, 4
        %v821 = vor.u32 %v820, %v816
        %v822 = vrot.slane %v821, 4
        %v824 = vshll.u32 %v509, 16
        %v826 = vrot.slane %v824, 5
        %v827 = vsel %vm515, %v822, %v826
        %v829 = vshrl.u32 %v486, 16
        %v831 = vrot.slane %v829, 4
        %v832 = vshll.u32 %v486, 16
        %v834 = vrot.slane %v832, 5
        %v835 = vor.u32 %v831, %v834
        %v836 = vrot.slane %v835, 4
        %v838 = vshll.u32 %v487, 16
        %v840 = vrot.slane %v838, 5
        %v841 = vsel %vm515, %v836, %v840
        %v842 = vshrl.u32 %v487, 16
        %v844 = vrot.slane %v842, 4
        %v845 = vor.u32 %v844, %v840
        %v846 = vrot.slane %v845, 4
        %v848 = vshll.u32 %v510, 16
        %v850 = vrot.slane %v848, 5
        %v851 = vsel %vm515, %v846, %v850
        %v853 = vshrl.u32 %v488, 16
        %v855 = vrot.slane %v853, 4
        %v856 = vshll.u32 %v488, 16
        %v858 = vrot.slane %v856, 5
        %v859 = vor.u32 %v855, %v858
        %v860 = vrot.slane %v859, 4
        %v862 = vshll.u32 %v489, 16
        %v864 = vrot.slane %v862, 5
        %v865 = vsel %vm515, %v860, %v864
        %v866 = vshrl.u32 %v489, 16
        %v868 = vrot.slane %v866, 4
        %v869 = vor.u32 %v868, %v864
        %v870 = vrot.slane %v869, 4
        %v872 = vshll.u32 %v511, 16
        %v874 = vrot.slane %v872, 5
        %v875 = vsel %vm515, %v870, %v874
        %v877 = vshrl.u32 %v490, 16
        %v879 = vrot.slane %v877, 4
        %v880 = vshll.u32 %v490, 16
        %v882 = vrot.slane %v880, 5
        %v883 = vor.u32 %v879, %v882
        %v884 = vrot.slane %v883, 4
        %v886 = vshll.u32 %v491, 16
        %v888 = vrot.slane %v886, 5
        %v889 = vsel %vm515, %v884, %v888
        %v890 = vshrl.u32 %v491, 16
        %v892 = vrot.slane %v890, 4
        %v893 = vor.u32 %v892, %v888
        %v894 = vrot.slane %v893, 4
        %v896 = vshll.u32 %v512, 16
        %v898 = vrot.slane %v896, 5
        %v899 = vsel %vm515, %v894, %v898
        %s900 = scalar_lea.vmem %s2, 20
        %v901 = vld [vmem:[%s900] sm:$0xf]
        %v902 = vld [vmem:[%s900 + $0x4] sm:$0xf]
        %v903 = vld [vmem:[%s900 + $0x8] sm:$0xf]
        %v904 = vld [vmem:[%s900 + $0xc] sm:$0xf]
        %v905 = vld [vmem:[%s900 + $0x10] sm:$0x3]
        %v906 = vunpack.c.l.b16 %v529
        %v907 = vunpack.c.l.b16 %v539
        %v908 = vunpack.c.l.b16 %v553
        %v909 = vunpack.c.l.b16 %v563
        %v910 = vunpack.c.l.b16 %v577
        %v911 = vunpack.c.l.b16 %v587
        %v912 = vunpack.c.l.b16 %v601
        %v913 = vunpack.c.l.b16 %v611
        %v914 = vunpack.c.l.b16 %v625
        %v915 = vunpack.c.l.b16 %v635
        %v916 = vunpack.c.l.b16 %v649
        %v917 = vunpack.c.l.b16 %v659
        %v918 = vunpack.c.l.b16 %v673
        %v919 = vunpack.c.l.b16 %v683
        %v920 = vunpack.c.l.b16 %v697
        %v921 = vunpack.c.l.b16 %v707
        %v922 = vunpack.c.l.b16 %v721
        %v923 = vunpack.c.l.b16 %v731
        %v924 = vunpack.c.l.b16 %v745
        %v925 = vunpack.c.l.b16 %v755
        %v926 = vunpack.c.l.b16 %v769
        %v927 = vunpack.c.l.b16 %v779
        %v928 = vunpack.c.l.b16 %v793
        %v929 = vunpack.c.l.b16 %v803
        %v930 = vunpack.c.l.b16 %v817
        %v931 = vunpack.c.l.b16 %v827
        %v932 = vunpack.c.l.b16 %v841
        %v933 = vunpack.c.l.b16 %v851
        %v934 = vunpack.c.l.b16 %v865
        %v935 = vunpack.c.l.b16 %v875
        %v936 = vunpack.c.l.b16 %v889
        %v937 = vunpack.c.l.b16 %v899
        %v938 = vpack.c.b16 %v907, %v906
        %v939 = vpack.c.b16 %v909, %v908
        %v940 = vpack.c.b16 %v911, %v910
        %v941 = vpack.c.b16 %v913, %v912
        %v942 = vpack.c.b16 %v915, %v914
        %v943 = vpack.c.b16 %v917, %v916
        %v944 = vpack.c.b16 %v919, %v918
        %v945 = vpack.c.b16 %v921, %v920
        %v946 = vpack.c.b16 %v923, %v922
        %v947 = vpack.c.b16 %v925, %v924
        %v948 = vpack.c.b16 %v927, %v926
        %v949 = vpack.c.b16 %v929, %v928
        %v950 = vpack.c.b16 %v931, %v930
        %v951 = vpack.c.b16 %v933, %v932
        %v952 = vpack.c.b16 %v935, %v934
        %v953 = vpack.c.b16 %v937, %v936
        %v959 = vunpack.c.l.b16 %v901
        %v960 = vunpack.c.l.b16 %v902
        %v961 = vunpack.c.l.b16 %v903
        %v962 = vunpack.c.l.b16 %v904
        %v963 = vunpack.c.l.b16 %v905
        %v964 = vpack.c.b16 %v960, %v959
        %v965 = vpack.c.b16 %v962, %v961
        %v966 = vpack.c.b16 %v963, %v963
        %vm969 = vcmask 293888
        %v971 = vsel %vm969, %v938, 0
        %v974 = vsel %vm969, %v939, 0
        %v977 = vsel %vm969, %v940, 0
        %v980 = vsel %vm969, %v941, 0
        %v983 = vsel %vm969, %v942, 0
        %v986 = vsel %vm969, %v943, 0
        %v989 = vsel %vm969, %v944, 0
        %v992 = vsel %vm969, %v945, 0
        %v995 = vsel %vm969, %v946, 0
        %v998 = vsel %vm969, %v947, 0
        %v1001 = vsel %vm969, %v948, 0
        %v1004 = vsel %vm969, %v949, 0
        %v1007 = vsel %vm969, %v950, 0
        %v1010 = vsel %vm969, %v951, 0
        %v1013 = vsel %vm969, %v952, 0
        %v1016 = vsel %vm969, %v953, 0
        %vm1018 = vcmask 1041408
        %v1020 = vsel %vm1018, %v966, 0
        %1022 = vmatprep.subr.bf16.mxu0 0
        %1023 = vmatpush1.bf16.msra.mxu0 %v964
        %1024 = vmatprep.subr.bf16.mxu0 0
        %1025 = vmatpush1.bf16.msra.mxu0 %v965
        %1026 = vmatprep.subr.bf16.mxu0 0
        %1027 = vmatpush1.bf16.msra.mxu0 %v1020
        %1028 = vmatprep.subr.bf16.mxu0 0
        %1029 = vmatpush1.bf16.msra.mxu0 0
        %1030 = vmatprep.subr.bf16.mxu0 0
        %1031 = vmatpush1.bf16.msra.mxu0 0
        %1032 = vmatprep.subr.bf16.mxu0 0
        %1033 = vmatpush1.bf16.msra.mxu0 0
        %1034 = vmatprep.subr.bf16.mxu0 0
        %1035 = vmatpush1.bf16.msra.mxu0 0
        %1036 = vmatprep.subr.bf16.mxu0 0
        %1037 = vmatpush1.bf16.msra.mxu0 0
        %1038 = vmatprep.subr.bf16.mxu0 0
        %1039 = vmatpush1.bf16.msra.mxu0 0
        %1040 = vmatprep.subr.bf16.mxu0 0
        %1041 = vmatpush1.bf16.msra.mxu0 0
        %1042 = vmatprep.subr.bf16.mxu0 0
        %1043 = vmatpush1.bf16.msra.mxu0 0
        %1044 = vmatprep.subr.bf16.mxu0 0
        %1045 = vmatpush1.bf16.msra.mxu0 0
        %1046 = vmatprep.subr.bf16.mxu0 0
        %1047 = vmatpush1.bf16.msra.mxu0 0
        %1048 = vmatprep.subr.bf16.mxu0 0
        %1049 = vmatpush1.bf16.msra.mxu0 0
        %1050 = vmatprep.subr.bf16.mxu0 0
        %1051 = vmatpush1.bf16.msra.mxu0 0
        %1052 = vmatprep.subr.bf16.mxu0 0
        %1053 = vmatpush1.bf16.msra.mxu0 0
        %1054 = vmatprep.mubr.bf16.mxu0 0
        %1055 = vmatmul.mubr.bf16.gmra.mrb[0].mxu0 %v971
        %v1056 = vpop.f32.mrb[0].mxu0
        %v1057 = vadd.f32 0.0, %v1056
        %v1058 = vpop.f32.mrb[0].mxu0
        %v1059 = vpop.f32.mrb[0].mxu0
        %v1060 = vadd.f32 0.0, %v1059
        %v1061 = vpop.f32.mrb[0].mxu0
        %1062 = vmatprep.mubr.bf16.mxu0 0
        %1063 = vmatmul.mubr.bf16.gmra.mrb[0].mxu0 %v974
        %v1064 = vpop.f32.mrb[0].mxu0
        %v1065 = vadd.f32 0.0, %v1064
        %v1066 = vpop.f32.mrb[0].mxu0
        %v1067 = vpop.f32.mrb[0].mxu0
        %v1068 = vadd.f32 0.0, %v1067
        %v1069 = vpop.f32.mrb[0].mxu0
        %1070 = vmatprep.mubr.bf16.mxu0 0
        %1071 = vmatmul.mubr.bf16.gmra.mrb[0].mxu0 %v977
        %v1072 = vpop.f32.mrb[0].mxu0
        %v1073 = vadd.f32 0.0, %v1072
        %v1074 = vpop.f32.mrb[0].mxu0
        %v1075 = vpop.f32.mrb[0].mxu0
        %v1076 = vadd.f32 0.0, %v1075
        %v1077 = vpop.f32.mrb[0].mxu0
        %1078 = vmatprep.mubr.bf16.mxu0 0
        %1079 = vmatmul.mubr.bf16.gmra.mrb[0].mxu0 %v980
        %v1080 = vpop.f32.mrb[0].mxu0
        %v1081 = vadd.f32 0.0, %v1080
        %v1082 = vpop.f32.mrb[0].mxu0
        %v1083 = vpop.f32.mrb[0].mxu0
        %v1084 = vadd.f32 0.0, %v1083
        %v1085 = vpop.f32.mrb[0].mxu0
        %1086 = vmatprep.mubr.bf16.mxu0 0
        %1087 = vmatmul.mubr.bf16.gmra.mrb[0].mxu0 %v983
        %v1088 = vpop.f32.mrb[0].mxu0
        %v1089 = vadd.f32 0.0, %v1088
        %v1090 = vpop.f32.mrb[0].mxu0
        %v1091 = vpop.f32.mrb[0].mxu0
        %v1092 = vadd.f32 0.0, %v1091
        %v1093 = vpop.f32.mrb[0].mxu0
        %1094 = vmatprep.mubr.bf16.mxu0 0
        %1095 = vmatmul.mubr.bf16.gmra.mrb[0].mxu0 %v986
        %v1096 = vpop.f32.mrb[0].mxu0
        %v1097 = vadd.f32 0.0, %v1096
        %v1098 = vpop.f32.mrb[0].mxu0
        %v1099 = vpop.f32.mrb[0].mxu0
        %v1100 = vadd.f32 0.0, %v1099
        %v1101 = vpop.f32.mrb[0].mxu0
        %1102 = vmatprep.mubr.bf16.mxu0 0
        %1103 = vmatmul.mubr.bf16.gmra.mrb[0].mxu0 %v989
        %v1104 = vpop.f32.mrb[0].mxu0
        %v1105 = vadd.f32 0.0, %v1104
        %v1106 = vpop.f32.mrb[0].mxu0
        %v1107 = vpop.f32.mrb[0].mxu0
        %v1108 = vadd.f32 0.0, %v1107
        %v1109 = vpop.f32.mrb[0].mxu0
        %1110 = vmatprep.mubr.bf16.mxu0 0
        %1111 = vmatmul.mubr.bf16.gmra.mrb[0].mxu0 %v992
        %v1112 = vpop.f32.mrb[0].mxu0
        %v1113 = vadd.f32 0.0, %v1112
        %v1114 = vpop.f32.mrb[0].mxu0
        %v1115 = vpop.f32.mrb[0].mxu0
        %v1116 = vadd.f32 0.0, %v1115
        %v1117 = vpop.f32.mrb[0].mxu0
        %1118 = vmatprep.mubr.bf16.mxu0 0
        %1119 = vmatmul.mubr.bf16.gmra.mrb[0].mxu0 %v995
        %v1120 = vpop.f32.mrb[0].mxu0
        %v1121 = vadd.f32 0.0, %v1120
        %v1122 = vpop.f32.mrb[0].mxu0
        %v1123 = vpop.f32.mrb[0].mxu0
        %v1124 = vadd.f32 0.0, %v1123
        %v1125 = vpop.f32.mrb[0].mxu0
        %1126 = vmatprep.mubr.bf16.mxu0 0
        %1127 = vmatmul.mubr.bf16.gmra.mrb[0].mxu0 %v998
        %v1128 = vpop.f32.mrb[0].mxu0
        %v1129 = vadd.f32 0.0, %v1128
        %v1130 = vpop.f32.mrb[0].mxu0
        %v1131 = vpop.f32.mrb[0].mxu0
        %v1132 = vadd.f32 0.0, %v1131
        %v1133 = vpop.f32.mrb[0].mxu0
        %1134 = vmatprep.mubr.bf16.mxu0 0
        %1135 = vmatmul.mubr.bf16.gmra.mrb[0].mxu0 %v1001
        %v1136 = vpop.f32.mrb[0].mxu0
        %v1137 = vadd.f32 0.0, %v1136
        %v1138 = vpop.f32.mrb[0].mxu0
        %v1139 = vpop.f32.mrb[0].mxu0
        %v1140 = vadd.f32 0.0, %v1139
        %v1141 = vpop.f32.mrb[0].mxu0
        %1142 = vmatprep.mubr.bf16.mxu0 0
        %1143 = vmatmul.mubr.bf16.gmra.mrb[0].mxu0 %v1004
        %v1144 = vpop.f32.mrb[0].mxu0
        %v1145 = vadd.f32 0.0, %v1144
        %v1146 = vpop.f32.mrb[0].mxu0
        %v1147 = vpop.f32.mrb[0].mxu0
        %v1148 = vadd.f32 0.0, %v1147
        %v1149 = vpop.f32.mrb[0].mxu0
        %1150 = vmatprep.mubr.bf16.mxu0 0
        %1151 = vmatmul.mubr.bf16.gmra.mrb[0].mxu0 %v1007
        %v1152 = vpop.f32.mrb[0].mxu0
        %v1153 = vadd.f32 0.0, %v1152
        %v1154 = vpop.f32.mrb[0].mxu0
        %v1155 = vpop.f32.mrb[0].mxu0
        %v1156 = vadd.f32 0.0, %v1155
        %v1157 = vpop.f32.mrb[0].mxu0
        %1158 = vmatprep.mubr.bf16.mxu0 0
        %1159 = vmatmul.mubr.bf16.gmra.mrb[0].mxu0 %v1010
        %v1160 = vpop.f32.mrb[0].mxu0
        %v1161 = vadd.f32 0.0, %v1160
        %v1162 = vpop.f32.mrb[0].mxu0
        %v1163 = vpop.f32.mrb[0].mxu0
        %v1164 = vadd.f32 0.0, %v1163
        %v1165 = vpop.f32.mrb[0].mxu0
        %1166 = vmatprep.mubr.bf16.mxu0 0
        %1167 = vmatmul.mubr.bf16.gmra.mrb[0].mxu0 %v1013
        %v1168 = vpop.f32.mrb[0].mxu0
        %v1169 = vadd.f32 0.0, %v1168
        %v1170 = vpop.f32.mrb[0].mxu0
        %v1171 = vpop.f32.mrb[0].mxu0
        %v1172 = vadd.f32 0.0, %v1171
        %v1173 = vpop.f32.mrb[0].mxu0
        %1174 = vmatprep.mubr.bf16.mxu0 0
        %1175 = vmatmul.mubr.bf16.gmra.mrb[0].mxu0 %v1016
        %v1176 = vpop.f32.mrb[0].mxu0
        %v1177 = vadd.f32 0.0, %v1176
        %v1178 = vpop.f32.mrb[0].mxu0
        %v1179 = vpop.f32.mrb[0].mxu0
        %v1180 = vadd.f32 0.0, %v1179
        %v1181 = vpop.f32.mrb[0].mxu0
        %1182 = vdwg.mxu0
        %v1215 = vunpack.c.l.b16 %v460
        %v1216 = vunpack.c.l.b16 %v461
        %v1217 = vunpack.c.l.b16 %v462
        %v1218 = vunpack.c.l.b16 %v463
        %v1219 = vunpack.c.l.b16 %v464
        %v1220 = vunpack.c.l.b16 %v465
        %v1221 = vunpack.c.l.b16 %v466
        %v1222 = vunpack.c.l.b16 %v467
        %v1223 = vunpack.c.l.b16 %v468
        %v1224 = vunpack.c.l.b16 %v469
        %v1225 = vunpack.c.l.b16 %v470
        %v1226 = vunpack.c.l.b16 %v471
        %v1227 = vunpack.c.l.b16 %v472
        %v1228 = vunpack.c.l.b16 %v473
        %v1229 = vunpack.c.l.b16 %v474
        %v1230 = vunpack.c.l.b16 %v475
        %v1231 = vunpack.c.l.b16 %v476
        %v1232 = vunpack.c.l.b16 %v477
        %v1233 = vunpack.c.l.b16 %v478
        %v1234 = vunpack.c.l.b16 %v479
        %v1235 = vunpack.c.l.b16 %v480
        %v1236 = vunpack.c.l.b16 %v481
        %v1237 = vunpack.c.l.b16 %v482
        %v1238 = vunpack.c.l.b16 %v483
        %v1239 = vunpack.c.l.b16 %v484
        %v1240 = vunpack.c.l.b16 %v485
        %v1241 = vunpack.c.l.b16 %v486
        %v1242 = vunpack.c.l.b16 %v487
        %v1243 = vunpack.c.l.b16 %v488
        %v1244 = vunpack.c.l.b16 %v489
        %v1245 = vunpack.c.l.b16 %v490
        %v1246 = vunpack.c.l.b16 %v491
        %v1247 = vpack.c.b16 %v1216, %v1215
        %v1248 = vpack.c.b16 %v1218, %v1217
        %v1249 = vpack.c.b16 %v1220, %v1219
        %v1250 = vpack.c.b16 %v1222, %v1221
        %v1251 = vpack.c.b16 %v1224, %v1223
        %v1252 = vpack.c.b16 %v1226, %v1225
        %v1253 = vpack.c.b16 %v1228, %v1227
        %v1254 = vpack.c.b16 %v1230, %v1229
        %v1255 = vpack.c.b16 %v1232, %v1231
        %v1256 = vpack.c.b16 %v1234, %v1233
        %v1257 = vpack.c.b16 %v1236, %v1235
        %v1258 = vpack.c.b16 %v1238, %v1237
        %v1259 = vpack.c.b16 %v1240, %v1239
        %v1260 = vpack.c.b16 %v1242, %v1241
        %v1261 = vpack.c.b16 %v1244, %v1243
        %v1262 = vpack.c.b16 %v1246, %v1245
        %v1268 = vunpack.c.l.b16 %v492
        %v1269 = vunpack.c.l.b16 %v493
        %v1270 = vunpack.c.l.b16 %v494
        %v1271 = vunpack.c.l.b16 %v495
        %v1272 = vunpack.c.l.b16 %v496
        %v1273 = vpack.c.b16 %v1269, %v1268
        %v1274 = vpack.c.b16 %v1271, %v1270
        %v1275 = vpack.c.b16 %v1272, %v1272
        %v1279 = vsel %vm969, %v1247, 0
        %v1282 = vsel %vm969, %v1248, 0
        %v1285 = vsel %vm969, %v1249, 0
        %v1288 = vsel %vm969, %v1250, 0
        %v1291 = vsel %vm969, %v1251, 0
        %v1294 = vsel %vm969, %v1252, 0
        %v1297 = vsel %vm969, %v1253, 0
        %v1300 = vsel %vm969, %v1254, 0
        %v1303 = vsel %vm969, %v1255, 0
        %v1306 = vsel %vm969, %v1256, 0
        %v1309 = vsel %vm969, %v1257, 0
        %v1312 = vsel %vm969, %v1258, 0
        %v1315 = vsel %vm969, %v1259, 0
        %v1318 = vsel %vm969, %v1260, 0
        %v1321 = vsel %vm969, %v1261, 0
        %v1324 = vsel %vm969, %v1262, 0
        %v1327 = vsel %vm1018, %v1275, 0
        %1329 = vmatprep.subr.bf16.mxu0 0
        %1330 = vmatpush1.bf16.msra.mxu0 %v1273
        %1331 = vmatprep.subr.bf16.mxu0 0
        %1332 = vmatpush1.bf16.msra.mxu0 %v1274
        %1333 = vmatprep.subr.bf16.mxu0 0
        %1334 = vmatpush1.bf16.msra.mxu0 %v1327
        %1335 = vmatprep.subr.bf16.mxu0 0
        %1336 = vmatpush1.bf16.msra.mxu0 0
        %1337 = vmatprep.subr.bf16.mxu0 0
        %1338 = vmatpush1.bf16.msra.mxu0 0
        %1339 = vmatprep.subr.bf16.mxu0 0
        %1340 = vmatpush1.bf16.msra.mxu0 0
        %1341 = vmatprep.subr.bf16.mxu0 0
        %1342 = vmatpush1.bf16.msra.mxu0 0
        %1343 = vmatprep.subr.bf16.mxu0 0
        %1344 = vmatpush1.bf16.msra.mxu0 0
        %1345 = vmatprep.subr.bf16.mxu0 0
        %1346 = vmatpush1.bf16.msra.mxu0 0
        %1347 = vmatprep.subr.bf16.mxu0 0
        %1348 = vmatpush1.bf16.msra.mxu0 0
        %1349 = vmatprep.subr.bf16.mxu0 0
        %1350 = vmatpush1.bf16.msra.mxu0 0
        %1351 = vmatprep.subr.bf16.mxu0 0
        %1352 = vmatpush1.bf16.msra.mxu0 0
        %1353 = vmatprep.subr.bf16.mxu0 0
        %1354 = vmatpush1.bf16.msra.mxu0 0
        %1355 = vmatprep.subr.bf16.mxu0 0
        %1356 = vmatpush1.bf16.msra.mxu0 0
        %1357 = vmatprep.subr.bf16.mxu0 0
        %1358 = vmatpush1.bf16.msra.mxu0 0
        %1359 = vmatprep.subr.bf16.mxu0 0
        %1360 = vmatpush1.bf16.msra.mxu0 0
        %1361 = vmatprep.mubr.bf16.mxu0 0
        %1362 = vmatmul.mubr.bf16.gmra.mrb[0].mxu0 %v1279
        %v1363 = vpop.f32.mrb[0].mxu0
        %v1364 = vadd.f32 %v1057, %v1363
        %v1365 = vpop.f32.mrb[0].mxu0
        %v1366 = vpop.f32.mrb[0].mxu0
        %v1367 = vadd.f32 %v1060, %v1366
        %v1368 = vpop.f32.mrb[0].mxu0
        %1369 = vmatprep.mubr.bf16.mxu0 0
        %1370 = vmatmul.mubr.bf16.gmra.mrb[0].mxu0 %v1282
        %v1371 = vpop.f32.mrb[0].mxu0
        %v1372 = vadd.f32 %v1065, %v1371
        %v1373 = vpop.f32.mrb[0].mxu0
        %v1374 = vpop.f32.mrb[0].mxu0
        %v1375 = vadd.f32 %v1068, %v1374
        %v1376 = vpop.f32.mrb[0].mxu0
        %1377 = vmatprep.mubr.bf16.mxu0 0
        %1378 = vmatmul.mubr.bf16.gmra.mrb[0].mxu0 %v1285
        %v1379 = vpop.f32.mrb[0].mxu0
        %v1380 = vadd.f32 %v1073, %v1379
        %v1381 = vpop.f32.mrb[0].mxu0
        %v1382 = vpop.f32.mrb[0].mxu0
        %v1383 = vadd.f32 %v1076, %v1382
        %v1384 = vpop.f32.mrb[0].mxu0
        %1385 = vmatprep.mubr.bf16.mxu0 0
        %1386 = vmatmul.mubr.bf16.gmra.mrb[0].mxu0 %v1288
        %v1387 = vpop.f32.mrb[0].mxu0
        %v1388 = vadd.f32 %v1081, %v1387
        %v1389 = vpop.f32.mrb[0].mxu0
        %v1390 = vpop.f32.mrb[0].mxu0
        %v1391 = vadd.f32 %v1084, %v1390
        %v1392 = vpop.f32.mrb[0].mxu0
        %1393 = vmatprep.mubr.bf16.mxu0 0
        %1394 = vmatmul.mubr.bf16.gmra.mrb[0].mxu0 %v1291
        %v1395 = vpop.f32.mrb[0].mxu0
        %v1396 = vadd.f32 %v1089, %v1395
        %v1397 = vpop.f32.mrb[0].mxu0
        %v1398 = vpop.f32.mrb[0].mxu0
        %v1399 = vadd.f32 %v1092, %v1398
        %v1400 = vpop.f32.mrb[0].mxu0
        %1401 = vmatprep.mubr.bf16.mxu0 0
        %1402 = vmatmul.mubr.bf16.gmra.mrb[0].mxu0 %v1294
        %v1403 = vpop.f32.mrb[0].mxu0
        %v1404 = vadd.f32 %v1097, %v1403
        %v1405 = vpop.f32.mrb[0].mxu0
        %v1406 = vpop.f32.mrb[0].mxu0
        %v1407 = vadd.f32 %v1100, %v1406
        %v1408 = vpop.f32.mrb[0].mxu0
        %1409 = vmatprep.mubr.bf16.mxu0 0
        %1410 = vmatmul.mubr.bf16.gmra.mrb[0].mxu0 %v1297
        %v1411 = vpop.f32.mrb[0].mxu0
        %v1412 = vadd.f32 %v1105, %v1411
        %v1413 = vpop.f32.mrb[0].mxu0
        %v1414 = vpop.f32.mrb[0].mxu0
        %v1415 = vadd.f32 %v1108, %v1414
        %v1416 = vpop.f32.mrb[0].mxu0
        %1417 = vmatprep.mubr.bf16.mxu0 0
        %1418 = vmatmul.mubr.bf16.gmra.mrb[0].mxu0 %v1300
        %v1419 = vpop.f32.mrb[0].mxu0
        %v1420 = vadd.f32 %v1113, %v1419
        %v1421 = vpop.f32.mrb[0].mxu0
        %v1422 = vpop.f32.mrb[0].mxu0
        %v1423 = vadd.f32 %v1116, %v1422
        %v1424 = vpop.f32.mrb[0].mxu0
        %1425 = vmatprep.mubr.bf16.mxu0 0
        %1426 = vmatmul.mubr.bf16.gmra.mrb[0].mxu0 %v1303
        %v1427 = vpop.f32.mrb[0].mxu0
        %v1428 = vadd.f32 %v1121, %v1427
        %v1429 = vpop.f32.mrb[0].mxu0
        %v1430 = vpop.f32.mrb[0].mxu0
        %v1431 = vadd.f32 %v1124, %v1430
        %v1432 = vpop.f32.mrb[0].mxu0
        %1433 = vmatprep.mubr.bf16.mxu0 0
        %1434 = vmatmul.mubr.bf16.gmra.mrb[0].mxu0 %v1306
        %v1435 = vpop.f32.mrb[0].mxu0
        %v1436 = vadd.f32 %v1129, %v1435
        %v1437 = vpop.f32.mrb[0].mxu0
        %v1438 = vpop.f32.mrb[0].mxu0
        %v1439 = vadd.f32 %v1132, %v1438
        %v1440 = vpop.f32.mrb[0].mxu0
        %1441 = vmatprep.mubr.bf16.mxu0 0
        %1442 = vmatmul.mubr.bf16.gmra.mrb[0].mxu0 %v1309
        %v1443 = vpop.f32.mrb[0].mxu0
        %v1444 = vadd.f32 %v1137, %v1443
        %v1445 = vpop.f32.mrb[0].mxu0
        %v1446 = vpop.f32.mrb[0].mxu0
        %v1447 = vadd.f32 %v1140, %v1446
        %v1448 = vpop.f32.mrb[0].mxu0
        %1449 = vmatprep.mubr.bf16.mxu0 0
        %1450 = vmatmul.mubr.bf16.gmra.mrb[0].mxu0 %v1312
        %v1451 = vpop.f32.mrb[0].mxu0
        %v1452 = vadd.f32 %v1145, %v1451
        %v1453 = vpop.f32.mrb[0].mxu0
        %v1454 = vpop.f32.mrb[0].mxu0
        %v1455 = vadd.f32 %v1148, %v1454
        %v1456 = vpop.f32.mrb[0].mxu0
        %1457 = vmatprep.mubr.bf16.mxu0 0
        %1458 = vmatmul.mubr.bf16.gmra.mrb[0].mxu0 %v1315
        %v1459 = vpop.f32.mrb[0].mxu0
        %v1460 = vadd.f32 %v1153, %v1459
        %v1461 = vpop.f32.mrb[0].mxu0
        %v1462 = vpop.f32.mrb[0].mxu0
        %v1463 = vadd.f32 %v1156, %v1462
        %v1464 = vpop.f32.mrb[0].mxu0
        %1465 = vmatprep.mubr.bf16.mxu0 0
        %1466 = vmatmul.mubr.bf16.gmra.mrb[0].mxu0 %v1318
        %v1467 = vpop.f32.mrb[0].mxu0
        %v1468 = vadd.f32 %v1161, %v1467
        %v1469 = vpop.f32.mrb[0].mxu0
        %v1470 = vpop.f32.mrb[0].mxu0
        %v1471 = vadd.f32 %v1164, %v1470
        %v1472 = vpop.f32.mrb[0].mxu0
        %1473 = vmatprep.mubr.bf16.mxu0 0
        %1474 = vmatmul.mubr.bf16.gmra.mrb[0].mxu0 %v1321
        %v1475 = vpop.f32.mrb[0].mxu0
        %v1476 = vadd.f32 %v1169, %v1475
        %v1477 = vpop.f32.mrb[0].mxu0
        %v1478 = vpop.f32.mrb[0].mxu0
        %v1479 = vadd.f32 %v1172, %v1478
        %v1480 = vpop.f32.mrb[0].mxu0
        %1481 = vmatprep.mubr.bf16.mxu0 0
        %1482 = vmatmul.mubr.bf16.gmra.mrb[0].mxu0 %v1324
        %v1483 = vpop.f32.mrb[0].mxu0
        %v1484 = vadd.f32 %v1177, %v1483
        %v1485 = vpop.f32.mrb[0].mxu0
        %v1486 = vpop.f32.mrb[0].mxu0
        %v1487 = vadd.f32 %v1180, %v1486
        %v1488 = vpop.f32.mrb[0].mxu0
        %1489 = vdwg.mxu0
        %v1490 = vld [vmem:[#allocation2] sm:$0xe]
        %v1491 = vld [vmem:[#allocation2 + $0xc] sm:$0xe]
        %v1492 = vld [vmem:[#allocation2 + $0x18] sm:$0xe]
        %v1493 = vld [vmem:[#allocation2 + $0x24] sm:$0xe]
        %v1494 = vld [vmem:[#allocation2 + $0x30] sm:$0xe]
        %v1495 = vld [vmem:[#allocation2 + $0x3c] sm:$0xe]
        %v1496 = vld [vmem:[#allocation2 + $0x48] sm:$0xe]
        %v1497 = vld [vmem:[#allocation2 + $0x54] sm:$0xe]
        %v1498 = vld [vmem:[#allocation2 + $0x60] sm:$0xe]
        %v1499 = vld [vmem:[#allocation2 + $0x6c] sm:$0xe]
        %v1500 = vld [vmem:[#allocation2 + $0x78] sm:$0xe]
        %v1501 = vld [vmem:[#allocation2 + $0x84] sm:$0xe]
        %v1502 = vld [vmem:[#allocation2 + $0x90] sm:$0xe]
        %v1503 = vld [vmem:[#allocation2 + $0x9c] sm:$0xe]
        %v1504 = vld [vmem:[#allocation2 + $0xa8] sm:$0xe]
        %v1505 = vld [vmem:[#allocation2 + $0xb4] sm:$0xe]
        %vm1538 = vcmask 1042432
        %vm1539 = vcmask 1046532
        %vm1540 = vmor %vm1538, %vm1539
        %v1541 = vrot.slane %v1490, 5
        %v1542 = vrot.slane %v1541, 4
        %v1543 = vrot.slane %v461, 5
        %v1544 = vsel %vm1540, %v1542, %v1543
        %v1545 = vrot.slane %v1543, 4
        %v1546 = vrot.slane %v497, 5
        %v1547 = vsel %vm1540, %v1545, %v1546
        %v1548 = vrot.slane %v1491, 5
        %v1549 = vrot.slane %v1548, 4
        %v1550 = vrot.slane %v463, 5
        %v1551 = vsel %vm1540, %v1549, %v1550
        %v1552 = vrot.slane %v1550, 4
        %v1553 = vrot.slane %v498, 5
        %v1554 = vsel %vm1540, %v1552, %v1553
        %v1555 = vrot.slane %v1492, 5
        %v1556 = vrot.slane %v1555, 4
        %v1557 = vrot.slane %v465, 5
        %v1558 = vsel %vm1540, %v1556, %v1557
        %v1559 = vrot.slane %v1557, 4
        %v1560 = vrot.slane %v499, 5
        %v1561 = vsel %vm1540, %v1559, %v1560
        %v1562 = vrot.slane %v1493, 5
        %v1563 = vrot.slane %v1562, 4
        %v1564 = vrot.slane %v467, 5
        %v1565 = vsel %vm1540, %v1563, %v1564
        %v1566 = vrot.slane %v1564, 4
        %v1567 = vrot.slane %v500, 5
        %v1568 = vsel %vm1540, %v1566, %v1567
        %v1569 = vrot.slane %v1494, 5
        %v1570 = vrot.slane %v1569, 4
        %v1571 = vrot.slane %v469, 5
        %v1572 = vsel %vm1540, %v1570, %v1571
        %v1573 = vrot.slane %v1571, 4
        %v1574 = vrot.slane %v501, 5
        %v1575 = vsel %vm1540, %v1573, %v1574
        %v1576 = vrot.slane %v1495, 5
        %v1577 = vrot.slane %v1576, 4
        %v1578 = vrot.slane %v471, 5
        %v1579 = vsel %vm1540, %v1577, %v1578
        %v1580 = vrot.slane %v1578, 4
        %v1581 = vrot.slane %v502, 5
        %v1582 = vsel %vm1540, %v1580, %v1581
        %v1583 = vrot.slane %v1496, 5
        %v1584 = vrot.slane %v1583, 4
        %v1585 = vrot.slane %v473, 5
        %v1586 = vsel %vm1540, %v1584, %v1585
        %v1587 = vrot.slane %v1585, 4
        %v1588 = vrot.slane %v503, 5
        %v1589 = vsel %vm1540, %v1587, %v1588
        %v1590 = vrot.slane %v1497, 5
        %v1591 = vrot.slane %v1590, 4
        %v1592 = vrot.slane %v475, 5
        %v1593 = vsel %vm1540, %v1591, %v1592
        %v1594 = vrot.slane %v1592, 4
        %v1595 = vrot.slane %v504, 5
        %v1596 = vsel %vm1540, %v1594, %v1595
        %v1597 = vrot.slane %v1498, 5
        %v1598 = vrot.slane %v1597, 4
        %v1599 = vrot.slane %v477, 5
        %v1600 = vsel %vm1540, %v1598, %v1599
        %v1601 = vrot.slane %v1599, 4
        %v1602 = vrot.slane %v505, 5
        %v1603 = vsel %vm1540, %v1601, %v1602
        %v1604 = vrot.slane %v1499, 5
        %v1605 = vrot.slane %v1604, 4
        %v1606 = vrot.slane %v479, 5
        %v1607 = vsel %vm1540, %v1605, %v1606
        %v1608 = vrot.slane %v1606, 4
        %v1609 = vrot.slane %v506, 5
        %v1610 = vsel %vm1540, %v1608, %v1609
        %v1611 = vrot.slane %v1500, 5
        %v1612 = vrot.slane %v1611, 4
        %v1613 = vrot.slane %v481, 5
        %v1614 = vsel %vm1540, %v1612, %v1613
        %v1615 = vrot.slane %v1613, 4
        %v1616 = vrot.slane %v507, 5
        %v1617 = vsel %vm1540, %v1615, %v1616
        %v1618 = vrot.slane %v1501, 5
        %v1619 = vrot.slane %v1618, 4
        %v1620 = vrot.slane %v483, 5
        %v1621 = vsel %vm1540, %v1619, %v1620
        %v1622 = vrot.slane %v1620, 4
        %v1623 = vrot.slane %v508, 5
        %v1624 = vsel %vm1540, %v1622, %v1623
        %v1625 = vrot.slane %v1502, 5
        %v1626 = vrot.slane %v1625, 4
        %v1627 = vrot.slane %v485, 5
        %v1628 = vsel %vm1540, %v1626, %v1627
        %v1629 = vrot.slane %v1627, 4
        %v1630 = vrot.slane %v509, 5
        %v1631 = vsel %vm1540, %v1629, %v1630
        %v1632 = vrot.slane %v1503, 5
        %v1633 = vrot.slane %v1632, 4
        %v1634 = vrot.slane %v487, 5
        %v1635 = vsel %vm1540, %v1633, %v1634
        %v1636 = vrot.slane %v1634, 4
        %v1637 = vrot.slane %v510, 5
        %v1638 = vsel %vm1540, %v1636, %v1637
        %v1639 = vrot.slane %v1504, 5
        %v1640 = vrot.slane %v1639, 4
        %v1641 = vrot.slane %v489, 5
        %v1642 = vsel %vm1540, %v1640, %v1641
        %v1643 = vrot.slane %v1641, 4
        %v1644 = vrot.slane %v511, 5
        %v1645 = vsel %vm1540, %v1643, %v1644
        %v1646 = vrot.slane %v1505, 5
        %v1647 = vrot.slane %v1646, 4
        %v1648 = vrot.slane %v491, 5
        %v1649 = vsel %vm1540, %v1647, %v1648
        %v1650 = vrot.slane %v1648, 4
        %v1651 = vrot.slane %v512, 5
        %v1652 = vsel %vm1540, %v1650, %v1651
        %s1653 = scalar_lea.vmem %s2, 40
        %v1654 = vld [vmem:[%s1653] sm:$0xf]
        %v1655 = vld [vmem:[%s1653 + $0x4] sm:$0xf]
        %v1656 = vld [vmem:[%s1653 + $0x8] sm:$0xf]
        %v1657 = vld [vmem:[%s1653 + $0xc] sm:$0xf]
        %v1658 = vld [vmem:[%s1653 + $0x10] sm:$0x3]
        %v1659 = vunpack.c.l.b16 %v1544
        %v1660 = vunpack.c.l.b16 %v1547
        %v1661 = vunpack.c.l.b16 %v1551
        %v1662 = vunpack.c.l.b16 %v1554
        %v1663 = vunpack.c.l.b16 %v1558
        %v1664 = vunpack.c.l.b16 %v1561
        %v1665 = vunpack.c.l.b16 %v1565
        %v1666 = vunpack.c.l.b16 %v1568
        %v1667 = vunpack.c.l.b16 %v1572
        %v1668 = vunpack.c.l.b16 %v1575
        %v1669 = vunpack.c.l.b16 %v1579
        %v1670 = vunpack.c.l.b16 %v1582
        %v1671 = vunpack.c.l.b16 %v1586
        %v1672 = vunpack.c.l.b16 %v1589
        %v1673 = vunpack.c.l.b16 %v1593
        %v1674 = vunpack.c.l.b16 %v1596
        %v1675 = vunpack.c.l.b16 %v1600
        %v1676 = vunpack.c.l.b16 %v1603
        %v1677 = vunpack.c.l.b16 %v1607
        %v1678 = vunpack.c.l.b16 %v1610
        %v1679 = vunpack.c.l.b16 %v1614
        %v1680 = vunpack.c.l.b16 %v1617
        %v1681 = vunpack.c.l.b16 %v1621
        %v1682 = vunpack.c.l.b16 %v1624
        %v1683 = vunpack.c.l.b16 %v1628
        %v1684 = vunpack.c.l.b16 %v1631
        %v1685 = vunpack.c.l.b16 %v1635
        %v1686 = vunpack.c.l.b16 %v1638
        %v1687 = vunpack.c.l.b16 %v1642
        %v1688 = vunpack.c.l.b16 %v1645
        %v1689 = vunpack.c.l.b16 %v1649
        %v1690 = vunpack.c.l.b16 %v1652
        %v1691 = vpack.c.b16 %v1660, %v1659
        %v1692 = vpack.c.b16 %v1662, %v1661
        %v1693 = vpack.c.b16 %v1664, %v1663
        %v1694 = vpack.c.b16 %v1666, %v1665
        %v1695 = vpack.c.b16 %v1668, %v1667
        %v1696 = vpack.c.b16 %v1670, %v1669
        %v1697 = vpack.c.b16 %v1672, %v1671
        %v1698 = vpack.c.b16 %v1674, %v1673
        %v1699 = vpack.c.b16 %v1676, %v1675
        %v1700 = vpack.c.b16 %v1678, %v1677
        %v1701 = vpack.c.b16 %v1680, %v1679
        %v1702 = vpack.c.b16 %v1682, %v1681
        %v1703 = vpack.c.b16 %v1684, %v1683
        %v1704 = vpack.c.b16 %v1686, %v1685
        %v1705 = vpack.c.b16 %v1688, %v1687
        %v1706 = vpack.c.b16 %v1690, %v1689
        %v1712 = vunpack.c.l.b16 %v1654
        %v1713 = vunpack.c.l.b16 %v1655
        %v1714 = vunpack.c.l.b16 %v1656
        %v1715 = vunpack.c.l.b16 %v1657
        %v1716 = vunpack.c.l.b16 %v1658
        %v1717 = vpack.c.b16 %v1713, %v1712
        %v1718 = vpack.c.b16 %v1715, %v1714
        %v1719 = vpack.c.b16 %v1716, %v1716
        %v1723 = vsel %vm969, %v1691, 0
        %v1726 = vsel %vm969, %v1692, 0
        %v1729 = vsel %vm969, %v1693, 0
        %v1732 = vsel %vm969, %v1694, 0
        %v1735 = vsel %vm969, %v1695, 0
        %v1738 = vsel %vm969, %v1696, 0
        %v1741 = vsel %vm969, %v1697, 0
        %v1744 = vsel %vm969, %v1698, 0
        %v1747 = vsel %vm969, %v1699, 0
        %v1750 = vsel %vm969, %v1700, 0
        %v1753 = vsel %vm969, %v1701, 0
        %v1756 = vsel %vm969, %v1702, 0
        %v1759 = vsel %vm969, %v1703, 0
        %v1762 = vsel %vm969, %v1704, 0
        %v1765 = vsel %vm969, %v1705, 0
        %v1768 = vsel %vm969, %v1706, 0
        %v1771 = vsel %vm1018, %v1719, 0
        %1773 = vmatprep.subr.bf16.mxu0 0
        %1774 = vmatpush1.bf16.msra.mxu0 %v1717
        %1775 = vmatprep.subr.bf16.mxu0 0
        %1776 = vmatpush1.bf16.msra.mxu0 %v1718
        %1777 = vmatprep.subr.bf16.mxu0 0
        %1778 = vmatpush1.bf16.msra.mxu0 %v1771
        %1779 = vmatprep.subr.bf16.mxu0 0
        %1780 = vmatpush1.bf16.msra.mxu0 0
        %1781 = vmatprep.subr.bf16.mxu0 0
        %1782 = vmatpush1.bf16.msra.mxu0 0
        %1783 = vmatprep.subr.bf16.mxu0 0
        %1784 = vmatpush1.bf16.msra.mxu0 0
        %1785 = vmatprep.subr.bf16.mxu0 0
        %1786 = vmatpush1.bf16.msra.mxu0 0
        %1787 = vmatprep.subr.bf16.mxu0 0
        %1788 = vmatpush1.bf16.msra.mxu0 0
        %1789 = vmatprep.subr.bf16.mxu0 0
        %1790 = vmatpush1.bf16.msra.mxu0 0
        %1791 = vmatprep.subr.bf16.mxu0 0
        %1792 = vmatpush1.bf16.msra.mxu0 0
        %1793 = vmatprep.subr.bf16.mxu0 0
        %1794 = vmatpush1.bf16.msra.mxu0 0
        %1795 = vmatprep.subr.bf16.mxu0 0
        %1796 = vmatpush1.bf16.msra.mxu0 0
        %1797 = vmatprep.subr.bf16.mxu0 0
        %1798 = vmatpush1.bf16.msra.mxu0 0
        %1799 = vmatprep.subr.bf16.mxu0 0
        %1800 = vmatpush1.bf16.msra.mxu0 0
        %1801 = vmatprep.subr.bf16.mxu0 0
        %1802 = vmatpush1.bf16.msra.mxu0 0
        %1803 = vmatprep.subr.bf16.mxu0 0
        %1804 = vmatpush1.bf16.msra.mxu0 0
        %1805 = vmatprep.mubr.bf16.mxu0 0
        %1806 = vmatmul.mubr.bf16.gmra.mrb[0].mxu0 %v1723
        %v1807 = vpop.f32.mrb[0].mxu0
        %v1808 = vadd.f32 0.0, %v1807
        %v1809 = vpop.f32.mrb[0].mxu0
        %v1810 = vpop.f32.mrb[0].mxu0
        %v1811 = vadd.f32 0.0, %v1810
        %v1812 = vpop.f32.mrb[0].mxu0
        %1813 = vmatprep.mubr.bf16.mxu0 0
        %1814 = vmatmul.mubr.bf16.gmra.mrb[0].mxu0 %v1726
        %v1815 = vpop.f32.mrb[0].mxu0
        %v1816 = vadd.f32 0.0, %v1815
        %v1817 = vpop.f32.mrb[0].mxu0
        %v1818 = vpop.f32.mrb[0].mxu0
        %v1819 = vadd.f32 0.0, %v1818
        %v1820 = vpop.f32.mrb[0].mxu0
        %1821 = vmatprep.mubr.bf16.mxu0 0
        %1822 = vmatmul.mubr.bf16.gmra.mrb[0].mxu0 %v1729
        %v1823 = vpop.f32.mrb[0].mxu0
        %v1824 = vadd.f32 0.0, %v1823
        %v1825 = vpop.f32.mrb[0].mxu0
        %v1826 = vpop.f32.mrb[0].mxu0
        %v1827 = vadd.f32 0.0, %v1826
        %v1828 = vpop.f32.mrb[0].mxu0
        %1829 = vmatprep.mubr.bf16.mxu0 0
        %1830 = vmatmul.mubr.bf16.gmra.mrb[0].mxu0 %v1732
        %v1831 = vpop.f32.mrb[0].mxu0
        %v1832 = vadd.f32 0.0, %v1831
        %v1833 = vpop.f32.mrb[0].mxu0
        %v1834 = vpop.f32.mrb[0].mxu0
        %v1835 = vadd.f32 0.0, %v1834
        %v1836 = vpop.f32.mrb[0].mxu0
        %1837 = vmatprep.mubr.bf16.mxu0 0
        %1838 = vmatmul.mubr.bf16.gmra.mrb[0].mxu0 %v1735
        %v1839 = vpop.f32.mrb[0].mxu0
        %v1840 = vadd.f32 0.0, %v1839
        %v1841 = vpop.f32.mrb[0].mxu0
        %v1842 = vpop.f32.mrb[0].mxu0
        %v1843 = vadd.f32 0.0, %v1842
        %v1844 = vpop.f32.mrb[0].mxu0
        %1845 = vmatprep.mubr.bf16.mxu0 0
        %1846 = vmatmul.mubr.bf16.gmra.mrb[0].mxu0 %v1738
        %v1847 = vpop.f32.mrb[0].mxu0
        %v1848 = vadd.f32 0.0, %v1847
        %v1849 = vpop.f32.mrb[0].mxu0
        %v1850 = vpop.f32.mrb[0].mxu0
        %v1851 = vadd.f32 0.0, %v1850
        %v1852 = vpop.f32.mrb[0].mxu0
        %1853 = vmatprep.mubr.bf16.mxu0 0
        %1854 = vmatmul.mubr.bf16.gmra.mrb[0].mxu0 %v1741
        %v1855 = vpop.f32.mrb[0].mxu0
        %v1856 = vadd.f32 0.0, %v1855
        %v1857 = vpop.f32.mrb[0].mxu0
        %v1858 = vpop.f32.mrb[0].mxu0
        %v1859 = vadd.f32 0.0, %v1858
        %v1860 = vpop.f32.mrb[0].mxu0
        %1861 = vmatprep.mubr.bf16.mxu0 0
        %1862 = vmatmul.mubr.bf16.gmra.mrb[0].mxu0 %v1744
        %v1863 = vpop.f32.mrb[0].mxu0
        %v1864 = vadd.f32 0.0, %v1863
        %v1865 = vpop.f32.mrb[0].mxu0
        %v1866 = vpop.f32.mrb[0].mxu0
        %v1867 = vadd.f32 0.0, %v1866
        %v1868 = vpop.f32.mrb[0].mxu0
        %1869 = vmatprep.mubr.bf16.mxu0 0
        %1870 = vmatmul.mubr.bf16.gmra.mrb[0].mxu0 %v1747
        %v1871 = vpop.f32.mrb[0].mxu0
        %v1872 = vadd.f32 0.0, %v1871
        %v1873 = vpop.f32.mrb[0].mxu0
        %v1874 = vpop.f32.mrb[0].mxu0
        %v1875 = vadd.f32 0.0, %v1874
        %v1876 = vpop.f32.mrb[0].mxu0
        %1877 = vmatprep.mubr.bf16.mxu0 0
        %1878 = vmatmul.mubr.bf16.gmra.mrb[0].mxu0 %v1750
        %v1879 = vpop.f32.mrb[0].mxu0
        %v1880 = vadd.f32 0.0, %v1879
        %v1881 = vpop.f32.mrb[0].mxu0
        %v1882 = vpop.f32.mrb[0].mxu0
        %v1883 = vadd.f32 0.0, %v1882
        %v1884 = vpop.f32.mrb[0].mxu0
        %1885 = vmatprep.mubr.bf16.mxu0 0
        %1886 = vmatmul.mubr.bf16.gmra.mrb[0].mxu0 %v1753
        %v1887 = vpop.f32.mrb[0].mxu0
        %v1888 = vadd.f32 0.0, %v1887
        %v1889 = vpop.f32.mrb[0].mxu0
        %v1890 = vpop.f32.mrb[0].mxu0
        %v1891 = vadd.f32 0.0, %v1890
        %v1892 = vpop.f32.mrb[0].mxu0
        %1893 = vmatprep.mubr.bf16.mxu0 0
        %1894 = vmatmul.mubr.bf16.gmra.mrb[0].mxu0 %v1756
        %v1895 = vpop.f32.mrb[0].mxu0
        %v1896 = vadd.f32 0.0, %v1895
        %v1897 = vpop.f32.mrb[0].mxu0
        %v1898 = vpop.f32.mrb[0].mxu0
        %v1899 = vadd.f32 0.0, %v1898
        %v1900 = vpop.f32.mrb[0].mxu0
        %1901 = vmatprep.mubr.bf16.mxu0 0
        %1902 = vmatmul.mubr.bf16.gmra.mrb[0].mxu0 %v1759
        %v1903 = vpop.f32.mrb[0].mxu0
        %v1904 = vadd.f32 0.0, %v1903
        %v1905 = vpop.f32.mrb[0].mxu0
        %v1906 = vpop.f32.mrb[0].mxu0
        %v1907 = vadd.f32 0.0, %v1906
        %v1908 = vpop.f32.mrb[0].mxu0
        %1909 = vmatprep.mubr.bf16.mxu0 0
        %1910 = vmatmul.mubr.bf16.gmra.mrb[0].mxu0 %v1762
        %v1911 = vpop.f32.mrb[0].mxu0
        %v1912 = vadd.f32 0.0, %v1911
        %v1913 = vpop.f32.mrb[0].mxu0
        %v1914 = vpop.f32.mrb[0].mxu0
        %v1915 = vadd.f32 0.0, %v1914
        %v1916 = vpop.f32.mrb[0].mxu0
        %1917 = vmatprep.mubr.bf16.mxu0 0
        %1918 = vmatmul.mubr.bf16.gmra.mrb[0].mxu0 %v1765
        %v1919 = vpop.f32.mrb[0].mxu0
        %v1920 = vadd.f32 0.0, %v1919
        %v1921 = vpop.f32.mrb[0].mxu0
        %v1922 = vpop.f32.mrb[0].mxu0
        %v1923 = vadd.f32 0.0, %v1922
        %v1924 = vpop.f32.mrb[0].mxu0
        %1925 = vmatprep.mubr.bf16.mxu0 0
        %1926 = vmatmul.mubr.bf16.gmra.mrb[0].mxu0 %v1768
        %v1927 = vpop.f32.mrb[0].mxu0
        %v1928 = vadd.f32 0.0, %v1927
        %v1929 = vpop.f32.mrb[0].mxu0
        %v1930 = vpop.f32.mrb[0].mxu0
        %v1931 = vadd.f32 0.0, %v1930
        %v1932 = vpop.f32.mrb[0].mxu0
        %1933 = vdwg.mxu0
        %v1934 = vadd.f32 %v1364, %v1808
        %v1935 = vadd.f32 %v1367, %v1811
        %v1936 = vadd.f32 %v1372, %v1816
        %v1937 = vadd.f32 %v1375, %v1819
        %v1938 = vadd.f32 %v1380, %v1824
        %v1939 = vadd.f32 %v1383, %v1827
        %v1940 = vadd.f32 %v1388, %v1832
        %v1941 = vadd.f32 %v1391, %v1835
        %v1942 = vadd.f32 %v1396, %v1840
        %v1943 = vadd.f32 %v1399, %v1843
        %v1944 = vadd.f32 %v1404, %v1848
        %v1945 = vadd.f32 %v1407, %v1851
        %v1946 = vadd.f32 %v1412, %v1856
        %v1947 = vadd.f32 %v1415, %v1859
        %v1948 = vadd.f32 %v1420, %v1864
        %v1949 = vadd.f32 %v1423, %v1867
        %v1950 = vadd.f32 %v1428, %v1872
        %v1951 = vadd.f32 %v1431, %v1875
        %v1952 = vadd.f32 %v1436, %v1880
        %v1953 = vadd.f32 %v1439, %v1883
        %v1954 = vadd.f32 %v1444, %v1888
        %v1955 = vadd.f32 %v1447, %v1891
        %v1956 = vadd.f32 %v1452, %v1896
        %v1957 = vadd.f32 %v1455, %v1899
        %v1958 = vadd.f32 %v1460, %v1904
        %v1959 = vadd.f32 %v1463, %v1907
        %v1960 = vadd.f32 %v1468, %v1912
        %v1961 = vadd.f32 %v1471, %v1915
        %v1962 = vadd.f32 %v1476, %v1920
        %v1963 = vadd.f32 %v1479, %v1923
        %v1964 = vadd.f32 %v1484, %v1928
        %v1965 = vadd.f32 %v1487, %v1931
        %s1966 = scalar_lea.vmem [#allocation2], 12
        %v1967 = vld [vmem:[%s1966] sm:$0xf]
        %v1968 = vld [vmem:[%s1966 + $0x4] sm:$0xf]
        %v1969 = vld [vmem:[%s1966 + $0xc] sm:$0xf]
        %v1970 = vld [vmem:[%s1966 + $0x10] sm:$0xf]
        %v1971 = vld [vmem:[%s1966 + $0x18] sm:$0xf]
        %v1972 = vld [vmem:[%s1966 + $0x1c] sm:$0xf]
        %v1973 = vld [vmem:[%s1966 + $0x24] sm:$0xf]
        %v1974 = vld [vmem:[%s1966 + $0x28] sm:$0xf]
        %v1975 = vld [vmem:[%s1966 + $0x30] sm:$0xf]
        %v1976 = vld [vmem:[%s1966 + $0x34] sm:$0xf]
        %v1977 = vld [vmem:[%s1966 + $0x3c] sm:$0xf]
        %v1978 = vld [vmem:[%s1966 + $0x40] sm:$0xf]
        %v1979 = vld [vmem:[%s1966 + $0x48] sm:$0xf]
        %v1980 = vld [vmem:[%s1966 + $0x4c] sm:$0xf]
        %v1981 = vld [vmem:[%s1966 + $0x54] sm:$0xf]
        %v1982 = vld [vmem:[%s1966 + $0x58] sm:$0xf]
        %v1983 = vld [vmem:[%s1966 + $0x60] sm:$0xf]
        %v1984 = vld [vmem:[%s1966 + $0x64] sm:$0xf]
        %v1985 = vld [vmem:[%s1966 + $0x6c] sm:$0xf]
        %v1986 = vld [vmem:[%s1966 + $0x70] sm:$0xf]
        %v1987 = vld [vmem:[%s1966 + $0x78] sm:$0xf]
        %v1988 = vld [vmem:[%s1966 + $0x7c] sm:$0xf]
        %v1989 = vld [vmem:[%s1966 + $0x84] sm:$0xf]
        %v1990 = vld [vmem:[%s1966 + $0x88] sm:$0xf]
        %v1991 = vld [vmem:[%s1966 + $0x90] sm:$0xf]
        %v1992 = vld [vmem:[%s1966 + $0x94] sm:$0xf]
        %v1993 = vld [vmem:[%s1966 + $0x9c] sm:$0xf]
        %v1994 = vld [vmem:[%s1966 + $0xa0] sm:$0xf]
        %v1995 = vld [vmem:[%s1966 + $0xa8] sm:$0xf]
        %v1996 = vld [vmem:[%s1966 + $0xac] sm:$0xf]
        %v1997 = vld [vmem:[%s1966 + $0xb4] sm:$0xf]
        %v1998 = vld [vmem:[%s1966 + $0xb8] sm:$0xf]
        %s1999 = scalar_lea.vmem %s2, 60
        %v2000 = vld [vmem:[%s1999] sm:$0xf]
        %v2001 = vld [vmem:[%s1999 + $0x4] sm:$0xf]
        %v2002 = vld [vmem:[%s1999 + $0x8] sm:$0xf]
        %v2003 = vld [vmem:[%s1999 + $0xc] sm:$0xf]
        %v2004 = vld [vmem:[%s1999 + $0x10] sm:$0x3]
        %v2037 = vunpack.c.l.b16 %v1967
        %v2038 = vunpack.c.l.b16 %v1968
        %v2039 = vunpack.c.l.b16 %v1969
        %v2040 = vunpack.c.l.b16 %v1970
        %v2041 = vunpack.c.l.b16 %v1971
        %v2042 = vunpack.c.l.b16 %v1972
        %v2043 = vunpack.c.l.b16 %v1973
        %v2044 = vunpack.c.l.b16 %v1974
        %v2045 = vunpack.c.l.b16 %v1975
        %v2046 = vunpack.c.l.b16 %v1976
        %v2047 = vunpack.c.l.b16 %v1977
        %v2048 = vunpack.c.l.b16 %v1978
        %v2049 = vunpack.c.l.b16 %v1979
        %v2050 = vunpack.c.l.b16 %v1980
        %v2051 = vunpack.c.l.b16 %v1981
        %v2052 = vunpack.c.l.b16 %v1982
        %v2053 = vunpack.c.l.b16 %v1983
        %v2054 = vunpack.c.l.b16 %v1984
        %v2055 = vunpack.c.l.b16 %v1985
        %v2056 = vunpack.c.l.b16 %v1986
        %v2057 = vunpack.c.l.b16 %v1987
        %v2058 = vunpack.c.l.b16 %v1988
        %v2059 = vunpack.c.l.b16 %v1989
        %v2060 = vunpack.c.l.b16 %v1990
        %v2061 = vunpack.c.l.b16 %v1991
        %v2062 = vunpack.c.l.b16 %v1992
        %v2063 = vunpack.c.l.b16 %v1993
        %v2064 = vunpack.c.l.b16 %v1994
        %v2065 = vunpack.c.l.b16 %v1995
        %v2066 = vunpack.c.l.b16 %v1996
        %v2067 = vunpack.c.l.b16 %v1997
        %v2068 = vunpack.c.l.b16 %v1998
        %v2069 = vpack.c.b16 %v2038, %v2037
        %v2070 = vpack.c.b16 %v2040, %v2039
        %v2071 = vpack.c.b16 %v2042, %v2041
        %v2072 = vpack.c.b16 %v2044, %v2043
        %v2073 = vpack.c.b16 %v2046, %v2045
        %v2074 = vpack.c.b16 %v2048, %v2047
        %v2075 = vpack.c.b16 %v2050, %v2049
        %v2076 = vpack.c.b16 %v2052, %v2051
        %v2077 = vpack.c.b16 %v2054, %v2053
        %v2078 = vpack.c.b16 %v2056, %v2055
        %v2079 = vpack.c.b16 %v2058, %v2057
        %v2080 = vpack.c.b16 %v2060, %v2059
        %v2081 = vpack.c.b16 %v2062, %v2061
        %v2082 = vpack.c.b16 %v2064, %v2063
        %v2083 = vpack.c.b16 %v2066, %v2065
        %v2084 = vpack.c.b16 %v2068, %v2067
        %v2090 = vunpack.c.l.b16 %v2000
        %v2091 = vunpack.c.l.b16 %v2001
        %v2092 = vunpack.c.l.b16 %v2002
        %v2093 = vunpack.c.l.b16 %v2003
        %v2094 = vunpack.c.l.b16 %v2004
        %v2095 = vpack.c.b16 %v2091, %v2090
        %v2096 = vpack.c.b16 %v2093, %v2092
        %v2097 = vpack.c.b16 %v2094, %v2094
        %v2101 = vsel %vm969, %v2069, 0
        %v2104 = vsel %vm969, %v2070, 0
        %v2107 = vsel %vm969, %v2071, 0
        %v2110 = vsel %vm969, %v2072, 0
        %v2113 = vsel %vm969, %v2073, 0
        %v2116 = vsel %vm969, %v2074, 0
        %v2119 = vsel %vm969, %v2075, 0
        %v2122 = vsel %vm969, %v2076, 0
        %v2125 = vsel %vm969, %v2077, 0
        %v2128 = vsel %vm969, %v2078, 0
        %v2131 = vsel %vm969, %v2079, 0
        %v2134 = vsel %vm969, %v2080, 0
        %v2137 = vsel %vm969, %v2081, 0
        %v2140 = vsel %vm969, %v2082, 0
        %v2143 = vsel %vm969, %v2083, 0
        %v2146 = vsel %vm969, %v2084, 0
        %v2149 = vsel %vm1018, %v2097, 0
        %2151 = vmatprep.subr.bf16.mxu0 0
        %2152 = vmatpush1.bf16.msra.mxu0 %v2095
        %2153 = vmatprep.subr.bf16.mxu0 0
        %2154 = vmatpush1.bf16.msra.mxu0 %v2096
        %2155 = vmatprep.subr.bf16.mxu0 0
        %2156 = vmatpush1.bf16.msra.mxu0 %v2149
        %2157 = vmatprep.subr.bf16.mxu0 0
        %2158 = vmatpush1.bf16.msra.mxu0 0
        %2159 = vmatprep.subr.bf16.mxu0 0
        %2160 = vmatpush1.bf16.msra.mxu0 0
        %2161 = vmatprep.subr.bf16.mxu0 0
        %2162 = vmatpush1.bf16.msra.mxu0 0
        %2163 = vmatprep.subr.bf16.mxu0 0
        %2164 = vmatpush1.bf16.msra.mxu0 0
        %2165 = vmatprep.subr.bf16.mxu0 0
        %2166 = vmatpush1.bf16.msra.mxu0 0
        %2167 = vmatprep.subr.bf16.mxu0 0
        %2168 = vmatpush1.bf16.msra.mxu0 0
        %2169 = vmatprep.subr.bf16.mxu0 0
        %2170 = vmatpush1.bf16.msra.mxu0 0
        %2171 = vmatprep.subr.bf16.mxu0 0
        %2172 = vmatpush1.bf16.msra.mxu0 0
        %2173 = vmatprep.subr.bf16.mxu0 0
        %2174 = vmatpush1.bf16.msra.mxu0 0
        %2175 = vmatprep.subr.bf16.mxu0 0
        %2176 = vmatpush1.bf16.msra.mxu0 0
        %2177 = vmatprep.subr.bf16.mxu0 0
        %2178 = vmatpush1.bf16.msra.mxu0 0
        %2179 = vmatprep.subr.bf16.mxu0 0
        %2180 = vmatpush1.bf16.msra.mxu0 0
        %2181 = vmatprep.subr.bf16.mxu0 0
        %2182 = vmatpush1.bf16.msra.mxu0 0
        %2183 = vmatprep.mubr.bf16.mxu0 0
        %2184 = vmatmul.mubr.bf16.gmra.mrb[0].mxu0 %v2101
        %v2185 = vpop.f32.mrb[0].mxu0
        %v2186 = vadd.f32 0.0, %v2185
        %v2187 = vpop.f32.mrb[0].mxu0
        %v2188 = vpop.f32.mrb[0].mxu0
        %v2189 = vadd.f32 0.0, %v2188
        %v2190 = vpop.f32.mrb[0].mxu0
        %2191 = vmatprep.mubr.bf16.mxu0 0
        %2192 = vmatmul.mubr.bf16.gmra.mrb[0].mxu0 %v2104
        %v2193 = vpop.f32.mrb[0].mxu0
        %v2194 = vadd.f32 0.0, %v2193
        %v2195 = vpop.f32.mrb[0].mxu0
        %v2196 = vpop.f32.mrb[0].mxu0
        %v2197 = vadd.f32 0.0, %v2196
        %v2198 = vpop.f32.mrb[0].mxu0
        %2199 = vmatprep.mubr.bf16.mxu0 0
        %2200 = vmatmul.mubr.bf16.gmra.mrb[0].mxu0 %v2107
        %v2201 = vpop.f32.mrb[0].mxu0
        %v2202 = vadd.f32 0.0, %v2201
        %v2203 = vpop.f32.mrb[0].mxu0
        %v2204 = vpop.f32.mrb[0].mxu0
        %v2205 = vadd.f32 0.0, %v2204
        %v2206 = vpop.f32.mrb[0].mxu0
        %2207 = vmatprep.mubr.bf16.mxu0 0
        %2208 = vmatmul.mubr.bf16.gmra.mrb[0].mxu0 %v2110
        %v2209 = vpop.f32.mrb[0].mxu0
        %v2210 = vadd.f32 0.0, %v2209
        %v2211 = vpop.f32.mrb[0].mxu0
        %v2212 = vpop.f32.mrb[0].mxu0
        %v2213 = vadd.f32 0.0, %v2212
        %v2214 = vpop.f32.mrb[0].mxu0
        %2215 = vmatprep.mubr.bf16.mxu0 0
        %2216 = vmatmul.mubr.bf16.gmra.mrb[0].mxu0 %v2113
        %v2217 = vpop.f32.mrb[0].mxu0
        %v2218 = vadd.f32 0.0, %v2217
        %v2219 = vpop.f32.mrb[0].mxu0
        %v2220 = vpop.f32.mrb[0].mxu0
        %v2221 = vadd.f32 0.0, %v2220
        %v2222 = vpop.f32.mrb[0].mxu0
        %2223 = vmatprep.mubr.bf16.mxu0 0
        %2224 = vmatmul.mubr.bf16.gmra.mrb[0].mxu0 %v2116
        %v2225 = vpop.f32.mrb[0].mxu0
        %v2226 = vadd.f32 0.0, %v2225
        %v2227 = vpop.f32.mrb[0].mxu0
        %v2228 = vpop.f32.mrb[0].mxu0
        %v2229 = vadd.f32 0.0, %v2228
        %v2230 = vpop.f32.mrb[0].mxu0
        %2231 = vmatprep.mubr.bf16.mxu0 0
        %2232 = vmatmul.mubr.bf16.gmra.mrb[0].mxu0 %v2119
        %v2233 = vpop.f32.mrb[0].mxu0
        %v2234 = vadd.f32 0.0, %v2233
        %v2235 = vpop.f32.mrb[0].mxu0
        %v2236 = vpop.f32.mrb[0].mxu0
        %v2237 = vadd.f32 0.0, %v2236
        %v2238 = vpop.f32.mrb[0].mxu0
        %2239 = vmatprep.mubr.bf16.mxu0 0
        %2240 = vmatmul.mubr.bf16.gmra.mrb[0].mxu0 %v2122
        %v2241 = vpop.f32.mrb[0].mxu0
        %v2242 = vadd.f32 0.0, %v2241
        %v2243 = vpop.f32.mrb[0].mxu0
        %v2244 = vpop.f32.mrb[0].mxu0
        %v2245 = vadd.f32 0.0, %v2244
        %v2246 = vpop.f32.mrb[0].mxu0
        %2247 = vmatprep.mubr.bf16.mxu0 0
        %2248 = vmatmul.mubr.bf16.gmra.mrb[0].mxu0 %v2125
        %v2249 = vpop.f32.mrb[0].mxu0
        %v2250 = vadd.f32 0.0, %v2249
        %v2251 = vpop.f32.mrb[0].mxu0
        %v2252 = vpop.f32.mrb[0].mxu0
        %v2253 = vadd.f32 0.0, %v2252
        %v2254 = vpop.f32.mrb[0].mxu0
        %2255 = vmatprep.mubr.bf16.mxu0 0
        %2256 = vmatmul.mubr.bf16.gmra.mrb[0].mxu0 %v2128
        %v2257 = vpop.f32.mrb[0].mxu0
        %v2258 = vadd.f32 0.0, %v2257
        %v2259 = vpop.f32.mrb[0].mxu0
        %v2260 = vpop.f32.mrb[0].mxu0
        %v2261 = vadd.f32 0.0, %v2260
        %v2262 = vpop.f32.mrb[0].mxu0
        %2263 = vmatprep.mubr.bf16.mxu0 0
        %2264 = vmatmul.mubr.bf16.gmra.mrb[0].mxu0 %v2131
        %v2265 = vpop.f32.mrb[0].mxu0
        %v2266 = vadd.f32 0.0, %v2265
        %v2267 = vpop.f32.mrb[0].mxu0
        %v2268 = vpop.f32.mrb[0].mxu0
        %v2269 = vadd.f32 0.0, %v2268
        %v2270 = vpop.f32.mrb[0].mxu0
        %2271 = vmatprep.mubr.bf16.mxu0 0
        %2272 = vmatmul.mubr.bf16.gmra.mrb[0].mxu0 %v2134
        %v2273 = vpop.f32.mrb[0].mxu0
        %v2274 = vadd.f32 0.0, %v2273
        %v2275 = vpop.f32.mrb[0].mxu0
        %v2276 = vpop.f32.mrb[0].mxu0
        %v2277 = vadd.f32 0.0, %v2276
        %v2278 = vpop.f32.mrb[0].mxu0
        %2279 = vmatprep.mubr.bf16.mxu0 0
        %2280 = vmatmul.mubr.bf16.gmra.mrb[0].mxu0 %v2137
        %v2281 = vpop.f32.mrb[0].mxu0
        %v2282 = vadd.f32 0.0, %v2281
        %v2283 = vpop.f32.mrb[0].mxu0
        %v2284 = vpop.f32.mrb[0].mxu0
        %v2285 = vadd.f32 0.0, %v2284
        %v2286 = vpop.f32.mrb[0].mxu0
        %2287 = vmatprep.mubr.bf16.mxu0 0
        %2288 = vmatmul.mubr.bf16.gmra.mrb[0].mxu0 %v2140
        %v2289 = vpop.f32.mrb[0].mxu0
        %v2290 = vadd.f32 0.0, %v2289
        %v2291 = vpop.f32.mrb[0].mxu0
        %v2292 = vpop.f32.mrb[0].mxu0
        %v2293 = vadd.f32 0.0, %v2292
        %v2294 = vpop.f32.mrb[0].mxu0
        %2295 = vmatprep.mubr.bf16.mxu0 0
        %2296 = vmatmul.mubr.bf16.gmra.mrb[0].mxu0 %v2143
        %v2297 = vpop.f32.mrb[0].mxu0
        %v2298 = vadd.f32 0.0, %v2297
        %v2299 = vpop.f32.mrb[0].mxu0
        %v2300 = vpop.f32.mrb[0].mxu0
        %v2301 = vadd.f32 0.0, %v2300
        %v2302 = vpop.f32.mrb[0].mxu0
        %2303 = vmatprep.mubr.bf16.mxu0 0
        %2304 = vmatmul.mubr.bf16.gmra.mrb[0].mxu0 %v2146
        %v2305 = vpop.f32.mrb[0].mxu0
        %v2306 = vadd.f32 0.0, %v2305
        %v2307 = vpop.f32.mrb[0].mxu0
        %v2308 = vpop.f32.mrb[0].mxu0
        %v2309 = vadd.f32 0.0, %v2308
        %v2310 = vpop.f32.mrb[0].mxu0
        %2311 = vdwg.mxu0
        %v2312 = vadd.f32 %v1934, %v2186
        %v2313 = vadd.f32 %v1935, %v2189
        %v2314 = vadd.f32 %v1936, %v2194
        %v2315 = vadd.f32 %v1937, %v2197
        %v2316 = vadd.f32 %v1938, %v2202
        %v2317 = vadd.f32 %v1939, %v2205
        %v2318 = vadd.f32 %v1940, %v2210
        %v2319 = vadd.f32 %v1941, %v2213
        %v2320 = vadd.f32 %v1942, %v2218
        %v2321 = vadd.f32 %v1943, %v2221
        %v2322 = vadd.f32 %v1944, %v2226
        %v2323 = vadd.f32 %v1945, %v2229
        %v2324 = vadd.f32 %v1946, %v2234
        %v2325 = vadd.f32 %v1947, %v2237
        %v2326 = vadd.f32 %v1948, %v2242
        %v2327 = vadd.f32 %v1949, %v2245
        %v2328 = vadd.f32 %v1950, %v2250
        %v2329 = vadd.f32 %v1951, %v2253
        %v2330 = vadd.f32 %v1952, %v2258
        %v2331 = vadd.f32 %v1953, %v2261
        %v2332 = vadd.f32 %v1954, %v2266
        %v2333 = vadd.f32 %v1955, %v2269
        %v2334 = vadd.f32 %v1956, %v2274
        %v2335 = vadd.f32 %v1957, %v2277
        %v2336 = vadd.f32 %v1958, %v2282
        %v2337 = vadd.f32 %v1959, %v2285
        %v2338 = vadd.f32 %v1960, %v2290
        %v2339 = vadd.f32 %v1961, %v2293
        %v2340 = vadd.f32 %v1962, %v2298
        %v2341 = vadd.f32 %v1963, %v2301
        %v2342 = vadd.f32 %v1964, %v2306
        %v2343 = vadd.f32 %v1965, %v2309
        %v2344 = vld [vmem:[%s1966] sm:$0xf]
        %v2345 = vld [vmem:[%s1966 + $0x4] sm:$0xf]
        %v2346 = vld [vmem:[%s1966 + $0x8] sm:$0x1]
        %v2347 = vld [vmem:[%s1966 + $0xc] sm:$0xf]
        %v2348 = vld [vmem:[%s1966 + $0x10] sm:$0xf]
        %v2349 = vld [vmem:[%s1966 + $0x14] sm:$0x1]
        %v2350 = vld [vmem:[%s1966 + $0x18] sm:$0xf]
        %v2351 = vld [vmem:[%s1966 + $0x1c] sm:$0xf]
        %v2352 = vld [vmem:[%s1966 + $0x20] sm:$0x1]
        %v2353 = vld [vmem:[%s1966 + $0x24] sm:$0xf]
        %v2354 = vld [vmem:[%s1966 + $0x28] sm:$0xf]
        %v2355 = vld [vmem:[%s1966 + $0x2c] sm:$0x1]
        %v2356 = vld [vmem:[%s1966 + $0x30] sm:$0xf]
        %v2357 = vld [vmem:[%s1966 + $0x34] sm:$0xf]
        %v2358 = vld [vmem:[%s1966 + $0x38] sm:$0x1]
        %v2359 = vld [vmem:[%s1966 + $0x3c] sm:$0xf]
        %v2360 = vld [vmem:[%s1966 + $0x40] sm:$0xf]
        %v2361 = vld [vmem:[%s1966 + $0x44] sm:$0x1]
        %v2362 = vld [vmem:[%s1966 + $0x48] sm:$0xf]
        %v2363 = vld [vmem:[%s1966 + $0x4c] sm:$0xf]
        %v2364 = vld [vmem:[%s1966 + $0x50] sm:$0x1]
        %v2365 = vld [vmem:[%s1966 + $0x54] sm:$0xf]
        %v2366 = vld [vmem:[%s1966 + $0x58] sm:$0xf]
        %v2367 = vld [vmem:[%s1966 + $0x5c] sm:$0x1]
        %v2368 = vld [vmem:[%s1966 + $0x60] sm:$0xf]
        %v2369 = vld [vmem:[%s1966 + $0x64] sm:$0xf]
        %v2370 = vld [vmem:[%s1966 + $0x68] sm:$0x1]
        %v2371 = vld [vmem:[%s1966 + $0x6c] sm:$0xf]
        %v2372 = vld [vmem:[%s1966 + $0x70] sm:$0xf]
        %v2373 = vld [vmem:[%s1966 + $0x74] sm:$0x1]
        %v2374 = vld [vmem:[%s1966 + $0x78] sm:$0xf]
        %v2375 = vld [vmem:[%s1966 + $0x7c] sm:$0xf]
        %v2376 = vld [vmem:[%s1966 + $0x80] sm:$0x1]
        %v2377 = vld [vmem:[%s1966 + $0x84] sm:$0xf]
        %v2378 = vld [vmem:[%s1966 + $0x88] sm:$0xf]
        %v2379 = vld [vmem:[%s1966 + $0x8c] sm:$0x1]
        %v2380 = vld [vmem:[%s1966 + $0x90] sm:$0xf]
        %v2381 = vld [vmem:[%s1966 + $0x94] sm:$0xf]
        %v2382 = vld [vmem:[%s1966 + $0x98] sm:$0x1]
        %v2383 = vld [vmem:[%s1966 + $0x9c] sm:$0xf]
        %v2384 = vld [vmem:[%s1966 + $0xa0] sm:$0xf]
        %v2385 = vld [vmem:[%s1966 + $0xa4] sm:$0x1]
        %v2386 = vld [vmem:[%s1966 + $0xa8] sm:$0xf]
        %v2387 = vld [vmem:[%s1966 + $0xac] sm:$0xf]
        %v2388 = vld [vmem:[%s1966 + $0xb0] sm:$0x1]
        %v2389 = vld [vmem:[%s1966 + $0xb4] sm:$0xf]
        %v2390 = vld [vmem:[%s1966 + $0xb8] sm:$0xf]
        %v2391 = vld [vmem:[%s1966 + $0xbc] sm:$0x1]
        %v2393 = vshrl.u32 %v2344, 16
        %v2395 = vrot.slane %v2393, 4
        %v2396 = vshll.u32 %v2344, 16
        %v2398 = vrot.slane %v2396, 5
        %v2399 = vor.u32 %v2395, %v2398
        %v2400 = vrot.slane %v2399, 4
        %v2402 = vshll.u32 %v2345, 16
        %v2404 = vrot.slane %v2402, 5
        %v2405 = vsel %vm515, %v2400, %v2404
        %v2406 = vshrl.u32 %v2345, 16
        %v2408 = vrot.slane %v2406, 4
        %v2409 = vor.u32 %v2408, %v2404
        %v2410 = vrot.slane %v2409, 4
        %v2412 = vshll.u32 %v2346, 16
        %v2414 = vrot.slane %v2412, 5
        %v2415 = vsel %vm515, %v2410, %v2414
        %v2417 = vshrl.u32 %v2347, 16
        %v2419 = vrot.slane %v2417, 4
        %v2420 = vshll.u32 %v2347, 16
        %v2422 = vrot.slane %v2420, 5
        %v2423 = vor.u32 %v2419, %v2422
        %v2424 = vrot.slane %v2423, 4
        %v2426 = vshll.u32 %v2348, 16
        %v2428 = vrot.slane %v2426, 5
        %v2429 = vsel %vm515, %v2424, %v2428
        %v2430 = vshrl.u32 %v2348, 16
        %v2432 = vrot.slane %v2430, 4
        %v2433 = vor.u32 %v2432, %v2428
        %v2434 = vrot.slane %v2433, 4
        %v2436 = vshll.u32 %v2349, 16
        %v2438 = vrot.slane %v2436, 5
        %v2439 = vsel %vm515, %v2434, %v2438
        %v2441 = vshrl.u32 %v2350, 16
        %v2443 = vrot.slane %v2441, 4
        %v2444 = vshll.u32 %v2350, 16
        %v2446 = vrot.slane %v2444, 5
        %v2447 = vor.u32 %v2443, %v2446
        %v2448 = vrot.slane %v2447, 4
        %v2450 = vshll.u32 %v2351, 16
        %v2452 = vrot.slane %v2450, 5
        %v2453 = vsel %vm515, %v2448, %v2452
        %v2454 = vshrl.u32 %v2351, 16
        %v2456 = vrot.slane %v2454, 4
        %v2457 = vor.u32 %v2456, %v2452
        %v2458 = vrot.slane %v2457, 4
        %v2460 = vshll.u32 %v2352, 16
        %v2462 = vrot.slane %v2460, 5
        %v2463 = vsel %vm515, %v2458, %v2462
        %v2465 = vshrl.u32 %v2353, 16
        %v2467 = vrot.slane %v2465, 4
        %v2468 = vshll.u32 %v2353, 16
        %v2470 = vrot.slane %v2468, 5
        %v2471 = vor.u32 %v2467, %v2470
        %v2472 = vrot.slane %v2471, 4
        %v2474 = vshll.u32 %v2354, 16
        %v2476 = vrot.slane %v2474, 5
        %v2477 = vsel %vm515, %v2472, %v2476
        %v2478 = vshrl.u32 %v2354, 16
        %v2480 = vrot.slane %v2478, 4
        %v2481 = vor.u32 %v2480, %v2476
        %v2482 = vrot.slane %v2481, 4
        %v2484 = vshll.u32 %v2355, 16
        %v2486 = vrot.slane %v2484, 5
        %v2487 = vsel %vm515, %v2482, %v2486
        %v2489 = vshrl.u32 %v2356, 16
        %v2491 = vrot.slane %v2489, 4
        %v2492 = vshll.u32 %v2356, 16
        %v2494 = vrot.slane %v2492, 5
        %v2495 = vor.u32 %v2491, %v2494
        %v2496 = vrot.slane %v2495, 4
        %v2498 = vshll.u32 %v2357, 16
        %v2500 = vrot.slane %v2498, 5
        %v2501 = vsel %vm515, %v2496, %v2500
        %v2502 = vshrl.u32 %v2357, 16
        %v2504 = vrot.slane %v2502, 4
        %v2505 = vor.u32 %v2504, %v2500
        %v2506 = vrot.slane %v2505, 4
        %v2508 = vshll.u32 %v2358, 16
        %v2510 = vrot.slane %v2508, 5
        %v2511 = vsel %vm515, %v2506, %v2510
        %v2513 = vshrl.u32 %v2359, 16
        %v2515 = vrot.slane %v2513, 4
        %v2516 = vshll.u32 %v2359, 16
        %v2518 = vrot.slane %v2516, 5
        %v2519 = vor.u32 %v2515, %v2518
        %v2520 = vrot.slane %v2519, 4
        %v2522 = vshll.u32 %v2360, 16
        %v2524 = vrot.slane %v2522, 5
        %v2525 = vsel %vm515, %v2520, %v2524
        %v2526 = vshrl.u32 %v2360, 16
        %v2528 = vrot.slane %v2526, 4
        %v2529 = vor.u32 %v2528, %v2524
        %v2530 = vrot.slane %v2529, 4
        %v2532 = vshll.u32 %v2361, 16
        %v2534 = vrot.slane %v2532, 5
        %v2535 = vsel %vm515, %v2530, %v2534
        %v2537 = vshrl.u32 %v2362, 16
        %v2539 = vrot.slane %v2537, 4
        %v2540 = vshll.u32 %v2362, 16
        %v2542 = vrot.slane %v2540, 5
        %v2543 = vor.u32 %v2539, %v2542
        %v2544 = vrot.slane %v2543, 4
        %v2546 = vshll.u32 %v2363, 16
        %v2548 = vrot.slane %v2546, 5
        %v2549 = vsel %vm515, %v2544, %v2548
        %v2550 = vshrl.u32 %v2363, 16
        %v2552 = vrot.slane %v2550, 4
        %v2553 = vor.u32 %v2552, %v2548
        %v2554 = vrot.slane %v2553, 4
        %v2556 = vshll.u32 %v2364, 16
        %v2558 = vrot.slane %v2556, 5
        %v2559 = vsel %vm515, %v2554, %v2558
        %v2561 = vshrl.u32 %v2365, 16
        %v2563 = vrot.slane %v2561, 4
        %v2564 = vshll.u32 %v2365, 16
        %v2566 = vrot.slane %v2564, 5
        %v2567 = vor.u32 %v2563, %v2566
        %v2568 = vrot.slane %v2567, 4
        %v2570 = vshll.u32 %v2366, 16
        %v2572 = vrot.slane %v2570, 5
        %v2573 = vsel %vm515, %v2568, %v2572
        %v2574 = vshrl.u32 %v2366, 16
        %v2576 = vrot.slane %v2574, 4
        %v2577 = vor.u32 %v2576, %v2572
        %v2578 = vrot.slane %v2577, 4
        %v2580 = vshll.u32 %v2367, 16
        %v2582 = vrot.slane %v2580, 5
        %v2583 = vsel %vm515, %v2578, %v2582
        %v2585 = vshrl.u32 %v2368, 16
        %v2587 = vrot.slane %v2585, 4
        %v2588 = vshll.u32 %v2368, 16
        %v2590 = vrot.slane %v2588, 5
        %v2591 = vor.u32 %v2587, %v2590
        %v2592 = vrot.slane %v2591, 4
        %v2594 = vshll.u32 %v2369, 16
        %v2596 = vrot.slane %v2594, 5
        %v2597 = vsel %vm515, %v2592, %v2596
        %v2598 = vshrl.u32 %v2369, 16
        %v2600 = vrot.slane %v2598, 4
        %v2601 = vor.u32 %v2600, %v2596
        %v2602 = vrot.slane %v2601, 4
        %v2604 = vshll.u32 %v2370, 16
        %v2606 = vrot.slane %v2604, 5
        %v2607 = vsel %vm515, %v2602, %v2606
        %v2609 = vshrl.u32 %v2371, 16
        %v2611 = vrot.slane %v2609, 4
        %v2612 = vshll.u32 %v2371, 16
        %v2614 = vrot.slane %v2612, 5
        %v2615 = vor.u32 %v2611, %v2614
        %v2616 = vrot.slane %v2615, 4
        %v2618 = vshll.u32 %v2372, 16
        %v2620 = vrot.slane %v2618, 5
        %v2621 = vsel %vm515, %v2616, %v2620
        %v2622 = vshrl.u32 %v2372, 16
        %v2624 = vrot.slane %v2622, 4
        %v2625 = vor.u32 %v2624, %v2620
        %v2626 = vrot.slane %v2625, 4
        %v2628 = vshll.u32 %v2373, 16
        %v2630 = vrot.slane %v2628, 5
        %v2631 = vsel %vm515, %v2626, %v2630
        %v2633 = vshrl.u32 %v2374, 16
        %v2635 = vrot.slane %v2633, 4
        %v2636 = vshll.u32 %v2374, 16
        %v2638 = vrot.slane %v2636, 5
        %v2639 = vor.u32 %v2635, %v2638
        %v2640 = vrot.slane %v2639, 4
        %v2642 = vshll.u32 %v2375, 16
        %v2644 = vrot.slane %v2642, 5
        %v2645 = vsel %vm515, %v2640, %v2644
        %v2646 = vshrl.u32 %v2375, 16
        %v2648 = vrot.slane %v2646, 4
        %v2649 = vor.u32 %v2648, %v2644
        %v2650 = vrot.slane %v2649, 4
        %v2652 = vshll.u32 %v2376, 16
        %v2654 = vrot.slane %v2652, 5
        %v2655 = vsel %vm515, %v2650, %v2654
        %v2657 = vshrl.u32 %v2377, 16
        %v2659 = vrot.slane %v2657, 4
        %v2660 = vshll.u32 %v2377, 16
        %v2662 = vrot.slane %v2660, 5
        %v2663 = vor.u32 %v2659, %v2662
        %v2664 = vrot.slane %v2663, 4
        %v2666 = vshll.u32 %v2378, 16
        %v2668 = vrot.slane %v2666, 5
        %v2669 = vsel %vm515, %v2664, %v2668
        %v2670 = vshrl.u32 %v2378, 16
        %v2672 = vrot.slane %v2670, 4
        %v2673 = vor.u32 %v2672, %v2668
        %v2674 = vrot.slane %v2673, 4
        %v2676 = vshll.u32 %v2379, 16
        %v2678 = vrot.slane %v2676, 5
        %v2679 = vsel %vm515, %v2674, %v2678
        %v2681 = vshrl.u32 %v2380, 16
        %v2683 = vrot.slane %v2681, 4
        %v2684 = vshll.u32 %v2380, 16
        %v2686 = vrot.slane %v2684, 5
        %v2687 = vor.u32 %v2683, %v2686
        %v2688 = vrot.slane %v2687, 4
        %v2690 = vshll.u32 %v2381, 16
        %v2692 = vrot.slane %v2690, 5
        %v2693 = vsel %vm515, %v2688, %v2692
        %v2694 = vshrl.u32 %v2381, 16
        %v2696 = vrot.slane %v2694, 4
        %v2697 = vor.u32 %v2696, %v2692
        %v2698 = vrot.slane %v2697, 4
        %v2700 = vshll.u32 %v2382, 16
        %v2702 = vrot.slane %v2700, 5
        %v2703 = vsel %vm515, %v2698, %v2702
        %v2705 = vshrl.u32 %v2383, 16
        %v2707 = vrot.slane %v2705, 4
        %v2708 = vshll.u32 %v2383, 16
        %v2710 = vrot.slane %v2708, 5
        %v2711 = vor.u32 %v2707, %v2710
        %v2712 = vrot.slane %v2711, 4
        %v2714 = vshll.u32 %v2384, 16
        %v2716 = vrot.slane %v2714, 5
        %v2717 = vsel %vm515, %v2712, %v2716
        %v2718 = vshrl.u32 %v2384, 16
        %v2720 = vrot.slane %v2718, 4
        %v2721 = vor.u32 %v2720, %v2716
        %v2722 = vrot.slane %v2721, 4
        %v2724 = vshll.u32 %v2385, 16
        %v2726 = vrot.slane %v2724, 5
        %v2727 = vsel %vm515, %v2722, %v2726
        %v2729 = vshrl.u32 %v2386, 16
        %v2731 = vrot.slane %v2729, 4
        %v2732 = vshll.u32 %v2386, 16
        %v2734 = vrot.slane %v2732, 5
        %v2735 = vor.u32 %v2731, %v2734
        %v2736 = vrot.slane %v2735, 4
        %v2738 = vshll.u32 %v2387, 16
        %v2740 = vrot.slane %v2738, 5
        %v2741 = vsel %vm515, %v2736, %v2740
        %v2742 = vshrl.u32 %v2387, 16
        %v2744 = vrot.slane %v2742, 4
        %v2745 = vor.u32 %v2744, %v2740
        %v2746 = vrot.slane %v2745, 4
        %v2748 = vshll.u32 %v2388, 16
        %v2750 = vrot.slane %v2748, 5
        %v2751 = vsel %vm515, %v2746, %v2750
        %v2753 = vshrl.u32 %v2389, 16
        %v2755 = vrot.slane %v2753, 4
        %v2756 = vshll.u32 %v2389, 16
        %v2758 = vrot.slane %v2756, 5
        %v2759 = vor.u32 %v2755, %v2758
        %v2760 = vrot.slane %v2759, 4
        %v2762 = vshll.u32 %v2390, 16
        %v2764 = vrot.slane %v2762, 5
        %v2765 = vsel %vm515, %v2760, %v2764
        %v2766 = vshrl.u32 %v2390, 16
        %v2768 = vrot.slane %v2766, 4
        %v2769 = vor.u32 %v2768, %v2764
        %v2770 = vrot.slane %v2769, 4
        %v2772 = vshll.u32 %v2391, 16
        %v2774 = vrot.slane %v2772, 5
        %v2775 = vsel %vm515, %v2770, %v2774
        %s2776 = scalar_lea.vmem %s2, 80
        %v2777 = vld [vmem:[%s2776] sm:$0xf]
        %v2778 = vld [vmem:[%s2776 + $0x4] sm:$0xf]
        %v2779 = vld [vmem:[%s2776 + $0x8] sm:$0xf]
        %v2780 = vld [vmem:[%s2776 + $0xc] sm:$0xf]
        %v2781 = vld [vmem:[%s2776 + $0x10] sm:$0x3]
        %v2782 = vunpack.c.l.b16 %v2405
        %v2783 = vunpack.c.l.b16 %v2415
        %v2784 = vunpack.c.l.b16 %v2429
        %v2785 = vunpack.c.l.b16 %v2439
        %v2786 = vunpack.c.l.b16 %v2453
        %v2787 = vunpack.c.l.b16 %v2463
        %v2788 = vunpack.c.l.b16 %v2477
        %v2789 = vunpack.c.l.b16 %v2487
        %v2790 = vunpack.c.l.b16 %v2501
        %v2791 = vunpack.c.l.b16 %v2511
        %v2792 = vunpack.c.l.b16 %v2525
        %v2793 = vunpack.c.l.b16 %v2535
        %v2794 = vunpack.c.l.b16 %v2549
        %v2795 = vunpack.c.l.b16 %v2559
        %v2796 = vunpack.c.l.b16 %v2573
        %v2797 = vunpack.c.l.b16 %v2583
        %v2798 = vunpack.c.l.b16 %v2597
        %v2799 = vunpack.c.l.b16 %v2607
        %v2800 = vunpack.c.l.b16 %v2621
        %v2801 = vunpack.c.l.b16 %v2631
        %v2802 = vunpack.c.l.b16 %v2645
        %v2803 = vunpack.c.l.b16 %v2655
        %v2804 = vunpack.c.l.b16 %v2669
        %v2805 = vunpack.c.l.b16 %v2679
        %v2806 = vunpack.c.l.b16 %v2693
        %v2807 = vunpack.c.l.b16 %v2703
        %v2808 = vunpack.c.l.b16 %v2717
        %v2809 = vunpack.c.l.b16 %v2727
        %v2810 = vunpack.c.l.b16 %v2741
        %v2811 = vunpack.c.l.b16 %v2751
        %v2812 = vunpack.c.l.b16 %v2765
        %v2813 = vunpack.c.l.b16 %v2775
        %v2814 = vpack.c.b16 %v2783, %v2782
        %v2815 = vpack.c.b16 %v2785, %v2784
        %v2816 = vpack.c.b16 %v2787, %v2786
        %v2817 = vpack.c.b16 %v2789, %v2788
        %v2818 = vpack.c.b16 %v2791, %v2790
        %v2819 = vpack.c.b16 %v2793, %v2792
        %v2820 = vpack.c.b16 %v2795, %v2794
        %v2821 = vpack.c.b16 %v2797, %v2796
        %v2822 = vpack.c.b16 %v2799, %v2798
        %v2823 = vpack.c.b16 %v2801, %v2800
        %v2824 = vpack.c.b16 %v2803, %v2802
        %v2825 = vpack.c.b16 %v2805, %v2804
        %v2826 = vpack.c.b16 %v2807, %v2806
        %v2827 = vpack.c.b16 %v2809, %v2808
        %v2828 = vpack.c.b16 %v2811, %v2810
        %v2829 = vpack.c.b16 %v2813, %v2812
        %v2835 = vunpack.c.l.b16 %v2777
        %v2836 = vunpack.c.l.b16 %v2778
        %v2837 = vunpack.c.l.b16 %v2779
        %v2838 = vunpack.c.l.b16 %v2780
        %v2839 = vunpack.c.l.b16 %v2781
        %v2840 = vpack.c.b16 %v2836, %v2835
        %v2841 = vpack.c.b16 %v2838, %v2837
        %v2842 = vpack.c.b16 %v2839, %v2839
        %v2846 = vsel %vm969, %v2814, 0
        %v2849 = vsel %vm969, %v2815, 0
        %v2852 = vsel %vm969, %v2816, 0
        %v2855 = vsel %vm969, %v2817, 0
        %v2858 = vsel %vm969, %v2818, 0
        %v2861 = vsel %vm969, %v2819, 0
        %v2864 = vsel %vm969, %v2820, 0
        %v2867 = vsel %vm969, %v2821, 0
        %v2870 = vsel %vm969, %v2822, 0
        %v2873 = vsel %vm969, %v2823, 0
        %v2876 = vsel %vm969, %v2824, 0
        %v2879 = vsel %vm969, %v2825, 0
        %v2882 = vsel %vm969, %v2826, 0
        %v2885 = vsel %vm969, %v2827, 0
        %v2888 = vsel %vm969, %v2828, 0
        %v2891 = vsel %vm969, %v2829, 0
        %v2894 = vsel %vm1018, %v2842, 0
        %2896 = vmatprep.subr.bf16.mxu0 0
        %2897 = vmatpush1.bf16.msra.mxu0 %v2840
        %2898 = vmatprep.subr.bf16.mxu0 0
        %2899 = vmatpush1.bf16.msra.mxu0 %v2841
        %2900 = vmatprep.subr.bf16.mxu0 0
        %2901 = vmatpush1.bf16.msra.mxu0 %v2894
        %2902 = vmatprep.subr.bf16.mxu0 0
        %2903 = vmatpush1.bf16.msra.mxu0 0
        %2904 = vmatprep.subr.bf16.mxu0 0
        %2905 = vmatpush1.bf16.msra.mxu0 0
        %2906 = vmatprep.subr.bf16.mxu0 0
        %2907 = vmatpush1.bf16.msra.mxu0 0
        %2908 = vmatprep.subr.bf16.mxu0 0
        %2909 = vmatpush1.bf16.msra.mxu0 0
        %2910 = vmatprep.subr.bf16.mxu0 0
        %2911 = vmatpush1.bf16.msra.mxu0 0
        %2912 = vmatprep.subr.bf16.mxu0 0
        %2913 = vmatpush1.bf16.msra.mxu0 0
        %2914 = vmatprep.subr.bf16.mxu0 0
        %2915 = vmatpush1.bf16.msra.mxu0 0
        %2916 = vmatprep.subr.bf16.mxu0 0
        %2917 = vmatpush1.bf16.msra.mxu0 0
        %2918 = vmatprep.subr.bf16.mxu0 0
        %2919 = vmatpush1.bf16.msra.mxu0 0
        %2920 = vmatprep.subr.bf16.mxu0 0
        %2921 = vmatpush1.bf16.msra.mxu0 0
        %2922 = vmatprep.subr.bf16.mxu0 0
        %2923 = vmatpush1.bf16.msra.mxu0 0
        %2924 = vmatprep.subr.bf16.mxu0 0
        %2925 = vmatpush1.bf16.msra.mxu0 0
        %2926 = vmatprep.subr.bf16.mxu0 0
        %2927 = vmatpush1.bf16.msra.mxu0 0
        %2928 = vmatprep.mubr.bf16.mxu0 0
        %2929 = vmatmul.mubr.bf16.gmra.mrb[0].mxu0 %v2846
        %v2930 = vpop.f32.mrb[0].mxu0
        %v2931 = vadd.f32 0.0, %v2930
        %v2932 = vpop.f32.mrb[0].mxu0
        %v2933 = vpop.f32.mrb[0].mxu0
        %v2934 = vadd.f32 0.0, %v2933
        %v2935 = vpop.f32.mrb[0].mxu0
        %2936 = vmatprep.mubr.bf16.mxu0 0
        %2937 = vmatmul.mubr.bf16.gmra.mrb[0].mxu0 %v2849
        %v2938 = vpop.f32.mrb[0].mxu0
        %v2939 = vadd.f32 0.0, %v2938
        %v2940 = vpop.f32.mrb[0].mxu0
        %v2941 = vpop.f32.mrb[0].mxu0
        %v2942 = vadd.f32 0.0, %v2941
        %v2943 = vpop.f32.mrb[0].mxu0
        %2944 = vmatprep.mubr.bf16.mxu0 0
        %2945 = vmatmul.mubr.bf16.gmra.mrb[0].mxu0 %v2852
        %v2946 = vpop.f32.mrb[0].mxu0
        %v2947 = vadd.f32 0.0, %v2946
        %v2948 = vpop.f32.mrb[0].mxu0
        %v2949 = vpop.f32.mrb[0].mxu0
        %v2950 = vadd.f32 0.0, %v2949
        %v2951 = vpop.f32.mrb[0].mxu0
        %2952 = vmatprep.mubr.bf16.mxu0 0
        %2953 = vmatmul.mubr.bf16.gmra.mrb[0].mxu0 %v2855
        %v2954 = vpop.f32.mrb[0].mxu0
        %v2955 = vadd.f32 0.0, %v2954
        %v2956 = vpop.f32.mrb[0].mxu0
        %v2957 = vpop.f32.mrb[0].mxu0
        %v2958 = vadd.f32 0.0, %v2957
        %v2959 = vpop.f32.mrb[0].mxu0
        %2960 = vmatprep.mubr.bf16.mxu0 0
        %2961 = vmatmul.mubr.bf16.gmra.mrb[0].mxu0 %v2858
        %v2962 = vpop.f32.mrb[0].mxu0
        %v2963 = vadd.f32 0.0, %v2962
        %v2964 = vpop.f32.mrb[0].mxu0
        %v2965 = vpop.f32.mrb[0].mxu0
        %v2966 = vadd.f32 0.0, %v2965
        %v2967 = vpop.f32.mrb[0].mxu0
        %2968 = vmatprep.mubr.bf16.mxu0 0
        %2969 = vmatmul.mubr.bf16.gmra.mrb[0].mxu0 %v2861
        %v2970 = vpop.f32.mrb[0].mxu0
        %v2971 = vadd.f32 0.0, %v2970
        %v2972 = vpop.f32.mrb[0].mxu0
        %v2973 = vpop.f32.mrb[0].mxu0
        %v2974 = vadd.f32 0.0, %v2973
        %v2975 = vpop.f32.mrb[0].mxu0
        %2976 = vmatprep.mubr.bf16.mxu0 0
        %2977 = vmatmul.mubr.bf16.gmra.mrb[0].mxu0 %v2864
        %v2978 = vpop.f32.mrb[0].mxu0
        %v2979 = vadd.f32 0.0, %v2978
        %v2980 = vpop.f32.mrb[0].mxu0
        %v2981 = vpop.f32.mrb[0].mxu0
        %v2982 = vadd.f32 0.0, %v2981
        %v2983 = vpop.f32.mrb[0].mxu0
        %2984 = vmatprep.mubr.bf16.mxu0 0
        %2985 = vmatmul.mubr.bf16.gmra.mrb[0].mxu0 %v2867
        %v2986 = vpop.f32.mrb[0].mxu0
        %v2987 = vadd.f32 0.0, %v2986
        %v2988 = vpop.f32.mrb[0].mxu0
        %v2989 = vpop.f32.mrb[0].mxu0
        %v2990 = vadd.f32 0.0, %v2989
        %v2991 = vpop.f32.mrb[0].mxu0
        %2992 = vmatprep.mubr.bf16.mxu0 0
        %2993 = vmatmul.mubr.bf16.gmra.mrb[0].mxu0 %v2870
        %v2994 = vpop.f32.mrb[0].mxu0
        %v2995 = vadd.f32 0.0, %v2994
        %v2996 = vpop.f32.mrb[0].mxu0
        %v2997 = vpop.f32.mrb[0].mxu0
        %v2998 = vadd.f32 0.0, %v2997
        %v2999 = vpop.f32.mrb[0].mxu0
        %3000 = vmatprep.mubr.bf16.mxu0 0
        %3001 = vmatmul.mubr.bf16.gmra.mrb[0].mxu0 %v2873
        %v3002 = vpop.f32.mrb[0].mxu0
        %v3003 = vadd.f32 0.0, %v3002
        %v3004 = vpop.f32.mrb[0].mxu0
        %v3005 = vpop.f32.mrb[0].mxu0
        %v3006 = vadd.f32 0.0, %v3005
        %v3007 = vpop.f32.mrb[0].mxu0
        %3008 = vmatprep.mubr.bf16.mxu0 0
        %3009 = vmatmul.mubr.bf16.gmra.mrb[0].mxu0 %v2876
        %v3010 = vpop.f32.mrb[0].mxu0
        %v3011 = vadd.f32 0.0, %v3010
        %v3012 = vpop.f32.mrb[0].mxu0
        %v3013 = vpop.f32.mrb[0].mxu0
        %v3014 = vadd.f32 0.0, %v3013
        %v3015 = vpop.f32.mrb[0].mxu0
        %3016 = vmatprep.mubr.bf16.mxu0 0
        %3017 = vmatmul.mubr.bf16.gmra.mrb[0].mxu0 %v2879
        %v3018 = vpop.f32.mrb[0].mxu0
        %v3019 = vadd.f32 0.0, %v3018
        %v3020 = vpop.f32.mrb[0].mxu0
        %v3021 = vpop.f32.mrb[0].mxu0
        %v3022 = vadd.f32 0.0, %v3021
        %v3023 = vpop.f32.mrb[0].mxu0
        %3024 = vmatprep.mubr.bf16.mxu0 0
        %3025 = vmatmul.mubr.bf16.gmra.mrb[0].mxu0 %v2882
        %v3026 = vpop.f32.mrb[0].mxu0
        %v3027 = vadd.f32 0.0, %v3026
        %v3028 = vpop.f32.mrb[0].mxu0
        %v3029 = vpop.f32.mrb[0].mxu0
        %v3030 = vadd.f32 0.0, %v3029
        %v3031 = vpop.f32.mrb[0].mxu0
        %3032 = vmatprep.mubr.bf16.mxu0 0
        %3033 = vmatmul.mubr.bf16.gmra.mrb[0].mxu0 %v2885
        %v3034 = vpop.f32.mrb[0].mxu0
        %v3035 = vadd.f32 0.0, %v3034
        %v3036 = vpop.f32.mrb[0].mxu0
        %v3037 = vpop.f32.mrb[0].mxu0
        %v3038 = vadd.f32 0.0, %v3037
        %v3039 = vpop.f32.mrb[0].mxu0
        %3040 = vmatprep.mubr.bf16.mxu0 0
        %3041 = vmatmul.mubr.bf16.gmra.mrb[0].mxu0 %v2888
        %v3042 = vpop.f32.mrb[0].mxu0
        %v3043 = vadd.f32 0.0, %v3042
        %v3044 = vpop.f32.mrb[0].mxu0
        %v3045 = vpop.f32.mrb[0].mxu0
        %v3046 = vadd.f32 0.0, %v3045
        %v3047 = vpop.f32.mrb[0].mxu0
        %3048 = vmatprep.mubr.bf16.mxu0 0
        %3049 = vmatmul.mubr.bf16.gmra.mrb[0].mxu0 %v2891
        %v3050 = vpop.f32.mrb[0].mxu0
        %v3051 = vadd.f32 0.0, %v3050
        %v3052 = vpop.f32.mrb[0].mxu0
        %v3053 = vpop.f32.mrb[0].mxu0
        %v3054 = vadd.f32 0.0, %v3053
        %v3055 = vpop.f32.mrb[0].mxu0
        %3056 = vdwg.mxu0
        %v3057 = vadd.f32 %v2312, %v2931
        %v3058 = vadd.f32 %v2313, %v2934
        %v3059 = vadd.f32 %v2314, %v2939
        %v3060 = vadd.f32 %v2315, %v2942
        %v3061 = vadd.f32 %v2316, %v2947
        %v3062 = vadd.f32 %v2317, %v2950
        %v3063 = vadd.f32 %v2318, %v2955
        %v3064 = vadd.f32 %v2319, %v2958
        %v3065 = vadd.f32 %v2320, %v2963
        %v3066 = vadd.f32 %v2321, %v2966
        %v3067 = vadd.f32 %v2322, %v2971
        %v3068 = vadd.f32 %v2323, %v2974
        %v3069 = vadd.f32 %v2324, %v2979
        %v3070 = vadd.f32 %v2325, %v2982
        %v3071 = vadd.f32 %v2326, %v2987
        %v3072 = vadd.f32 %v2327, %v2990
        %v3073 = vadd.f32 %v2328, %v2995
        %v3074 = vadd.f32 %v2329, %v2998
        %v3075 = vadd.f32 %v2330, %v3003
        %v3076 = vadd.f32 %v2331, %v3006
        %v3077 = vadd.f32 %v2332, %v3011
        %v3078 = vadd.f32 %v2333, %v3014
        %v3079 = vadd.f32 %v2334, %v3019
        %v3080 = vadd.f32 %v2335, %v3022
        %v3081 = vadd.f32 %v2336, %v3027
        %v3082 = vadd.f32 %v2337, %v3030
        %v3083 = vadd.f32 %v2338, %v3035
        %v3084 = vadd.f32 %v2339, %v3038
        %v3085 = vadd.f32 %v2340, %v3043
        %v3086 = vadd.f32 %v2341, %v3046
        %v3087 = vadd.f32 %v2342, %v3051
        %v3088 = vadd.f32 %v2343, %v3054
        %v3089 = vld [vmem:[%s1966] sm:$0xe]
        %v3090 = vld [vmem:[%s1966 + $0xc] sm:$0xe]
        %v3091 = vld [vmem:[%s1966 + $0x18] sm:$0xe]
        %v3092 = vld [vmem:[%s1966 + $0x24] sm:$0xe]
        %v3093 = vld [vmem:[%s1966 + $0x30] sm:$0xe]
        %v3094 = vld [vmem:[%s1966 + $0x3c] sm:$0xe]
        %v3095 = vld [vmem:[%s1966 + $0x48] sm:$0xe]
        %v3096 = vld [vmem:[%s1966 + $0x54] sm:$0xe]
        %v3097 = vld [vmem:[%s1966 + $0x60] sm:$0xe]
        %v3098 = vld [vmem:[%s1966 + $0x6c] sm:$0xe]
        %v3099 = vld [vmem:[%s1966 + $0x78] sm:$0xe]
        %v3100 = vld [vmem:[%s1966 + $0x84] sm:$0xe]
        %v3101 = vld [vmem:[%s1966 + $0x90] sm:$0xe]
        %v3102 = vld [vmem:[%s1966 + $0x9c] sm:$0xe]
        %v3103 = vld [vmem:[%s1966 + $0xa8] sm:$0xe]
        %v3104 = vld [vmem:[%s1966 + $0xb4] sm:$0xe]
        %v3153 = vrot.slane %v3089, 5
        %v3154 = vrot.slane %v3153, 4
        %v3155 = vrot.slane %v2345, 5
        %v3156 = vsel %vm1540, %v3154, %v3155
        %v3157 = vrot.slane %v3155, 4
        %v3158 = vrot.slane %v2346, 5
        %v3159 = vsel %vm1540, %v3157, %v3158
        %v3160 = vrot.slane %v3090, 5
        %v3161 = vrot.slane %v3160, 4
        %v3162 = vrot.slane %v2348, 5
        %v3163 = vsel %vm1540, %v3161, %v3162
        %v3164 = vrot.slane %v3162, 4
        %v3165 = vrot.slane %v2349, 5
        %v3166 = vsel %vm1540, %v3164, %v3165
        %v3167 = vrot.slane %v3091, 5
        %v3168 = vrot.slane %v3167, 4
        %v3169 = vrot.slane %v2351, 5
        %v3170 = vsel %vm1540, %v3168, %v3169
        %v3171 = vrot.slane %v3169, 4
        %v3172 = vrot.slane %v2352, 5
        %v3173 = vsel %vm1540, %v3171, %v3172
        %v3174 = vrot.slane %v3092, 5
        %v3175 = vrot.slane %v3174, 4
        %v3176 = vrot.slane %v2354, 5
        %v3177 = vsel %vm1540, %v3175, %v3176
        %v3178 = vrot.slane %v3176, 4
        %v3179 = vrot.slane %v2355, 5
        %v3180 = vsel %vm1540, %v3178, %v3179
        %v3181 = vrot.slane %v3093, 5
        %v3182 = vrot.slane %v3181, 4
        %v3183 = vrot.slane %v2357, 5
        %v3184 = vsel %vm1540, %v3182, %v3183
        %v3185 = vrot.slane %v3183, 4
        %v3186 = vrot.slane %v2358, 5
        %v3187 = vsel %vm1540, %v3185, %v3186
        %v3188 = vrot.slane %v3094, 5
        %v3189 = vrot.slane %v3188, 4
        %v3190 = vrot.slane %v2360, 5
        %v3191 = vsel %vm1540, %v3189, %v3190
        %v3192 = vrot.slane %v3190, 4
        %v3193 = vrot.slane %v2361, 5
        %v3194 = vsel %vm1540, %v3192, %v3193
        %v3195 = vrot.slane %v3095, 5
        %v3196 = vrot.slane %v3195, 4
        %v3197 = vrot.slane %v2363, 5
        %v3198 = vsel %vm1540, %v3196, %v3197
        %v3199 = vrot.slane %v3197, 4
        %v3200 = vrot.slane %v2364, 5
        %v3201 = vsel %vm1540, %v3199, %v3200
        %v3202 = vrot.slane %v3096, 5
        %v3203 = vrot.slane %v3202, 4
        %v3204 = vrot.slane %v2366, 5
        %v3205 = vsel %vm1540, %v3203, %v3204
        %v3206 = vrot.slane %v3204, 4
        %v3207 = vrot.slane %v2367, 5
        %v3208 = vsel %vm1540, %v3206, %v3207
        %v3209 = vrot.slane %v3097, 5
        %v3210 = vrot.slane %v3209, 4
        %v3211 = vrot.slane %v2369, 5
        %v3212 = vsel %vm1540, %v3210, %v3211
        %v3213 = vrot.slane %v3211, 4
        %v3214 = vrot.slane %v2370, 5
        %v3215 = vsel %vm1540, %v3213, %v3214
        %v3216 = vrot.slane %v3098, 5
        %v3217 = vrot.slane %v3216, 4
        %v3218 = vrot.slane %v2372, 5
        %v3219 = vsel %vm1540, %v3217, %v3218
        %v3220 = vrot.slane %v3218, 4
        %v3221 = vrot.slane %v2373, 5
        %v3222 = vsel %vm1540, %v3220, %v3221
        %v3223 = vrot.slane %v3099, 5
        %v3224 = vrot.slane %v3223, 4
        %v3225 = vrot.slane %v2375, 5
        %v3226 = vsel %vm1540, %v3224, %v3225
        %v3227 = vrot.slane %v3225, 4
        %v3228 = vrot.slane %v2376, 5
        %v3229 = vsel %vm1540, %v3227, %v3228
        %v3230 = vrot.slane %v3100, 5
        %v3231 = vrot.slane %v3230, 4
        %v3232 = vrot.slane %v2378, 5
        %v3233 = vsel %vm1540, %v3231, %v3232
        %v3234 = vrot.slane %v3232, 4
        %v3235 = vrot.slane %v2379, 5
        %v3236 = vsel %vm1540, %v3234, %v3235
        %v3237 = vrot.slane %v3101, 5
        %v3238 = vrot.slane %v3237, 4
        %v3239 = vrot.slane %v2381, 5
        %v3240 = vsel %vm1540, %v3238, %v3239
        %v3241 = vrot.slane %v3239, 4
        %v3242 = vrot.slane %v2382, 5
        %v3243 = vsel %vm1540, %v3241, %v3242
        %v3244 = vrot.slane %v3102, 5
        %v3245 = vrot.slane %v3244, 4
        %v3246 = vrot.slane %v2384, 5
        %v3247 = vsel %vm1540, %v3245, %v3246
        %v3248 = vrot.slane %v3246, 4
        %v3249 = vrot.slane %v2385, 5
        %v3250 = vsel %vm1540, %v3248, %v3249
        %v3251 = vrot.slane %v3103, 5
        %v3252 = vrot.slane %v3251, 4
        %v3253 = vrot.slane %v2387, 5
        %v3254 = vsel %vm1540, %v3252, %v3253
        %v3255 = vrot.slane %v3253, 4
        %v3256 = vrot.slane %v2388, 5
        %v3257 = vsel %vm1540, %v3255, %v3256
        %v3258 = vrot.slane %v3104, 5
        %v3259 = vrot.slane %v3258, 4
        %v3260 = vrot.slane %v2390, 5
        %v3261 = vsel %vm1540, %v3259, %v3260
        %v3262 = vrot.slane %v3260, 4
        %v3263 = vrot.slane %v2391, 5
        %v3264 = vsel %vm1540, %v3262, %v3263
        %s3265 = scalar_lea.vmem %s2, 100
        %v3266 = vld [vmem:[%s3265] sm:$0xf]
        %v3267 = vld [vmem:[%s3265 + $0x4] sm:$0xf]
        %v3268 = vld [vmem:[%s3265 + $0x8] sm:$0xf]
        %v3269 = vld [vmem:[%s3265 + $0xc] sm:$0xf]
        %v3270 = vld [vmem:[%s3265 + $0x10] sm:$0x3]
        %v3271 = vunpack.c.l.b16 %v3156
        %v3272 = vunpack.c.l.b16 %v3159
        %v3273 = vunpack.c.l.b16 %v3163
        %v3274 = vunpack.c.l.b16 %v3166
        %v3275 = vunpack.c.l.b16 %v3170
        %v3276 = vunpack.c.l.b16 %v3173
        %v3277 = vunpack.c.l.b16 %v3177
        %v3278 = vunpack.c.l.b16 %v3180
        %v3279 = vunpack.c.l.b16 %v3184
        %v3280 = vunpack.c.l.b16 %v3187
        %v3281 = vunpack.c.l.b16 %v3191
        %v3282 = vunpack.c.l.b16 %v3194
        %v3283 = vunpack.c.l.b16 %v3198
        %v3284 = vunpack.c.l.b16 %v3201
        %v3285 = vunpack.c.l.b16 %v3205
        %v3286 = vunpack.c.l.b16 %v3208
        %v3287 = vunpack.c.l.b16 %v3212
        %v3288 = vunpack.c.l.b16 %v3215
        %v3289 = vunpack.c.l.b16 %v3219
        %v3290 = vunpack.c.l.b16 %v3222
        %v3291 = vunpack.c.l.b16 %v3226
        %v3292 = vunpack.c.l.b16 %v3229
        %v3293 = vunpack.c.l.b16 %v3233
        %v3294 = vunpack.c.l.b16 %v3236
        %v3295 = vunpack.c.l.b16 %v3240
        %v3296 = vunpack.c.l.b16 %v3243
        %v3297 = vunpack.c.l.b16 %v3247
        %v3298 = vunpack.c.l.b16 %v3250
        %v3299 = vunpack.c.l.b16 %v3254
        %v3300 = vunpack.c.l.b16 %v3257
        %v3301 = vunpack.c.l.b16 %v3261
        %v3302 = vunpack.c.l.b16 %v3264
        %v3303 = vpack.c.b16 %v3272, %v3271
        %v3304 = vpack.c.b16 %v3274, %v3273
        %v3305 = vpack.c.b16 %v3276, %v3275
        %v3306 = vpack.c.b16 %v3278, %v3277
        %v3307 = vpack.c.b16 %v3280, %v3279
        %v3308 = vpack.c.b16 %v3282, %v3281
        %v3309 = vpack.c.b16 %v3284, %v3283
        %v3310 = vpack.c.b16 %v3286, %v3285
        %v3311 = vpack.c.b16 %v3288, %v3287
        %v3312 = vpack.c.b16 %v3290, %v3289
        %v3313 = vpack.c.b16 %v3292, %v3291
        %v3314 = vpack.c.b16 %v3294, %v3293
        %v3315 = vpack.c.b16 %v3296, %v3295
        %v3316 = vpack.c.b16 %v3298, %v3297
        %v3317 = vpack.c.b16 %v3300, %v3299
        %v3318 = vpack.c.b16 %v3302, %v3301
        %v3324 = vunpack.c.l.b16 %v3266
        %v3325 = vunpack.c.l.b16 %v3267
        %v3326 = vunpack.c.l.b16 %v3268
        %v3327 = vunpack.c.l.b16 %v3269
        %v3328 = vunpack.c.l.b16 %v3270
        %v3329 = vpack.c.b16 %v3325, %v3324
        %v3330 = vpack.c.b16 %v3327, %v3326
        %v3331 = vpack.c.b16 %v3328, %v3328
        %v3335 = vsel %vm969, %v3303, 0
        %v3338 = vsel %vm969, %v3304, 0
        %v3341 = vsel %vm969, %v3305, 0
        %v3344 = vsel %vm969, %v3306, 0
        %v3347 = vsel %vm969, %v3307, 0
        %v3350 = vsel %vm969, %v3308, 0
        %v3353 = vsel %vm969, %v3309, 0
        %v3356 = vsel %vm969, %v3310, 0
        %v3359 = vsel %vm969, %v3311, 0
        %v3362 = vsel %vm969, %v3312, 0
        %v3365 = vsel %vm969, %v3313, 0
        %v3368 = vsel %vm969, %v3314, 0
        %v3371 = vsel %vm969, %v3315, 0
        %v3374 = vsel %vm969, %v3316, 0
        %v3377 = vsel %vm969, %v3317, 0
        %v3380 = vsel %vm969, %v3318, 0
        %v3383 = vsel %vm1018, %v3331, 0
        %3385 = vmatprep.subr.bf16.mxu0 0
        %3386 = vmatpush1.bf16.msra.mxu0 %v3329
        %3387 = vmatprep.subr.bf16.mxu0 0
        %3388 = vmatpush1.bf16.msra.mxu0 %v3330
        %3389 = vmatprep.subr.bf16.mxu0 0
        %3390 = vmatpush1.bf16.msra.mxu0 %v3383
        %3391 = vmatprep.subr.bf16.mxu0 0
        %3392 = vmatpush1.bf16.msra.mxu0 0
        %3393 = vmatprep.subr.bf16.mxu0 0
        %3394 = vmatpush1.bf16.msra.mxu0 0
        %3395 = vmatprep.subr.bf16.mxu0 0
        %3396 = vmatpush1.bf16.msra.mxu0 0
        %3397 = vmatprep.subr.bf16.mxu0 0
        %3398 = vmatpush1.bf16.msra.mxu0 0
        %3399 = vmatprep.subr.bf16.mxu0 0
        %3400 = vmatpush1.bf16.msra.mxu0 0
        %3401 = vmatprep.subr.bf16.mxu0 0
        %3402 = vmatpush1.bf16.msra.mxu0 0
        %3403 = vmatprep.subr.bf16.mxu0 0
        %3404 = vmatpush1.bf16.msra.mxu0 0
        %3405 = vmatprep.subr.bf16.mxu0 0
        %3406 = vmatpush1.bf16.msra.mxu0 0
        %3407 = vmatprep.subr.bf16.mxu0 0
        %3408 = vmatpush1.bf16.msra.mxu0 0
        %3409 = vmatprep.subr.bf16.mxu0 0
        %3410 = vmatpush1.bf16.msra.mxu0 0
        %3411 = vmatprep.subr.bf16.mxu0 0
        %3412 = vmatpush1.bf16.msra.mxu0 0
        %3413 = vmatprep.subr.bf16.mxu0 0
        %3414 = vmatpush1.bf16.msra.mxu0 0
        %3415 = vmatprep.subr.bf16.mxu0 0
        %3416 = vmatpush1.bf16.msra.mxu0 0
        %3417 = vmatprep.mubr.bf16.mxu0 0
        %3418 = vmatmul.mubr.bf16.gmra.mrb[0].mxu0 %v3335
        %v3419 = vpop.f32.mrb[0].mxu0
        %v3420 = vadd.f32 0.0, %v3419
        %v3421 = vpop.f32.mrb[0].mxu0
        %v3422 = vpop.f32.mrb[0].mxu0
        %v3423 = vadd.f32 0.0, %v3422
        %v3424 = vpop.f32.mrb[0].mxu0
        %3425 = vmatprep.mubr.bf16.mxu0 0
        %3426 = vmatmul.mubr.bf16.gmra.mrb[0].mxu0 %v3338
        %v3427 = vpop.f32.mrb[0].mxu0
        %v3428 = vadd.f32 0.0, %v3427
        %v3429 = vpop.f32.mrb[0].mxu0
        %v3430 = vpop.f32.mrb[0].mxu0
        %v3431 = vadd.f32 0.0, %v3430
        %v3432 = vpop.f32.mrb[0].mxu0
        %3433 = vmatprep.mubr.bf16.mxu0 0
        %3434 = vmatmul.mubr.bf16.gmra.mrb[0].mxu0 %v3341
        %v3435 = vpop.f32.mrb[0].mxu0
        %v3436 = vadd.f32 0.0, %v3435
        %v3437 = vpop.f32.mrb[0].mxu0
        %v3438 = vpop.f32.mrb[0].mxu0
        %v3439 = vadd.f32 0.0, %v3438
        %v3440 = vpop.f32.mrb[0].mxu0
        %3441 = vmatprep.mubr.bf16.mxu0 0
        %3442 = vmatmul.mubr.bf16.gmra.mrb[0].mxu0 %v3344
        %v3443 = vpop.f32.mrb[0].mxu0
        %v3444 = vadd.f32 0.0, %v3443
        %v3445 = vpop.f32.mrb[0].mxu0
        %v3446 = vpop.f32.mrb[0].mxu0
        %v3447 = vadd.f32 0.0, %v3446
        %v3448 = vpop.f32.mrb[0].mxu0
        %3449 = vmatprep.mubr.bf16.mxu0 0
        %3450 = vmatmul.mubr.bf16.gmra.mrb[0].mxu0 %v3347
        %v3451 = vpop.f32.mrb[0].mxu0
        %v3452 = vadd.f32 0.0, %v3451
        %v3453 = vpop.f32.mrb[0].mxu0
        %v3454 = vpop.f32.mrb[0].mxu0
        %v3455 = vadd.f32 0.0, %v3454
        %v3456 = vpop.f32.mrb[0].mxu0
        %3457 = vmatprep.mubr.bf16.mxu0 0
        %3458 = vmatmul.mubr.bf16.gmra.mrb[0].mxu0 %v3350
        %v3459 = vpop.f32.mrb[0].mxu0
        %v3460 = vadd.f32 0.0, %v3459
        %v3461 = vpop.f32.mrb[0].mxu0
        %v3462 = vpop.f32.mrb[0].mxu0
        %v3463 = vadd.f32 0.0, %v3462
        %v3464 = vpop.f32.mrb[0].mxu0
        %3465 = vmatprep.mubr.bf16.mxu0 0
        %3466 = vmatmul.mubr.bf16.gmra.mrb[0].mxu0 %v3353
        %v3467 = vpop.f32.mrb[0].mxu0
        %v3468 = vadd.f32 0.0, %v3467
        %v3469 = vpop.f32.mrb[0].mxu0
        %v3470 = vpop.f32.mrb[0].mxu0
        %v3471 = vadd.f32 0.0, %v3470
        %v3472 = vpop.f32.mrb[0].mxu0
        %3473 = vmatprep.mubr.bf16.mxu0 0
        %3474 = vmatmul.mubr.bf16.gmra.mrb[0].mxu0 %v3356
        %v3475 = vpop.f32.mrb[0].mxu0
        %v3476 = vadd.f32 0.0, %v3475
        %v3477 = vpop.f32.mrb[0].mxu0
        %v3478 = vpop.f32.mrb[0].mxu0
        %v3479 = vadd.f32 0.0, %v3478
        %v3480 = vpop.f32.mrb[0].mxu0
        %3481 = vmatprep.mubr.bf16.mxu0 0
        %3482 = vmatmul.mubr.bf16.gmra.mrb[0].mxu0 %v3359
        %v3483 = vpop.f32.mrb[0].mxu0
        %v3484 = vadd.f32 0.0, %v3483
        %v3485 = vpop.f32.mrb[0].mxu0
        %v3486 = vpop.f32.mrb[0].mxu0
        %v3487 = vadd.f32 0.0, %v3486
        %v3488 = vpop.f32.mrb[0].mxu0
        %3489 = vmatprep.mubr.bf16.mxu0 0
        %3490 = vmatmul.mubr.bf16.gmra.mrb[0].mxu0 %v3362
        %v3491 = vpop.f32.mrb[0].mxu0
        %v3492 = vadd.f32 0.0, %v3491
        %v3493 = vpop.f32.mrb[0].mxu0
        %v3494 = vpop.f32.mrb[0].mxu0
        %v3495 = vadd.f32 0.0, %v3494
        %v3496 = vpop.f32.mrb[0].mxu0
        %3497 = vmatprep.mubr.bf16.mxu0 0
        %3498 = vmatmul.mubr.bf16.gmra.mrb[0].mxu0 %v3365
        %v3499 = vpop.f32.mrb[0].mxu0
        %v3500 = vadd.f32 0.0, %v3499
        %v3501 = vpop.f32.mrb[0].mxu0
        %v3502 = vpop.f32.mrb[0].mxu0
        %v3503 = vadd.f32 0.0, %v3502
        %v3504 = vpop.f32.mrb[0].mxu0
        %3505 = vmatprep.mubr.bf16.mxu0 0
        %3506 = vmatmul.mubr.bf16.gmra.mrb[0].mxu0 %v3368
        %v3507 = vpop.f32.mrb[0].mxu0
        %v3508 = vadd.f32 0.0, %v3507
        %v3509 = vpop.f32.mrb[0].mxu0
        %v3510 = vpop.f32.mrb[0].mxu0
        %v3511 = vadd.f32 0.0, %v3510
        %v3512 = vpop.f32.mrb[0].mxu0
        %3513 = vmatprep.mubr.bf16.mxu0 0
        %3514 = vmatmul.mubr.bf16.gmra.mrb[0].mxu0 %v3371
        %v3515 = vpop.f32.mrb[0].mxu0
        %v3516 = vadd.f32 0.0, %v3515
        %v3517 = vpop.f32.mrb[0].mxu0
        %v3518 = vpop.f32.mrb[0].mxu0
        %v3519 = vadd.f32 0.0, %v3518
        %v3520 = vpop.f32.mrb[0].mxu0
        %3521 = vmatprep.mubr.bf16.mxu0 0
        %3522 = vmatmul.mubr.bf16.gmra.mrb[0].mxu0 %v3374
        %v3523 = vpop.f32.mrb[0].mxu0
        %v3524 = vadd.f32 0.0, %v3523
        %v3525 = vpop.f32.mrb[0].mxu0
        %v3526 = vpop.f32.mrb[0].mxu0
        %v3527 = vadd.f32 0.0, %v3526
        %v3528 = vpop.f32.mrb[0].mxu0
        %3529 = vmatprep.mubr.bf16.mxu0 0
        %3530 = vmatmul.mubr.bf16.gmra.mrb[0].mxu0 %v3377
        %v3531 = vpop.f32.mrb[0].mxu0
        %v3532 = vadd.f32 0.0, %v3531
        %v3533 = vpop.f32.mrb[0].mxu0
        %v3534 = vpop.f32.mrb[0].mxu0
        %v3535 = vadd.f32 0.0, %v3534
        %v3536 = vpop.f32.mrb[0].mxu0
        %3537 = vmatprep.mubr.bf16.mxu0 0
        %3538 = vmatmul.mubr.bf16.gmra.mrb[0].mxu0 %v3380
        %v3539 = vpop.f32.mrb[0].mxu0
        %v3540 = vadd.f32 0.0, %v3539
        %v3541 = vpop.f32.mrb[0].mxu0
        %v3542 = vpop.f32.mrb[0].mxu0
        %v3543 = vadd.f32 0.0, %v3542
        %v3544 = vpop.f32.mrb[0].mxu0
        %3545 = vdwg.mxu0
        %v3546 = vadd.f32 %v3057, %v3420
        %v3547 = vadd.f32 %v3058, %v3423
        %v3548 = vadd.f32 %v3059, %v3428
        %v3549 = vadd.f32 %v3060, %v3431
        %v3550 = vadd.f32 %v3061, %v3436
        %v3551 = vadd.f32 %v3062, %v3439
        %v3552 = vadd.f32 %v3063, %v3444
        %v3553 = vadd.f32 %v3064, %v3447
        %v3554 = vadd.f32 %v3065, %v3452
        %v3555 = vadd.f32 %v3066, %v3455
        %v3556 = vadd.f32 %v3067, %v3460
        %v3557 = vadd.f32 %v3068, %v3463
        %v3558 = vadd.f32 %v3069, %v3468
        %v3559 = vadd.f32 %v3070, %v3471
        %v3560 = vadd.f32 %v3071, %v3476
        %v3561 = vadd.f32 %v3072, %v3479
        %v3562 = vadd.f32 %v3073, %v3484
        %v3563 = vadd.f32 %v3074, %v3487
        %v3564 = vadd.f32 %v3075, %v3492
        %v3565 = vadd.f32 %v3076, %v3495
        %v3566 = vadd.f32 %v3077, %v3500
        %v3567 = vadd.f32 %v3078, %v3503
        %v3568 = vadd.f32 %v3079, %v3508
        %v3569 = vadd.f32 %v3080, %v3511
        %v3570 = vadd.f32 %v3081, %v3516
        %v3571 = vadd.f32 %v3082, %v3519
        %v3572 = vadd.f32 %v3083, %v3524
        %v3573 = vadd.f32 %v3084, %v3527
        %v3574 = vadd.f32 %v3085, %v3532
        %v3575 = vadd.f32 %v3086, %v3535
        %v3576 = vadd.f32 %v3087, %v3540
        %v3577 = vadd.f32 %v3088, %v3543
        %s3578 = scalar_lea.vmem [#allocation2], 24
        %v3579 = vld [vmem:[%s3578] sm:$0xf]
        %v3580 = vld [vmem:[%s3578 + $0x4] sm:$0xf]
        %v3581 = vld [vmem:[%s3578 + $0xc] sm:$0xf]
        %v3582 = vld [vmem:[%s3578 + $0x10] sm:$0xf]
        %v3583 = vld [vmem:[%s3578 + $0x18] sm:$0xf]
        %v3584 = vld [vmem:[%s3578 + $0x1c] sm:$0xf]
        %v3585 = vld [vmem:[%s3578 + $0x24] sm:$0xf]
        %v3586 = vld [vmem:[%s3578 + $0x28] sm:$0xf]
        %v3587 = vld [vmem:[%s3578 + $0x30] sm:$0xf]
        %v3588 = vld [vmem:[%s3578 + $0x34] sm:$0xf]
        %v3589 = vld [vmem:[%s3578 + $0x3c] sm:$0xf]
        %v3590 = vld [vmem:[%s3578 + $0x40] sm:$0xf]
        %v3591 = vld [vmem:[%s3578 + $0x48] sm:$0xf]
        %v3592 = vld [vmem:[%s3578 + $0x4c] sm:$0xf]
        %v3593 = vld [vmem:[%s3578 + $0x54] sm:$0xf]
        %v3594 = vld [vmem:[%s3578 + $0x58] sm:$0xf]
        %v3595 = vld [vmem:[%s3578 + $0x60] sm:$0xf]
        %v3596 = vld [vmem:[%s3578 + $0x64] sm:$0xf]
        %v3597 = vld [vmem:[%s3578 + $0x6c] sm:$0xf]
        %v3598 = vld [vmem:[%s3578 + $0x70] sm:$0xf]
        %v3599 = vld [vmem:[%s3578 + $0x78] sm:$0xf]
        %v3600 = vld [vmem:[%s3578 + $0x7c] sm:$0xf]
        %v3601 = vld [vmem:[%s3578 + $0x84] sm:$0xf]
        %v3602 = vld [vmem:[%s3578 + $0x88] sm:$0xf]
        %v3603 = vld [vmem:[%s3578 + $0x90] sm:$0xf]
        %v3604 = vld [vmem:[%s3578 + $0x94] sm:$0xf]
        %v3605 = vld [vmem:[%s3578 + $0x9c] sm:$0xf]
        %v3606 = vld [vmem:[%s3578 + $0xa0] sm:$0xf]
        %v3607 = vld [vmem:[%s3578 + $0xa8] sm:$0xf]
        %v3608 = vld [vmem:[%s3578 + $0xac] sm:$0xf]
        %v3609 = vld [vmem:[%s3578 + $0xb4] sm:$0xf]
        %v3610 = vld [vmem:[%s3578 + $0xb8] sm:$0xf]
        %s3611 = scalar_lea.vmem %s2, 120
        %v3612 = vld [vmem:[%s3611] sm:$0xf]
        %v3613 = vld [vmem:[%s3611 + $0x4] sm:$0xf]
        %v3614 = vld [vmem:[%s3611 + $0x8] sm:$0xf]
        %v3615 = vld [vmem:[%s3611 + $0xc] sm:$0xf]
        %v3616 = vld [vmem:[%s3611 + $0x10] sm:$0x3]
        %v3649 = vunpack.c.l.b16 %v3579
        %v3650 = vunpack.c.l.b16 %v3580
        %v3651 = vunpack.c.l.b16 %v3581
        %v3652 = vunpack.c.l.b16 %v3582
        %v3653 = vunpack.c.l.b16 %v3583
        %v3654 = vunpack.c.l.b16 %v3584
        %v3655 = vunpack.c.l.b16 %v3585
        %v3656 = vunpack.c.l.b16 %v3586
        %v3657 = vunpack.c.l.b16 %v3587
        %v3658 = vunpack.c.l.b16 %v3588
        %v3659 = vunpack.c.l.b16 %v3589
        %v3660 = vunpack.c.l.b16 %v3590
        %v3661 = vunpack.c.l.b16 %v3591
        %v3662 = vunpack.c.l.b16 %v3592
        %v3663 = vunpack.c.l.b16 %v3593
        %v3664 = vunpack.c.l.b16 %v3594
        %v3665 = vunpack.c.l.b16 %v3595
        %v3666 = vunpack.c.l.b16 %v3596
        %v3667 = vunpack.c.l.b16 %v3597
        %v3668 = vunpack.c.l.b16 %v3598
        %v3669 = vunpack.c.l.b16 %v3599
        %v3670 = vunpack.c.l.b16 %v3600
        %v3671 = vunpack.c.l.b16 %v3601
        %v3672 = vunpack.c.l.b16 %v3602
        %v3673 = vunpack.c.l.b16 %v3603
        %v3674 = vunpack.c.l.b16 %v3604
        %v3675 = vunpack.c.l.b16 %v3605
        %v3676 = vunpack.c.l.b16 %v3606
        %v3677 = vunpack.c.l.b16 %v3607
        %v3678 = vunpack.c.l.b16 %v3608
        %v3679 = vunpack.c.l.b16 %v3609
        %v3680 = vunpack.c.l.b16 %v3610
        %v3681 = vpack.c.b16 %v3650, %v3649
        %v3682 = vpack.c.b16 %v3652, %v3651
        %v3683 = vpack.c.b16 %v3654, %v3653
        %v3684 = vpack.c.b16 %v3656, %v3655
        %v3685 = vpack.c.b16 %v3658, %v3657
        %v3686 = vpack.c.b16 %v3660, %v3659
        %v3687 = vpack.c.b16 %v3662, %v3661
        %v3688 = vpack.c.b16 %v3664, %v3663
        %v3689 = vpack.c.b16 %v3666, %v3665
        %v3690 = vpack.c.b16 %v3668, %v3667
        %v3691 = vpack.c.b16 %v3670, %v3669
        %v3692 = vpack.c.b16 %v3672, %v3671
        %v3693 = vpack.c.b16 %v3674, %v3673
        %v3694 = vpack.c.b16 %v3676, %v3675
        %v3695 = vpack.c.b16 %v3678, %v3677
        %v3696 = vpack.c.b16 %v3680, %v3679
        %v3702 = vunpack.c.l.b16 %v3612
        %v3703 = vunpack.c.l.b16 %v3613
        %v3704 = vunpack.c.l.b16 %v3614
        %v3705 = vunpack.c.l.b16 %v3615
        %v3706 = vunpack.c.l.b16 %v3616
        %v3707 = vpack.c.b16 %v3703, %v3702
        %v3708 = vpack.c.b16 %v3705, %v3704
        %v3709 = vpack.c.b16 %v3706, %v3706
        %v3713 = vsel %vm969, %v3681, 0
        %v3716 = vsel %vm969, %v3682, 0
        %v3719 = vsel %vm969, %v3683, 0
        %v3722 = vsel %vm969, %v3684, 0
        %v3725 = vsel %vm969, %v3685, 0
        %v3728 = vsel %vm969, %v3686, 0
        %v3731 = vsel %vm969, %v3687, 0
        %v3734 = vsel %vm969, %v3688, 0
        %v3737 = vsel %vm969, %v3689, 0
        %v3740 = vsel %vm969, %v3690, 0
        %v3743 = vsel %vm969, %v3691, 0
        %v3746 = vsel %vm969, %v3692, 0
        %v3749 = vsel %vm969, %v3693, 0
        %v3752 = vsel %vm969, %v3694, 0
        %v3755 = vsel %vm969, %v3695, 0
        %v3758 = vsel %vm969, %v3696, 0
        %v3761 = vsel %vm1018, %v3709, 0
        %3763 = vmatprep.subr.bf16.mxu0 0
        %3764 = vmatpush1.bf16.msra.mxu0 %v3707
        %3765 = vmatprep.subr.bf16.mxu0 0
        %3766 = vmatpush1.bf16.msra.mxu0 %v3708
        %3767 = vmatprep.subr.bf16.mxu0 0
        %3768 = vmatpush1.bf16.msra.mxu0 %v3761
        %3769 = vmatprep.subr.bf16.mxu0 0
        %3770 = vmatpush1.bf16.msra.mxu0 0
        %3771 = vmatprep.subr.bf16.mxu0 0
        %3772 = vmatpush1.bf16.msra.mxu0 0
        %3773 = vmatprep.subr.bf16.mxu0 0
        %3774 = vmatpush1.bf16.msra.mxu0 0
        %3775 = vmatprep.subr.bf16.mxu0 0
        %3776 = vmatpush1.bf16.msra.mxu0 0
        %3777 = vmatprep.subr.bf16.mxu0 0
        %3778 = vmatpush1.bf16.msra.mxu0 0
        %3779 = vmatprep.subr.bf16.mxu0 0
        %3780 = vmatpush1.bf16.msra.mxu0 0
        %3781 = vmatprep.subr.bf16.mxu0 0
        %3782 = vmatpush1.bf16.msra.mxu0 0
        %3783 = vmatprep.subr.bf16.mxu0 0
        %3784 = vmatpush1.bf16.msra.mxu0 0
        %3785 = vmatprep.subr.bf16.mxu0 0
        %3786 = vmatpush1.bf16.msra.mxu0 0
        %3787 = vmatprep.subr.bf16.mxu0 0
        %3788 = vmatpush1.bf16.msra.mxu0 0
        %3789 = vmatprep.subr.bf16.mxu0 0
        %3790 = vmatpush1.bf16.msra.mxu0 0
        %3791 = vmatprep.subr.bf16.mxu0 0
        %3792 = vmatpush1.bf16.msra.mxu0 0
        %3793 = vmatprep.subr.bf16.mxu0 0
        %3794 = vmatpush1.bf16.msra.mxu0 0
        %3795 = vmatprep.mubr.bf16.mxu0 0
        %3796 = vmatmul.mubr.bf16.gmra.mrb[0].mxu0 %v3713
        %v3797 = vpop.f32.mrb[0].mxu0
        %v3798 = vadd.f32 0.0, %v3797
        %v3799 = vpop.f32.mrb[0].mxu0
        %v3800 = vpop.f32.mrb[0].mxu0
        %v3801 = vadd.f32 0.0, %v3800
        %v3802 = vpop.f32.mrb[0].mxu0
        %3803 = vmatprep.mubr.bf16.mxu0 0
        %3804 = vmatmul.mubr.bf16.gmra.mrb[0].mxu0 %v3716
        %v3805 = vpop.f32.mrb[0].mxu0
        %v3806 = vadd.f32 0.0, %v3805
        %v3807 = vpop.f32.mrb[0].mxu0
        %v3808 = vpop.f32.mrb[0].mxu0
        %v3809 = vadd.f32 0.0, %v3808
        %v3810 = vpop.f32.mrb[0].mxu0
        %3811 = vmatprep.mubr.bf16.mxu0 0
        %3812 = vmatmul.mubr.bf16.gmra.mrb[0].mxu0 %v3719
        %v3813 = vpop.f32.mrb[0].mxu0
        %v3814 = vadd.f32 0.0, %v3813
        %v3815 = vpop.f32.mrb[0].mxu0
        %v3816 = vpop.f32.mrb[0].mxu0
        %v3817 = vadd.f32 0.0, %v3816
        %v3818 = vpop.f32.mrb[0].mxu0
        %3819 = vmatprep.mubr.bf16.mxu0 0
        %3820 = vmatmul.mubr.bf16.gmra.mrb[0].mxu0 %v3722
        %v3821 = vpop.f32.mrb[0].mxu0
        %v3822 = vadd.f32 0.0, %v3821
        %v3823 = vpop.f32.mrb[0].mxu0
        %v3824 = vpop.f32.mrb[0].mxu0
        %v3825 = vadd.f32 0.0, %v3824
        %v3826 = vpop.f32.mrb[0].mxu0
        %3827 = vmatprep.mubr.bf16.mxu0 0
        %3828 = vmatmul.mubr.bf16.gmra.mrb[0].mxu0 %v3725
        %v3829 = vpop.f32.mrb[0].mxu0
        %v3830 = vadd.f32 0.0, %v3829
        %v3831 = vpop.f32.mrb[0].mxu0
        %v3832 = vpop.f32.mrb[0].mxu0
        %v3833 = vadd.f32 0.0, %v3832
        %v3834 = vpop.f32.mrb[0].mxu0
        %3835 = vmatprep.mubr.bf16.mxu0 0
        %3836 = vmatmul.mubr.bf16.gmra.mrb[0].mxu0 %v3728
        %v3837 = vpop.f32.mrb[0].mxu0
        %v3838 = vadd.f32 0.0, %v3837
        %v3839 = vpop.f32.mrb[0].mxu0
        %v3840 = vpop.f32.mrb[0].mxu0
        %v3841 = vadd.f32 0.0, %v3840
        %v3842 = vpop.f32.mrb[0].mxu0
        %3843 = vmatprep.mubr.bf16.mxu0 0
        %3844 = vmatmul.mubr.bf16.gmra.mrb[0].mxu0 %v3731
        %v3845 = vpop.f32.mrb[0].mxu0
        %v3846 = vadd.f32 0.0, %v3845
        %v3847 = vpop.f32.mrb[0].mxu0
        %v3848 = vpop.f32.mrb[0].mxu0
        %v3849 = vadd.f32 0.0, %v3848
        %v3850 = vpop.f32.mrb[0].mxu0
        %3851 = vmatprep.mubr.bf16.mxu0 0
        %3852 = vmatmul.mubr.bf16.gmra.mrb[0].mxu0 %v3734
        %v3853 = vpop.f32.mrb[0].mxu0
        %v3854 = vadd.f32 0.0, %v3853
        %v3855 = vpop.f32.mrb[0].mxu0
        %v3856 = vpop.f32.mrb[0].mxu0
        %v3857 = vadd.f32 0.0, %v3856
        %v3858 = vpop.f32.mrb[0].mxu0
        %3859 = vmatprep.mubr.bf16.mxu0 0
        %3860 = vmatmul.mubr.bf16.gmra.mrb[0].mxu0 %v3737
        %v3861 = vpop.f32.mrb[0].mxu0
        %v3862 = vadd.f32 0.0, %v3861
        %v3863 = vpop.f32.mrb[0].mxu0
        %v3864 = vpop.f32.mrb[0].mxu0
        %v3865 = vadd.f32 0.0, %v3864
        %v3866 = vpop.f32.mrb[0].mxu0
        %3867 = vmatprep.mubr.bf16.mxu0 0
        %3868 = vmatmul.mubr.bf16.gmra.mrb[0].mxu0 %v3740
        %v3869 = vpop.f32.mrb[0].mxu0
        %v3870 = vadd.f32 0.0, %v3869
        %v3871 = vpop.f32.mrb[0].mxu0
        %v3872 = vpop.f32.mrb[0].mxu0
        %v3873 = vadd.f32 0.0, %v3872
        %v3874 = vpop.f32.mrb[0].mxu0
        %3875 = vmatprep.mubr.bf16.mxu0 0
        %3876 = vmatmul.mubr.bf16.gmra.mrb[0].mxu0 %v3743
        %v3877 = vpop.f32.mrb[0].mxu0
        %v3878 = vadd.f32 0.0, %v3877
        %v3879 = vpop.f32.mrb[0].mxu0
        %v3880 = vpop.f32.mrb[0].mxu0
        %v3881 = vadd.f32 0.0, %v3880
        %v3882 = vpop.f32.mrb[0].mxu0
        %3883 = vmatprep.mubr.bf16.mxu0 0
        %3884 = vmatmul.mubr.bf16.gmra.mrb[0].mxu0 %v3746
        %v3885 = vpop.f32.mrb[0].mxu0
        %v3886 = vadd.f32 0.0, %v3885
        %v3887 = vpop.f32.mrb[0].mxu0
        %v3888 = vpop.f32.mrb[0].mxu0
        %v3889 = vadd.f32 0.0, %v3888
        %v3890 = vpop.f32.mrb[0].mxu0
        %3891 = vmatprep.mubr.bf16.mxu0 0
        %3892 = vmatmul.mubr.bf16.gmra.mrb[0].mxu0 %v3749
        %v3893 = vpop.f32.mrb[0].mxu0
        %v3894 = vadd.f32 0.0, %v3893
        %v3895 = vpop.f32.mrb[0].mxu0
        %v3896 = vpop.f32.mrb[0].mxu0
        %v3897 = vadd.f32 0.0, %v3896
        %v3898 = vpop.f32.mrb[0].mxu0
        %3899 = vmatprep.mubr.bf16.mxu0 0
        %3900 = vmatmul.mubr.bf16.gmra.mrb[0].mxu0 %v3752
        %v3901 = vpop.f32.mrb[0].mxu0
        %v3902 = vadd.f32 0.0, %v3901
        %v3903 = vpop.f32.mrb[0].mxu0
        %v3904 = vpop.f32.mrb[0].mxu0
        %v3905 = vadd.f32 0.0, %v3904
        %v3906 = vpop.f32.mrb[0].mxu0
        %3907 = vmatprep.mubr.bf16.mxu0 0
        %3908 = vmatmul.mubr.bf16.gmra.mrb[0].mxu0 %v3755
        %v3909 = vpop.f32.mrb[0].mxu0
        %v3910 = vadd.f32 0.0, %v3909
        %v3911 = vpop.f32.mrb[0].mxu0
        %v3912 = vpop.f32.mrb[0].mxu0
        %v3913 = vadd.f32 0.0, %v3912
        %v3914 = vpop.f32.mrb[0].mxu0
        %3915 = vmatprep.mubr.bf16.mxu0 0
        %3916 = vmatmul.mubr.bf16.gmra.mrb[0].mxu0 %v3758
        %v3917 = vpop.f32.mrb[0].mxu0
        %v3918 = vadd.f32 0.0, %v3917
        %v3919 = vpop.f32.mrb[0].mxu0
        %v3920 = vpop.f32.mrb[0].mxu0
        %v3921 = vadd.f32 0.0, %v3920
        %v3922 = vpop.f32.mrb[0].mxu0
        %3923 = vdwg.mxu0
        %v3924 = vadd.f32 %v3546, %v3798
        %v3925 = vadd.f32 %v3547, %v3801
        %v3926 = vadd.f32 %v3548, %v3806
        %v3927 = vadd.f32 %v3549, %v3809
        %v3928 = vadd.f32 %v3550, %v3814
        %v3929 = vadd.f32 %v3551, %v3817
        %v3930 = vadd.f32 %v3552, %v3822
        %v3931 = vadd.f32 %v3553, %v3825
        %v3932 = vadd.f32 %v3554, %v3830
        %v3933 = vadd.f32 %v3555, %v3833
        %v3934 = vadd.f32 %v3556, %v3838
        %v3935 = vadd.f32 %v3557, %v3841
        %v3936 = vadd.f32 %v3558, %v3846
        %v3937 = vadd.f32 %v3559, %v3849
        %v3938 = vadd.f32 %v3560, %v3854
        %v3939 = vadd.f32 %v3561, %v3857
        %v3940 = vadd.f32 %v3562, %v3862
        %v3941 = vadd.f32 %v3563, %v3865
        %v3942 = vadd.f32 %v3564, %v3870
        %v3943 = vadd.f32 %v3565, %v3873
        %v3944 = vadd.f32 %v3566, %v3878
        %v3945 = vadd.f32 %v3567, %v3881
        %v3946 = vadd.f32 %v3568, %v3886
        %v3947 = vadd.f32 %v3569, %v3889
        %v3948 = vadd.f32 %v3570, %v3894
        %v3949 = vadd.f32 %v3571, %v3897
        %v3950 = vadd.f32 %v3572, %v3902
        %v3951 = vadd.f32 %v3573, %v3905
        %v3952 = vadd.f32 %v3574, %v3910
        %v3953 = vadd.f32 %v3575, %v3913
        %v3954 = vadd.f32 %v3576, %v3918
        %v3955 = vadd.f32 %v3577, %v3921
        %v3956 = vld [vmem:[%s3578] sm:$0xf]
        %v3957 = vld [vmem:[%s3578 + $0x4] sm:$0xf]
        %v3958 = vld [vmem:[%s3578 + $0x8] sm:$0x1]
        %v3959 = vld [vmem:[%s3578 + $0xc] sm:$0xf]
        %v3960 = vld [vmem:[%s3578 + $0x10] sm:$0xf]
        %v3961 = vld [vmem:[%s3578 + $0x14] sm:$0x1]
        %v3962 = vld [vmem:[%s3578 + $0x18] sm:$0xf]
        %v3963 = vld [vmem:[%s3578 + $0x1c] sm:$0xf]
        %v3964 = vld [vmem:[%s3578 + $0x20] sm:$0x1]
        %v3965 = vld [vmem:[%s3578 + $0x24] sm:$0xf]
        %v3966 = vld [vmem:[%s3578 + $0x28] sm:$0xf]
        %v3967 = vld [vmem:[%s3578 + $0x2c] sm:$0x1]
        %v3968 = vld [vmem:[%s3578 + $0x30] sm:$0xf]
        %v3969 = vld [vmem:[%s3578 + $0x34] sm:$0xf]
        %v3970 = vld [vmem:[%s3578 + $0x38] sm:$0x1]
        %v3971 = vld [vmem:[%s3578 + $0x3c] sm:$0xf]
        %v3972 = vld [vmem:[%s3578 + $0x40] sm:$0xf]
        %v3973 = vld [vmem:[%s3578 + $0x44] sm:$0x1]
        %v3974 = vld [vmem:[%s3578 + $0x48] sm:$0xf]
        %v3975 = vld [vmem:[%s3578 + $0x4c] sm:$0xf]
        %v3976 = vld [vmem:[%s3578 + $0x50] sm:$0x1]
        %v3977 = vld [vmem:[%s3578 + $0x54] sm:$0xf]
        %v3978 = vld [vmem:[%s3578 + $0x58] sm:$0xf]
        %v3979 = vld [vmem:[%s3578 + $0x5c] sm:$0x1]
        %v3980 = vld [vmem:[%s3578 + $0x60] sm:$0xf]
        %v3981 = vld [vmem:[%s3578 + $0x64] sm:$0xf]
        %v3982 = vld [vmem:[%s3578 + $0x68] sm:$0x1]
        %v3983 = vld [vmem:[%s3578 + $0x6c] sm:$0xf]
        %v3984 = vld [vmem:[%s3578 + $0x70] sm:$0xf]
        %v3985 = vld [vmem:[%s3578 + $0x74] sm:$0x1]
        %v3986 = vld [vmem:[%s3578 + $0x78] sm:$0xf]
        %v3987 = vld [vmem:[%s3578 + $0x7c] sm:$0xf]
        %v3988 = vld [vmem:[%s3578 + $0x80] sm:$0x1]
        %v3989 = vld [vmem:[%s3578 + $0x84] sm:$0xf]
        %v3990 = vld [vmem:[%s3578 + $0x88] sm:$0xf]
        %v3991 = vld [vmem:[%s3578 + $0x8c] sm:$0x1]
        %v3992 = vld [vmem:[%s3578 + $0x90] sm:$0xf]
        %v3993 = vld [vmem:[%s3578 + $0x94] sm:$0xf]
        %v3994 = vld [vmem:[%s3578 + $0x98] sm:$0x1]
        %v3995 = vld [vmem:[%s3578 + $0x9c] sm:$0xf]
        %v3996 = vld [vmem:[%s3578 + $0xa0] sm:$0xf]
        %v3997 = vld [vmem:[%s3578 + $0xa4] sm:$0x1]
        %v3998 = vld [vmem:[%s3578 + $0xa8] sm:$0xf]
        %v3999 = vld [vmem:[%s3578 + $0xac] sm:$0xf]
        %v4000 = vld [vmem:[%s3578 + $0xb0] sm:$0x1]
        %v4001 = vld [vmem:[%s3578 + $0xb4] sm:$0xf]
        %v4002 = vld [vmem:[%s3578 + $0xb8] sm:$0xf]
        %v4003 = vld [vmem:[%s3578 + $0xbc] sm:$0x1]
        %v4005 = vshrl.u32 %v3956, 16
        %v4007 = vrot.slane %v4005, 4
        %v4008 = vshll.u32 %v3956, 16
        %v4010 = vrot.slane %v4008, 5
        %v4011 = vor.u32 %v4007, %v4010
        %v4012 = vrot.slane %v4011, 4
        %v4014 = vshll.u32 %v3957, 16
        %v4016 = vrot.slane %v4014, 5
        %v4017 = vsel %vm515, %v4012, %v4016
        %v4018 = vshrl.u32 %v3957, 16
        %v4020 = vrot.slane %v4018, 4
        %v4021 = vor.u32 %v4020, %v4016
        %v4022 = vrot.slane %v4021, 4
        %v4024 = vshll.u32 %v3958, 16
        %v4026 = vrot.slane %v4024, 5
        %v4027 = vsel %vm515, %v4022, %v4026
        %v4029 = vshrl.u32 %v3959, 16
        %v4031 = vrot.slane %v4029, 4
        %v4032 = vshll.u32 %v3959, 16
        %v4034 = vrot.slane %v4032, 5
        %v4035 = vor.u32 %v4031, %v4034
        %v4036 = vrot.slane %v4035, 4
        %v4038 = vshll.u32 %v3960, 16
        %v4040 = vrot.slane %v4038, 5
        %v4041 = vsel %vm515, %v4036, %v4040
        %v4042 = vshrl.u32 %v3960, 16
        %v4044 = vrot.slane %v4042, 4
        %v4045 = vor.u32 %v4044, %v4040
        %v4046 = vrot.slane %v4045, 4
        %v4048 = vshll.u32 %v3961, 16
        %v4050 = vrot.slane %v4048, 5
        %v4051 = vsel %vm515, %v4046, %v4050
        %v4053 = vshrl.u32 %v3962, 16
        %v4055 = vrot.slane %v4053, 4
        %v4056 = vshll.u32 %v3962, 16
        %v4058 = vrot.slane %v4056, 5
        %v4059 = vor.u32 %v4055, %v4058
        %v4060 = vrot.slane %v4059, 4
        %v4062 = vshll.u32 %v3963, 16
        %v4064 = vrot.slane %v4062, 5
        %v4065 = vsel %vm515, %v4060, %v4064
        %v4066 = vshrl.u32 %v3963, 16
        %v4068 = vrot.slane %v4066, 4
        %v4069 = vor.u32 %v4068, %v4064
        %v4070 = vrot.slane %v4069, 4
        %v4072 = vshll.u32 %v3964, 16
        %v4074 = vrot.slane %v4072, 5
        %v4075 = vsel %vm515, %v4070, %v4074
        %v4077 = vshrl.u32 %v3965, 16
        %v4079 = vrot.slane %v4077, 4
        %v4080 = vshll.u32 %v3965, 16
        %v4082 = vrot.slane %v4080, 5
        %v4083 = vor.u32 %v4079, %v4082
        %v4084 = vrot.slane %v4083, 4
        %v4086 = vshll.u32 %v3966, 16
        %v4088 = vrot.slane %v4086, 5
        %v4089 = vsel %vm515, %v4084, %v4088
        %v4090 = vshrl.u32 %v3966, 16
        %v4092 = vrot.slane %v4090, 4
        %v4093 = vor.u32 %v4092, %v4088
        %v4094 = vrot.slane %v4093, 4
        %v4096 = vshll.u32 %v3967, 16
        %v4098 = vrot.slane %v4096, 5
        %v4099 = vsel %vm515, %v4094, %v4098
        %v4101 = vshrl.u32 %v3968, 16
        %v4103 = vrot.slane %v4101, 4
        %v4104 = vshll.u32 %v3968, 16
        %v4106 = vrot.slane %v4104, 5
        %v4107 = vor.u32 %v4103, %v4106
        %v4108 = vrot.slane %v4107, 4
        %v4110 = vshll.u32 %v3969, 16
        %v4112 = vrot.slane %v4110, 5
        %v4113 = vsel %vm515, %v4108, %v4112
        %v4114 = vshrl.u32 %v3969, 16
        %v4116 = vrot.slane %v4114, 4
        %v4117 = vor.u32 %v4116, %v4112
        %v4118 = vrot.slane %v4117, 4
        %v4120 = vshll.u32 %v3970, 16
        %v4122 = vrot.slane %v4120, 5
        %v4123 = vsel %vm515, %v4118, %v4122
        %v4125 = vshrl.u32 %v3971, 16
        %v4127 = vrot.slane %v4125, 4
        %v4128 = vshll.u32 %v3971, 16
        %v4130 = vrot.slane %v4128, 5
        %v4131 = vor.u32 %v4127, %v4130
        %v4132 = vrot.slane %v4131, 4
        %v4134 = vshll.u32 %v3972, 16
        %v4136 = vrot.slane %v4134, 5
        %v4137 = vsel %vm515, %v4132, %v4136
        %v4138 = vshrl.u32 %v3972, 16
        %v4140 = vrot.slane %v4138, 4
        %v4141 = vor.u32 %v4140, %v4136
        %v4142 = vrot.slane %v4141, 4
        %v4144 = vshll.u32 %v3973, 16
        %v4146 = vrot.slane %v4144, 5
        %v4147 = vsel %vm515, %v4142, %v4146
        %v4149 = vshrl.u32 %v3974, 16
        %v4151 = vrot.slane %v4149, 4
        %v4152 = vshll.u32 %v3974, 16
        %v4154 = vrot.slane %v4152, 5
        %v4155 = vor.u32 %v4151, %v4154
        %v4156 = vrot.slane %v4155, 4
        %v4158 = vshll.u32 %v3975, 16
        %v4160 = vrot.slane %v4158, 5
        %v4161 = vsel %vm515, %v4156, %v4160
        %v4162 = vshrl.u32 %v3975, 16
        %v4164 = vrot.slane %v4162, 4
        %v4165 = vor.u32 %v4164, %v4160
        %v4166 = vrot.slane %v4165, 4
        %v4168 = vshll.u32 %v3976, 16
        %v4170 = vrot.slane %v4168, 5
        %v4171 = vsel %vm515, %v4166, %v4170
        %v4173 = vshrl.u32 %v3977, 16
        %v4175 = vrot.slane %v4173, 4
        %v4176 = vshll.u32 %v3977, 16
        %v4178 = vrot.slane %v4176, 5
        %v4179 = vor.u32 %v4175, %v4178
        %v4180 = vrot.slane %v4179, 4
        %v4182 = vshll.u32 %v3978, 16
        %v4184 = vrot.slane %v4182, 5
        %v4185 = vsel %vm515, %v4180, %v4184
        %v4186 = vshrl.u32 %v3978, 16
        %v4188 = vrot.slane %v4186, 4
        %v4189 = vor.u32 %v4188, %v4184
        %v4190 = vrot.slane %v4189, 4
        %v4192 = vshll.u32 %v3979, 16
        %v4194 = vrot.slane %v4192, 5
        %v4195 = vsel %vm515, %v4190, %v4194
        %v4197 = vshrl.u32 %v3980, 16
        %v4199 = vrot.slane %v4197, 4
        %v4200 = vshll.u32 %v3980, 16
        %v4202 = vrot.slane %v4200, 5
        %v4203 = vor.u32 %v4199, %v4202
        %v4204 = vrot.slane %v4203, 4
        %v4206 = vshll.u32 %v3981, 16
        %v4208 = vrot.slane %v4206, 5
        %v4209 = vsel %vm515, %v4204, %v4208
        %v4210 = vshrl.u32 %v3981, 16
        %v4212 = vrot.slane %v4210, 4
        %v4213 = vor.u32 %v4212, %v4208
        %v4214 = vrot.slane %v4213, 4
        %v4216 = vshll.u32 %v3982, 16
        %v4218 = vrot.slane %v4216, 5
        %v4219 = vsel %vm515, %v4214, %v4218
        %v4221 = vshrl.u32 %v3983, 16
        %v4223 = vrot.slane %v4221, 4
        %v4224 = vshll.u32 %v3983, 16
        %v4226 = vrot.slane %v4224, 5
        %v4227 = vor.u32 %v4223, %v4226
        %v4228 = vrot.slane %v4227, 4
        %v4230 = vshll.u32 %v3984, 16
        %v4232 = vrot.slane %v4230, 5
        %v4233 = vsel %vm515, %v4228, %v4232
        %v4234 = vshrl.u32 %v3984, 16
        %v4236 = vrot.slane %v4234, 4
        %v4237 = vor.u32 %v4236, %v4232
        %v4238 = vrot.slane %v4237, 4
        %v4240 = vshll.u32 %v3985, 16
        %v4242 = vrot.slane %v4240, 5
        %v4243 = vsel %vm515, %v4238, %v4242
        %v4245 = vshrl.u32 %v3986, 16
        %v4247 = vrot.slane %v4245, 4
        %v4248 = vshll.u32 %v3986, 16
        %v4250 = vrot.slane %v4248, 5
        %v4251 = vor.u32 %v4247, %v4250
        %v4252 = vrot.slane %v4251, 4
        %v4254 = vshll.u32 %v3987, 16
        %v4256 = vrot.slane %v4254, 5
        %v4257 = vsel %vm515, %v4252, %v4256
        %v4258 = vshrl.u32 %v3987, 16
        %v4260 = vrot.slane %v4258, 4
        %v4261 = vor.u32 %v4260, %v4256
        %v4262 = vrot.slane %v4261, 4
        %v4264 = vshll.u32 %v3988, 16
        %v4266 = vrot.slane %v4264, 5
        %v4267 = vsel %vm515, %v4262, %v4266
        %v4269 = vshrl.u32 %v3989, 16
        %v4271 = vrot.slane %v4269, 4
        %v4272 = vshll.u32 %v3989, 16
        %v4274 = vrot.slane %v4272, 5
        %v4275 = vor.u32 %v4271, %v4274
        %v4276 = vrot.slane %v4275, 4
        %v4278 = vshll.u32 %v3990, 16
        %v4280 = vrot.slane %v4278, 5
        %v4281 = vsel %vm515, %v4276, %v4280
        %v4282 = vshrl.u32 %v3990, 16
        %v4284 = vrot.slane %v4282, 4
        %v4285 = vor.u32 %v4284, %v4280
        %v4286 = vrot.slane %v4285, 4
        %v4288 = vshll.u32 %v3991, 16
        %v4290 = vrot.slane %v4288, 5
        %v4291 = vsel %vm515, %v4286, %v4290
        %v4293 = vshrl.u32 %v3992, 16
        %v4295 = vrot.slane %v4293, 4
        %v4296 = vshll.u32 %v3992, 16
        %v4298 = vrot.slane %v4296, 5
        %v4299 = vor.u32 %v4295, %v4298
        %v4300 = vrot.slane %v4299, 4
        %v4302 = vshll.u32 %v3993, 16
        %v4304 = vrot.slane %v4302, 5
        %v4305 = vsel %vm515, %v4300, %v4304
        %v4306 = vshrl.u32 %v3993, 16
        %v4308 = vrot.slane %v4306, 4
        %v4309 = vor.u32 %v4308, %v4304
        %v4310 = vrot.slane %v4309, 4
        %v4312 = vshll.u32 %v3994, 16
        %v4314 = vrot.slane %v4312, 5
        %v4315 = vsel %vm515, %v4310, %v4314
        %v4317 = vshrl.u32 %v3995, 16
        %v4319 = vrot.slane %v4317, 4
        %v4320 = vshll.u32 %v3995, 16
        %v4322 = vrot.slane %v4320, 5
        %v4323 = vor.u32 %v4319, %v4322
        %v4324 = vrot.slane %v4323, 4
        %v4326 = vshll.u32 %v3996, 16
        %v4328 = vrot.slane %v4326, 5
        %v4329 = vsel %vm515, %v4324, %v4328
        %v4330 = vshrl.u32 %v3996, 16
        %v4332 = vrot.slane %v4330, 4
        %v4333 = vor.u32 %v4332, %v4328
        %v4334 = vrot.slane %v4333, 4
        %v4336 = vshll.u32 %v3997, 16
        %v4338 = vrot.slane %v4336, 5
        %v4339 = vsel %vm515, %v4334, %v4338
        %v4341 = vshrl.u32 %v3998, 16
        %v4343 = vrot.slane %v4341, 4
        %v4344 = vshll.u32 %v3998, 16
        %v4346 = vrot.slane %v4344, 5
        %v4347 = vor.u32 %v4343, %v4346
        %v4348 = vrot.slane %v4347, 4
        %v4350 = vshll.u32 %v3999, 16
        %v4352 = vrot.slane %v4350, 5
        %v4353 = vsel %vm515, %v4348, %v4352
        %v4354 = vshrl.u32 %v3999, 16
        %v4356 = vrot.slane %v4354, 4
        %v4357 = vor.u32 %v4356, %v4352
        %v4358 = vrot.slane %v4357, 4
        %v4360 = vshll.u32 %v4000, 16
        %v4362 = vrot.slane %v4360, 5
        %v4363 = vsel %vm515, %v4358, %v4362
        %v4365 = vshrl.u32 %v4001, 16
        %v4367 = vrot.slane %v4365, 4
        %v4368 = vshll.u32 %v4001, 16
        %v4370 = vrot.slane %v4368, 5
        %v4371 = vor.u32 %v4367, %v4370
        %v4372 = vrot.slane %v4371, 4
        %v4374 = vshll.u32 %v4002, 16
        %v4376 = vrot.slane %v4374, 5
        %v4377 = vsel %vm515, %v4372, %v4376
        %v4378 = vshrl.u32 %v4002, 16
        %v4380 = vrot.slane %v4378, 4
        %v4381 = vor.u32 %v4380, %v4376
        %v4382 = vrot.slane %v4381, 4
        %v4384 = vshll.u32 %v4003, 16
        %v4386 = vrot.slane %v4384, 5
        %v4387 = vsel %vm515, %v4382, %v4386
        %s4388 = scalar_lea.vmem %s2, 140
        %v4389 = vld [vmem:[%s4388] sm:$0xf]
        %v4390 = vld [vmem:[%s4388 + $0x4] sm:$0xf]
        %v4391 = vld [vmem:[%s4388 + $0x8] sm:$0xf]
        %v4392 = vld [vmem:[%s4388 + $0xc] sm:$0xf]
        %v4393 = vld [vmem:[%s4388 + $0x10] sm:$0x3]
        %v4394 = vunpack.c.l.b16 %v4017
        %v4395 = vunpack.c.l.b16 %v4027
        %v4396 = vunpack.c.l.b16 %v4041
        %v4397 = vunpack.c.l.b16 %v4051
        %v4398 = vunpack.c.l.b16 %v4065
        %v4399 = vunpack.c.l.b16 %v4075
        %v4400 = vunpack.c.l.b16 %v4089
        %v4401 = vunpack.c.l.b16 %v4099
        %v4402 = vunpack.c.l.b16 %v4113
        %v4403 = vunpack.c.l.b16 %v4123
        %v4404 = vunpack.c.l.b16 %v4137
        %v4405 = vunpack.c.l.b16 %v4147
        %v4406 = vunpack.c.l.b16 %v4161
        %v4407 = vunpack.c.l.b16 %v4171
        %v4408 = vunpack.c.l.b16 %v4185
        %v4409 = vunpack.c.l.b16 %v4195
        %v4410 = vunpack.c.l.b16 %v4209
        %v4411 = vunpack.c.l.b16 %v4219
        %v4412 = vunpack.c.l.b16 %v4233
        %v4413 = vunpack.c.l.b16 %v4243
        %v4414 = vunpack.c.l.b16 %v4257
        %v4415 = vunpack.c.l.b16 %v4267
        %v4416 = vunpack.c.l.b16 %v4281
        %v4417 = vunpack.c.l.b16 %v4291
        %v4418 = vunpack.c.l.b16 %v4305
        %v4419 = vunpack.c.l.b16 %v4315
        %v4420 = vunpack.c.l.b16 %v4329
        %v4421 = vunpack.c.l.b16 %v4339
        %v4422 = vunpack.c.l.b16 %v4353
        %v4423 = vunpack.c.l.b16 %v4363
        %v4424 = vunpack.c.l.b16 %v4377
        %v4425 = vunpack.c.l.b16 %v4387
        %v4426 = vpack.c.b16 %v4395, %v4394
        %v4427 = vpack.c.b16 %v4397, %v4396
        %v4428 = vpack.c.b16 %v4399, %v4398
        %v4429 = vpack.c.b16 %v4401, %v4400
        %v4430 = vpack.c.b16 %v4403, %v4402
        %v4431 = vpack.c.b16 %v4405, %v4404
        %v4432 = vpack.c.b16 %v4407, %v4406
        %v4433 = vpack.c.b16 %v4409, %v4408
        %v4434 = vpack.c.b16 %v4411, %v4410
        %v4435 = vpack.c.b16 %v4413, %v4412
        %v4436 = vpack.c.b16 %v4415, %v4414
        %v4437 = vpack.c.b16 %v4417, %v4416
        %v4438 = vpack.c.b16 %v4419, %v4418
        %v4439 = vpack.c.b16 %v4421, %v4420
        %v4440 = vpack.c.b16 %v4423, %v4422
        %v4441 = vpack.c.b16 %v4425, %v4424
        %v4447 = vunpack.c.l.b16 %v4389
        %v4448 = vunpack.c.l.b16 %v4390
        %v4449 = vunpack.c.l.b16 %v4391
        %v4450 = vunpack.c.l.b16 %v4392
        %v4451 = vunpack.c.l.b16 %v4393
        %v4452 = vpack.c.b16 %v4448, %v4447
        %v4453 = vpack.c.b16 %v4450, %v4449
        %v4454 = vpack.c.b16 %v4451, %v4451
        %v4458 = vsel %vm969, %v4426, 0
        %v4461 = vsel %vm969, %v4427, 0
        %v4464 = vsel %vm969, %v4428, 0
        %v4467 = vsel %vm969, %v4429, 0
        %v4470 = vsel %vm969, %v4430, 0
        %v4473 = vsel %vm969, %v4431, 0
        %v4476 = vsel %vm969, %v4432, 0
        %v4479 = vsel %vm969, %v4433, 0
        %v4482 = vsel %vm969, %v4434, 0
        %v4485 = vsel %vm969, %v4435, 0
        %v4488 = vsel %vm969, %v4436, 0
        %v4491 = vsel %vm969, %v4437, 0
        %v4494 = vsel %vm969, %v4438, 0
        %v4497 = vsel %vm969, %v4439, 0
        %v4500 = vsel %vm969, %v4440, 0
        %v4503 = vsel %vm969, %v4441, 0
        %v4506 = vsel %vm1018, %v4454, 0
        %4508 = vmatprep.subr.bf16.mxu0 0
        %4509 = vmatpush1.bf16.msra.mxu0 %v4452
        %4510 = vmatprep.subr.bf16.mxu0 0
        %4511 = vmatpush1.bf16.msra.mxu0 %v4453
        %4512 = vmatprep.subr.bf16.mxu0 0
        %4513 = vmatpush1.bf16.msra.mxu0 %v4506
        %4514 = vmatprep.subr.bf16.mxu0 0
        %4515 = vmatpush1.bf16.msra.mxu0 0
        %4516 = vmatprep.subr.bf16.mxu0 0
        %4517 = vmatpush1.bf16.msra.mxu0 0
        %4518 = vmatprep.subr.bf16.mxu0 0
        %4519 = vmatpush1.bf16.msra.mxu0 0
        %4520 = vmatprep.subr.bf16.mxu0 0
        %4521 = vmatpush1.bf16.msra.mxu0 0
        %4522 = vmatprep.subr.bf16.mxu0 0
        %4523 = vmatpush1.bf16.msra.mxu0 0
        %4524 = vmatprep.subr.bf16.mxu0 0
        %4525 = vmatpush1.bf16.msra.mxu0 0
        %4526 = vmatprep.subr.bf16.mxu0 0
        %4527 = vmatpush1.bf16.msra.mxu0 0
        %4528 = vmatprep.subr.bf16.mxu0 0
        %4529 = vmatpush1.bf16.msra.mxu0 0
        %4530 = vmatprep.subr.bf16.mxu0 0
        %4531 = vmatpush1.bf16.msra.mxu0 0
        %4532 = vmatprep.subr.bf16.mxu0 0
        %4533 = vmatpush1.bf16.msra.mxu0 0
        %4534 = vmatprep.subr.bf16.mxu0 0
        %4535 = vmatpush1.bf16.msra.mxu0 0
        %4536 = vmatprep.subr.bf16.mxu0 0
        %4537 = vmatpush1.bf16.msra.mxu0 0
        %4538 = vmatprep.subr.bf16.mxu0 0
        %4539 = vmatpush1.bf16.msra.mxu0 0
        %4540 = vmatprep.mubr.bf16.mxu0 0
        %4541 = vmatmul.mubr.bf16.gmra.mrb[0].mxu0 %v4458
        %v4542 = vpop.f32.mrb[0].mxu0
        %v4543 = vadd.f32 0.0, %v4542
        %v4544 = vpop.f32.mrb[0].mxu0
        %v4545 = vpop.f32.mrb[0].mxu0
        %v4546 = vadd.f32 0.0, %v4545
        %v4547 = vpop.f32.mrb[0].mxu0
        %4548 = vmatprep.mubr.bf16.mxu0 0
        %4549 = vmatmul.mubr.bf16.gmra.mrb[0].mxu0 %v4461
        %v4550 = vpop.f32.mrb[0].mxu0
        %v4551 = vadd.f32 0.0, %v4550
        %v4552 = vpop.f32.mrb[0].mxu0
        %v4553 = vpop.f32.mrb[0].mxu0
        %v4554 = vadd.f32 0.0, %v4553
        %v4555 = vpop.f32.mrb[0].mxu0
        %4556 = vmatprep.mubr.bf16.mxu0 0
        %4557 = vmatmul.mubr.bf16.gmra.mrb[0].mxu0 %v4464
        %v4558 = vpop.f32.mrb[0].mxu0
        %v4559 = vadd.f32 0.0, %v4558
        %v4560 = vpop.f32.mrb[0].mxu0
        %v4561 = vpop.f32.mrb[0].mxu0
        %v4562 = vadd.f32 0.0, %v4561
        %v4563 = vpop.f32.mrb[0].mxu0
        %4564 = vmatprep.mubr.bf16.mxu0 0
        %4565 = vmatmul.mubr.bf16.gmra.mrb[0].mxu0 %v4467
        %v4566 = vpop.f32.mrb[0].mxu0
        %v4567 = vadd.f32 0.0, %v4566
        %v4568 = vpop.f32.mrb[0].mxu0
        %v4569 = vpop.f32.mrb[0].mxu0
        %v4570 = vadd.f32 0.0, %v4569
        %v4571 = vpop.f32.mrb[0].mxu0
        %4572 = vmatprep.mubr.bf16.mxu0 0
        %4573 = vmatmul.mubr.bf16.gmra.mrb[0].mxu0 %v4470
        %v4574 = vpop.f32.mrb[0].mxu0
        %v4575 = vadd.f32 0.0, %v4574
        %v4576 = vpop.f32.mrb[0].mxu0
        %v4577 = vpop.f32.mrb[0].mxu0
        %v4578 = vadd.f32 0.0, %v4577
        %v4579 = vpop.f32.mrb[0].mxu0
        %4580 = vmatprep.mubr.bf16.mxu0 0
        %4581 = vmatmul.mubr.bf16.gmra.mrb[0].mxu0 %v4473
        %v4582 = vpop.f32.mrb[0].mxu0
        %v4583 = vadd.f32 0.0, %v4582
        %v4584 = vpop.f32.mrb[0].mxu0
        %v4585 = vpop.f32.mrb[0].mxu0
        %v4586 = vadd.f32 0.0, %v4585
        %v4587 = vpop.f32.mrb[0].mxu0
        %4588 = vmatprep.mubr.bf16.mxu0 0
        %4589 = vmatmul.mubr.bf16.gmra.mrb[0].mxu0 %v4476
        %v4590 = vpop.f32.mrb[0].mxu0
        %v4591 = vadd.f32 0.0, %v4590
        %v4592 = vpop.f32.mrb[0].mxu0
        %v4593 = vpop.f32.mrb[0].mxu0
        %v4594 = vadd.f32 0.0, %v4593
        %v4595 = vpop.f32.mrb[0].mxu0
        %4596 = vmatprep.mubr.bf16.mxu0 0
        %4597 = vmatmul.mubr.bf16.gmra.mrb[0].mxu0 %v4479
        %v4598 = vpop.f32.mrb[0].mxu0
        %v4599 = vadd.f32 0.0, %v4598
        %v4600 = vpop.f32.mrb[0].mxu0
        %v4601 = vpop.f32.mrb[0].mxu0
        %v4602 = vadd.f32 0.0, %v4601
        %v4603 = vpop.f32.mrb[0].mxu0
        %4604 = vmatprep.mubr.bf16.mxu0 0
        %4605 = vmatmul.mubr.bf16.gmra.mrb[0].mxu0 %v4482
        %v4606 = vpop.f32.mrb[0].mxu0
        %v4607 = vadd.f32 0.0, %v4606
        %v4608 = vpop.f32.mrb[0].mxu0
        %v4609 = vpop.f32.mrb[0].mxu0
        %v4610 = vadd.f32 0.0, %v4609
        %v4611 = vpop.f32.mrb[0].mxu0
        %4612 = vmatprep.mubr.bf16.mxu0 0
        %4613 = vmatmul.mubr.bf16.gmra.mrb[0].mxu0 %v4485
        %v4614 = vpop.f32.mrb[0].mxu0
        %v4615 = vadd.f32 0.0, %v4614
        %v4616 = vpop.f32.mrb[0].mxu0
        %v4617 = vpop.f32.mrb[0].mxu0
        %v4618 = vadd.f32 0.0, %v4617
        %v4619 = vpop.f32.mrb[0].mxu0
        %4620 = vmatprep.mubr.bf16.mxu0 0
        %4621 = vmatmul.mubr.bf16.gmra.mrb[0].mxu0 %v4488
        %v4622 = vpop.f32.mrb[0].mxu0
        %v4623 = vadd.f32 0.0, %v4622
        %v4624 = vpop.f32.mrb[0].mxu0
        %v4625 = vpop.f32.mrb[0].mxu0
        %v4626 = vadd.f32 0.0, %v4625
        %v4627 = vpop.f32.mrb[0].mxu0
        %4628 = vmatprep.mubr.bf16.mxu0 0
        %4629 = vmatmul.mubr.bf16.gmra.mrb[0].mxu0 %v4491
        %v4630 = vpop.f32.mrb[0].mxu0
        %v4631 = vadd.f32 0.0, %v4630
        %v4632 = vpop.f32.mrb[0].mxu0
        %v4633 = vpop.f32.mrb[0].mxu0
        %v4634 = vadd.f32 0.0, %v4633
        %v4635 = vpop.f32.mrb[0].mxu0
        %4636 = vmatprep.mubr.bf16.mxu0 0
        %4637 = vmatmul.mubr.bf16.gmra.mrb[0].mxu0 %v4494
        %v4638 = vpop.f32.mrb[0].mxu0
        %v4639 = vadd.f32 0.0, %v4638
        %v4640 = vpop.f32.mrb[0].mxu0
        %v4641 = vpop.f32.mrb[0].mxu0
        %v4642 = vadd.f32 0.0, %v4641
        %v4643 = vpop.f32.mrb[0].mxu0
        %4644 = vmatprep.mubr.bf16.mxu0 0
        %4645 = vmatmul.mubr.bf16.gmra.mrb[0].mxu0 %v4497
        %v4646 = vpop.f32.mrb[0].mxu0
        %v4647 = vadd.f32 0.0, %v4646
        %v4648 = vpop.f32.mrb[0].mxu0
        %v4649 = vpop.f32.mrb[0].mxu0
        %v4650 = vadd.f32 0.0, %v4649
        %v4651 = vpop.f32.mrb[0].mxu0
        %4652 = vmatprep.mubr.bf16.mxu0 0
        %4653 = vmatmul.mubr.bf16.gmra.mrb[0].mxu0 %v4500
        %v4654 = vpop.f32.mrb[0].mxu0
        %v4655 = vadd.f32 0.0, %v4654
        %v4656 = vpop.f32.mrb[0].mxu0
        %v4657 = vpop.f32.mrb[0].mxu0
        %v4658 = vadd.f32 0.0, %v4657
        %v4659 = vpop.f32.mrb[0].mxu0
        %4660 = vmatprep.mubr.bf16.mxu0 0
        %4661 = vmatmul.mubr.bf16.gmra.mrb[0].mxu0 %v4503
        %v4662 = vpop.f32.mrb[0].mxu0
        %v4663 = vadd.f32 0.0, %v4662
        %v4664 = vpop.f32.mrb[0].mxu0
        %v4665 = vpop.f32.mrb[0].mxu0
        %v4666 = vadd.f32 0.0, %v4665
        %v4667 = vpop.f32.mrb[0].mxu0
        %4668 = vdwg.mxu0
        %v4669 = vadd.f32 %v3924, %v4543
        %v4670 = vadd.f32 %v3925, %v4546
        %v4671 = vadd.f32 %v3926, %v4551
        %v4672 = vadd.f32 %v3927, %v4554
        %v4673 = vadd.f32 %v3928, %v4559
        %v4674 = vadd.f32 %v3929, %v4562
        %v4675 = vadd.f32 %v3930, %v4567
        %v4676 = vadd.f32 %v3931, %v4570
        %v4677 = vadd.f32 %v3932, %v4575
        %v4678 = vadd.f32 %v3933, %v4578
        %v4679 = vadd.f32 %v3934, %v4583
        %v4680 = vadd.f32 %v3935, %v4586
        %v4681 = vadd.f32 %v3936, %v4591
        %v4682 = vadd.f32 %v3937, %v4594
        %v4683 = vadd.f32 %v3938, %v4599
        %v4684 = vadd.f32 %v3939, %v4602
        %v4685 = vadd.f32 %v3940, %v4607
        %v4686 = vadd.f32 %v3941, %v4610
        %v4687 = vadd.f32 %v3942, %v4615
        %v4688 = vadd.f32 %v3943, %v4618
        %v4689 = vadd.f32 %v3944, %v4623
        %v4690 = vadd.f32 %v3945, %v4626
        %v4691 = vadd.f32 %v3946, %v4631
        %v4692 = vadd.f32 %v3947, %v4634
        %v4693 = vadd.f32 %v3948, %v4639
        %v4694 = vadd.f32 %v3949, %v4642
        %v4695 = vadd.f32 %v3950, %v4647
        %v4696 = vadd.f32 %v3951, %v4650
        %v4697 = vadd.f32 %v3952, %v4655
        %v4698 = vadd.f32 %v3953, %v4658
        %v4699 = vadd.f32 %v3954, %v4663
        %v4700 = vadd.f32 %v3955, %v4666
        %v4701 = vld [vmem:[%s3578] sm:$0xe]
        %v4702 = vld [vmem:[%s3578 + $0xc] sm:$0xe]
        %v4703 = vld [vmem:[%s3578 + $0x18] sm:$0xe]
        %v4704 = vld [vmem:[%s3578 + $0x24] sm:$0xe]
        %v4705 = vld [vmem:[%s3578 + $0x30] sm:$0xe]
        %v4706 = vld [vmem:[%s3578 + $0x3c] sm:$0xe]
        %v4707 = vld [vmem:[%s3578 + $0x48] sm:$0xe]
        %v4708 = vld [vmem:[%s3578 + $0x54] sm:$0xe]
        %v4709 = vld [vmem:[%s3578 + $0x60] sm:$0xe]
        %v4710 = vld [vmem:[%s3578 + $0x6c] sm:$0xe]
        %v4711 = vld [vmem:[%s3578 + $0x78] sm:$0xe]
        %v4712 = vld [vmem:[%s3578 + $0x84] sm:$0xe]
        %v4713 = vld [vmem:[%s3578 + $0x90] sm:$0xe]
        %v4714 = vld [vmem:[%s3578 + $0x9c] sm:$0xe]
        %v4715 = vld [vmem:[%s3578 + $0xa8] sm:$0xe]
        %v4716 = vld [vmem:[%s3578 + $0xb4] sm:$0xe]
        %v4765 = vrot.slane %v4701, 5
        %v4766 = vrot.slane %v4765, 4
        %v4767 = vrot.slane %v3957, 5
        %v4768 = vsel %vm1540, %v4766, %v4767
        %v4769 = vrot.slane %v4767, 4
        %v4770 = vrot.slane %v3958, 5
        %v4771 = vsel %vm1540, %v4769, %v4770
        %v4772 = vrot.slane %v4702, 5
        %v4773 = vrot.slane %v4772, 4
        %v4774 = vrot.slane %v3960, 5
        %v4775 = vsel %vm1540, %v4773, %v4774
        %v4776 = vrot.slane %v4774, 4
        %v4777 = vrot.slane %v3961, 5
        %v4778 = vsel %vm1540, %v4776, %v4777
        %v4779 = vrot.slane %v4703, 5
        %v4780 = vrot.slane %v4779, 4
        %v4781 = vrot.slane %v3963, 5
        %v4782 = vsel %vm1540, %v4780, %v4781
        %v4783 = vrot.slane %v4781, 4
        %v4784 = vrot.slane %v3964, 5
        %v4785 = vsel %vm1540, %v4783, %v4784
        %v4786 = vrot.slane %v4704, 5
        %v4787 = vrot.slane %v4786, 4
        %v4788 = vrot.slane %v3966, 5
        %v4789 = vsel %vm1540, %v4787, %v4788
        %v4790 = vrot.slane %v4788, 4
        %v4791 = vrot.slane %v3967, 5
        %v4792 = vsel %vm1540, %v4790, %v4791
        %v4793 = vrot.slane %v4705, 5
        %v4794 = vrot.slane %v4793, 4
        %v4795 = vrot.slane %v3969, 5
        %v4796 = vsel %vm1540, %v4794, %v4795
        %v4797 = vrot.slane %v4795, 4
        %v4798 = vrot.slane %v3970, 5
        %v4799 = vsel %vm1540, %v4797, %v4798
        %v4800 = vrot.slane %v4706, 5
        %v4801 = vrot.slane %v4800, 4
        %v4802 = vrot.slane %v3972, 5
        %v4803 = vsel %vm1540, %v4801, %v4802
        %v4804 = vrot.slane %v4802, 4
        %v4805 = vrot.slane %v3973, 5
        %v4806 = vsel %vm1540, %v4804, %v4805
        %v4807 = vrot.slane %v4707, 5
        %v4808 = vrot.slane %v4807, 4
        %v4809 = vrot.slane %v3975, 5
        %v4810 = vsel %vm1540, %v4808, %v4809
        %v4811 = vrot.slane %v4809, 4
        %v4812 = vrot.slane %v3976, 5
        %v4813 = vsel %vm1540, %v4811, %v4812
        %v4814 = vrot.slane %v4708, 5
        %v4815 = vrot.slane %v4814, 4
        %v4816 = vrot.slane %v3978, 5
        %v4817 = vsel %vm1540, %v4815, %v4816
        %v4818 = vrot.slane %v4816, 4
        %v4819 = vrot.slane %v3979, 5
        %v4820 = vsel %vm1540, %v4818, %v4819
        %v4821 = vrot.slane %v4709, 5
        %v4822 = vrot.slane %v4821, 4
        %v4823 = vrot.slane %v3981, 5
        %v4824 = vsel %vm1540, %v4822, %v4823
        %v4825 = vrot.slane %v4823, 4
        %v4826 = vrot.slane %v3982, 5
        %v4827 = vsel %vm1540, %v4825, %v4826
        %v4828 = vrot.slane %v4710, 5
        %v4829 = vrot.slane %v4828, 4
        %v4830 = vrot.slane %v3984, 5
        %v4831 = vsel %vm1540, %v4829, %v4830
        %v4832 = vrot.slane %v4830, 4
        %v4833 = vrot.slane %v3985, 5
        %v4834 = vsel %vm1540, %v4832, %v4833
        %v4835 = vrot.slane %v4711, 5
        %v4836 = vrot.slane %v4835, 4
        %v4837 = vrot.slane %v3987, 5
        %v4838 = vsel %vm1540, %v4836, %v4837
        %v4839 = vrot.slane %v4837, 4
        %v4840 = vrot.slane %v3988, 5
        %v4841 = vsel %vm1540, %v4839, %v4840
        %v4842 = vrot.slane %v4712, 5
        %v4843 = vrot.slane %v4842, 4
        %v4844 = vrot.slane %v3990, 5
        %v4845 = vsel %vm1540, %v4843, %v4844
        %v4846 = vrot.slane %v4844, 4
        %v4847 = vrot.slane %v3991, 5
        %v4848 = vsel %vm1540, %v4846, %v4847
        %v4849 = vrot.slane %v4713, 5
        %v4850 = vrot.slane %v4849, 4
        %v4851 = vrot.slane %v3993, 5
        %v4852 = vsel %vm1540, %v4850, %v4851
        %v4853 = vrot.slane %v4851, 4
        %v4854 = vrot.slane %v3994, 5
        %v4855 = vsel %vm1540, %v4853, %v4854
        %v4856 = vrot.slane %v4714, 5
        %v4857 = vrot.slane %v4856, 4
        %v4858 = vrot.slane %v3996, 5
        %v4859 = vsel %vm1540, %v4857, %v4858
        %v4860 = vrot.slane %v4858, 4
        %v4861 = vrot.slane %v3997, 5
        %v4862 = vsel %vm1540, %v4860, %v4861
        %v4863 = vrot.slane %v4715, 5
        %v4864 = vrot.slane %v4863, 4
        %v4865 = vrot.slane %v3999, 5
        %v4866 = vsel %vm1540, %v4864, %v4865
        %v4867 = vrot.slane %v4865, 4
        %v4868 = vrot.slane %v4000, 5
        %v4869 = vsel %vm1540, %v4867, %v4868
        %v4870 = vrot.slane %v4716, 5
        %v4871 = vrot.slane %v4870, 4
        %v4872 = vrot.slane %v4002, 5
        %v4873 = vsel %vm1540, %v4871, %v4872
        %v4874 = vrot.slane %v4872, 4
        %v4875 = vrot.slane %v4003, 5
        %v4876 = vsel %vm1540, %v4874, %v4875
        %s4877 = scalar_lea.vmem %s2, 160
        %v4878 = vld [vmem:[%s4877] sm:$0xf]
        %v4879 = vld [vmem:[%s4877 + $0x4] sm:$0xf]
        %v4880 = vld [vmem:[%s4877 + $0x8] sm:$0xf]
        %v4881 = vld [vmem:[%s4877 + $0xc] sm:$0xf]
        %v4882 = vld [vmem:[%s4877 + $0x10] sm:$0x3]
        %v4883 = vunpack.c.l.b16 %v4768
        %v4884 = vunpack.c.l.b16 %v4771
        %v4885 = vunpack.c.l.b16 %v4775
        %v4886 = vunpack.c.l.b16 %v4778
        %v4887 = vunpack.c.l.b16 %v4782
        %v4888 = vunpack.c.l.b16 %v4785
        %v4889 = vunpack.c.l.b16 %v4789
        %v4890 = vunpack.c.l.b16 %v4792
        %v4891 = vunpack.c.l.b16 %v4796
        %v4892 = vunpack.c.l.b16 %v4799
        %v4893 = vunpack.c.l.b16 %v4803
        %v4894 = vunpack.c.l.b16 %v4806
        %v4895 = vunpack.c.l.b16 %v4810
        %v4896 = vunpack.c.l.b16 %v4813
        %v4897 = vunpack.c.l.b16 %v4817
        %v4898 = vunpack.c.l.b16 %v4820
        %v4899 = vunpack.c.l.b16 %v4824
        %v4900 = vunpack.c.l.b16 %v4827
        %v4901 = vunpack.c.l.b16 %v4831
        %v4902 = vunpack.c.l.b16 %v4834
        %v4903 = vunpack.c.l.b16 %v4838
        %v4904 = vunpack.c.l.b16 %v4841
        %v4905 = vunpack.c.l.b16 %v4845
        %v4906 = vunpack.c.l.b16 %v4848
        %v4907 = vunpack.c.l.b16 %v4852
        %v4908 = vunpack.c.l.b16 %v4855
        %v4909 = vunpack.c.l.b16 %v4859
        %v4910 = vunpack.c.l.b16 %v4862
        %v4911 = vunpack.c.l.b16 %v4866
        %v4912 = vunpack.c.l.b16 %v4869
        %v4913 = vunpack.c.l.b16 %v4873
        %v4914 = vunpack.c.l.b16 %v4876
        %v4915 = vpack.c.b16 %v4884, %v4883
        %v4916 = vpack.c.b16 %v4886, %v4885
        %v4917 = vpack.c.b16 %v4888, %v4887
        %v4918 = vpack.c.b16 %v4890, %v4889
        %v4919 = vpack.c.b16 %v4892, %v4891
        %v4920 = vpack.c.b16 %v4894, %v4893
        %v4921 = vpack.c.b16 %v4896, %v4895
        %v4922 = vpack.c.b16 %v4898, %v4897
        %v4923 = vpack.c.b16 %v4900, %v4899
        %v4924 = vpack.c.b16 %v4902, %v4901
        %v4925 = vpack.c.b16 %v4904, %v4903
        %v4926 = vpack.c.b16 %v4906, %v4905
        %v4927 = vpack.c.b16 %v4908, %v4907
        %v4928 = vpack.c.b16 %v4910, %v4909
        %v4929 = vpack.c.b16 %v4912, %v4911
        %v4930 = vpack.c.b16 %v4914, %v4913
        %v4936 = vunpack.c.l.b16 %v4878
        %v4937 = vunpack.c.l.b16 %v4879
        %v4938 = vunpack.c.l.b16 %v4880
        %v4939 = vunpack.c.l.b16 %v4881
        %v4940 = vunpack.c.l.b16 %v4882
        %v4941 = vpack.c.b16 %v4937, %v4936
        %v4942 = vpack.c.b16 %v4939, %v4938
        %v4943 = vpack.c.b16 %v4940, %v4940
        %v4947 = vsel %vm969, %v4915, 0
        %v4950 = vsel %vm969, %v4916, 0
        %v4953 = vsel %vm969, %v4917, 0
        %v4956 = vsel %vm969, %v4918, 0
        %v4959 = vsel %vm969, %v4919, 0
        %v4962 = vsel %vm969, %v4920, 0
        %v4965 = vsel %vm969, %v4921, 0
        %v4968 = vsel %vm969, %v4922, 0
        %v4971 = vsel %vm969, %v4923, 0
        %v4974 = vsel %vm969, %v4924, 0
        %v4977 = vsel %vm969, %v4925, 0
        %v4980 = vsel %vm969, %v4926, 0
        %v4983 = vsel %vm969, %v4927, 0
        %v4986 = vsel %vm969, %v4928, 0
        %v4989 = vsel %vm969, %v4929, 0
        %v4992 = vsel %vm969, %v4930, 0
        %v4995 = vsel %vm1018, %v4943, 0
        %4997 = vmatprep.subr.bf16.mxu0 0
        %4998 = vmatpush1.bf16.msra.mxu0 %v4941
        %4999 = vmatprep.subr.bf16.mxu0 0
        %5000 = vmatpush1.bf16.msra.mxu0 %v4942
        %5001 = vmatprep.subr.bf16.mxu0 0
        %5002 = vmatpush1.bf16.msra.mxu0 %v4995
        %5003 = vmatprep.subr.bf16.mxu0 0
        %5004 = vmatpush1.bf16.msra.mxu0 0
        %5005 = vmatprep.subr.bf16.mxu0 0
        %5006 = vmatpush1.bf16.msra.mxu0 0
        %5007 = vmatprep.subr.bf16.mxu0 0
        %5008 = vmatpush1.bf16.msra.mxu0 0
        %5009 = vmatprep.subr.bf16.mxu0 0
        %5010 = vmatpush1.bf16.msra.mxu0 0
        %5011 = vmatprep.subr.bf16.mxu0 0
        %5012 = vmatpush1.bf16.msra.mxu0 0
        %5013 = vmatprep.subr.bf16.mxu0 0
        %5014 = vmatpush1.bf16.msra.mxu0 0
        %5015 = vmatprep.subr.bf16.mxu0 0
        %5016 = vmatpush1.bf16.msra.mxu0 0
        %5017 = vmatprep.subr.bf16.mxu0 0
        %5018 = vmatpush1.bf16.msra.mxu0 0
        %5019 = vmatprep.subr.bf16.mxu0 0
        %5020 = vmatpush1.bf16.msra.mxu0 0
        %5021 = vmatprep.subr.bf16.mxu0 0
        %5022 = vmatpush1.bf16.msra.mxu0 0
        %5023 = vmatprep.subr.bf16.mxu0 0
        %5024 = vmatpush1.bf16.msra.mxu0 0
        %5025 = vmatprep.subr.bf16.mxu0 0
        %5026 = vmatpush1.bf16.msra.mxu0 0
        %5027 = vmatprep.subr.bf16.mxu0 0
        %5028 = vmatpush1.bf16.msra.mxu0 0
        %5029 = vmatprep.mubr.bf16.mxu0 0
        %5030 = vmatmul.mubr.bf16.gmra.mrb[0].mxu0 %v4947
        %v5031 = vpop.f32.mrb[0].mxu0
        %v5032 = vadd.f32 0.0, %v5031
        %v5033 = vpop.f32.mrb[0].mxu0
        %v5034 = vpop.f32.mrb[0].mxu0
        %v5035 = vadd.f32 0.0, %v5034
        %v5036 = vpop.f32.mrb[0].mxu0
        %5037 = vmatprep.mubr.bf16.mxu0 0
        %5038 = vmatmul.mubr.bf16.gmra.mrb[0].mxu0 %v4950
        %v5039 = vpop.f32.mrb[0].mxu0
        %v5040 = vadd.f32 0.0, %v5039
        %v5041 = vpop.f32.mrb[0].mxu0
        %v5042 = vpop.f32.mrb[0].mxu0
        %v5043 = vadd.f32 0.0, %v5042
        %v5044 = vpop.f32.mrb[0].mxu0
        %5045 = vmatprep.mubr.bf16.mxu0 0
        %5046 = vmatmul.mubr.bf16.gmra.mrb[0].mxu0 %v4953
        %v5047 = vpop.f32.mrb[0].mxu0
        %v5048 = vadd.f32 0.0, %v5047
        %v5049 = vpop.f32.mrb[0].mxu0
        %v5050 = vpop.f32.mrb[0].mxu0
        %v5051 = vadd.f32 0.0, %v5050
        %v5052 = vpop.f32.mrb[0].mxu0
        %5053 = vmatprep.mubr.bf16.mxu0 0
        %5054 = vmatmul.mubr.bf16.gmra.mrb[0].mxu0 %v4956
        %v5055 = vpop.f32.mrb[0].mxu0
        %v5056 = vadd.f32 0.0, %v5055
        %v5057 = vpop.f32.mrb[0].mxu0
        %v5058 = vpop.f32.mrb[0].mxu0
        %v5059 = vadd.f32 0.0, %v5058
        %v5060 = vpop.f32.mrb[0].mxu0
        %5061 = vmatprep.mubr.bf16.mxu0 0
        %5062 = vmatmul.mubr.bf16.gmra.mrb[0].mxu0 %v4959
        %v5063 = vpop.f32.mrb[0].mxu0
        %v5064 = vadd.f32 0.0, %v5063
        %v5065 = vpop.f32.mrb[0].mxu0
        %v5066 = vpop.f32.mrb[0].mxu0
        %v5067 = vadd.f32 0.0, %v5066
        %v5068 = vpop.f32.mrb[0].mxu0
        %5069 = vmatprep.mubr.bf16.mxu0 0
        %5070 = vmatmul.mubr.bf16.gmra.mrb[0].mxu0 %v4962
        %v5071 = vpop.f32.mrb[0].mxu0
        %v5072 = vadd.f32 0.0, %v5071
        %v5073 = vpop.f32.mrb[0].mxu0
        %v5074 = vpop.f32.mrb[0].mxu0
        %v5075 = vadd.f32 0.0, %v5074
        %v5076 = vpop.f32.mrb[0].mxu0
        %5077 = vmatprep.mubr.bf16.mxu0 0
        %5078 = vmatmul.mubr.bf16.gmra.mrb[0].mxu0 %v4965
        %v5079 = vpop.f32.mrb[0].mxu0
        %v5080 = vadd.f32 0.0, %v5079
        %v5081 = vpop.f32.mrb[0].mxu0
        %v5082 = vpop.f32.mrb[0].mxu0
        %v5083 = vadd.f32 0.0, %v5082
        %v5084 = vpop.f32.mrb[0].mxu0
        %5085 = vmatprep.mubr.bf16.mxu0 0
        %5086 = vmatmul.mubr.bf16.gmra.mrb[0].mxu0 %v4968
        %v5087 = vpop.f32.mrb[0].mxu0
        %v5088 = vadd.f32 0.0, %v5087
        %v5089 = vpop.f32.mrb[0].mxu0
        %v5090 = vpop.f32.mrb[0].mxu0
        %v5091 = vadd.f32 0.0, %v5090
        %v5092 = vpop.f32.mrb[0].mxu0
        %5093 = vmatprep.mubr.bf16.mxu0 0
        %5094 = vmatmul.mubr.bf16.gmra.mrb[0].mxu0 %v4971
        %v5095 = vpop.f32.mrb[0].mxu0
        %v5096 = vadd.f32 0.0, %v5095
        %v5097 = vpop.f32.mrb[0].mxu0
        %v5098 = vpop.f32.mrb[0].mxu0
        %v5099 = vadd.f32 0.0, %v5098
        %v5100 = vpop.f32.mrb[0].mxu0
        %5101 = vmatprep.mubr.bf16.mxu0 0
        %5102 = vmatmul.mubr.bf16.gmra.mrb[0].mxu0 %v4974
        %v5103 = vpop.f32.mrb[0].mxu0
        %v5104 = vadd.f32 0.0, %v5103
        %v5105 = vpop.f32.mrb[0].mxu0
        %v5106 = vpop.f32.mrb[0].mxu0
        %v5107 = vadd.f32 0.0, %v5106
        %v5108 = vpop.f32.mrb[0].mxu0
        %5109 = vmatprep.mubr.bf16.mxu0 0
        %5110 = vmatmul.mubr.bf16.gmra.mrb[0].mxu0 %v4977
        %v5111 = vpop.f32.mrb[0].mxu0
        %v5112 = vadd.f32 0.0, %v5111
        %v5113 = vpop.f32.mrb[0].mxu0
        %v5114 = vpop.f32.mrb[0].mxu0
        %v5115 = vadd.f32 0.0, %v5114
        %v5116 = vpop.f32.mrb[0].mxu0
        %5117 = vmatprep.mubr.bf16.mxu0 0
        %5118 = vmatmul.mubr.bf16.gmra.mrb[0].mxu0 %v4980
        %v5119 = vpop.f32.mrb[0].mxu0
        %v5120 = vadd.f32 0.0, %v5119
        %v5121 = vpop.f32.mrb[0].mxu0
        %v5122 = vpop.f32.mrb[0].mxu0
        %v5123 = vadd.f32 0.0, %v5122
        %v5124 = vpop.f32.mrb[0].mxu0
        %5125 = vmatprep.mubr.bf16.mxu0 0
        %5126 = vmatmul.mubr.bf16.gmra.mrb[0].mxu0 %v4983
        %v5127 = vpop.f32.mrb[0].mxu0
        %v5128 = vadd.f32 0.0, %v5127
        %v5129 = vpop.f32.mrb[0].mxu0
        %v5130 = vpop.f32.mrb[0].mxu0
        %v5131 = vadd.f32 0.0, %v5130
        %v5132 = vpop.f32.mrb[0].mxu0
        %5133 = vmatprep.mubr.bf16.mxu0 0
        %5134 = vmatmul.mubr.bf16.gmra.mrb[0].mxu0 %v4986
        %v5135 = vpop.f32.mrb[0].mxu0
        %v5136 = vadd.f32 0.0, %v5135
        %v5137 = vpop.f32.mrb[0].mxu0
        %v5138 = vpop.f32.mrb[0].mxu0
        %v5139 = vadd.f32 0.0, %v5138
        %v5140 = vpop.f32.mrb[0].mxu0
        %5141 = vmatprep.mubr.bf16.mxu0 0
        %5142 = vmatmul.mubr.bf16.gmra.mrb[0].mxu0 %v4989
        %v5143 = vpop.f32.mrb[0].mxu0
        %v5144 = vadd.f32 0.0, %v5143
        %v5145 = vpop.f32.mrb[0].mxu0
        %v5146 = vpop.f32.mrb[0].mxu0
        %v5147 = vadd.f32 0.0, %v5146
        %v5148 = vpop.f32.mrb[0].mxu0
        %5149 = vmatprep.mubr.bf16.mxu0 0
        %5150 = vmatmul.mubr.bf16.gmra.mrb[0].mxu0 %v4992
        %v5151 = vpop.f32.mrb[0].mxu0
        %v5152 = vadd.f32 0.0, %v5151
        %v5153 = vpop.f32.mrb[0].mxu0
        %v5154 = vpop.f32.mrb[0].mxu0
        %v5155 = vadd.f32 0.0, %v5154
        %v5156 = vpop.f32.mrb[0].mxu0
        %5157 = vdwg.mxu0
        %v5158 = vadd.f32 %v4669, %v5032
        %v5159 = vadd.f32 %v4670, %v5035
        %v5160 = vadd.f32 %v4671, %v5040
        %v5161 = vadd.f32 %v4672, %v5043
        %v5162 = vadd.f32 %v4673, %v5048
        %v5163 = vadd.f32 %v4674, %v5051
        %v5164 = vadd.f32 %v4675, %v5056
        %v5165 = vadd.f32 %v4676, %v5059
        %v5166 = vadd.f32 %v4677, %v5064
        %v5167 = vadd.f32 %v4678, %v5067
        %v5168 = vadd.f32 %v4679, %v5072
        %v5169 = vadd.f32 %v4680, %v5075
        %v5170 = vadd.f32 %v4681, %v5080
        %v5171 = vadd.f32 %v4682, %v5083
        %v5172 = vadd.f32 %v4683, %v5088
        %v5173 = vadd.f32 %v4684, %v5091
        %v5174 = vadd.f32 %v4685, %v5096
        %v5175 = vadd.f32 %v4686, %v5099
        %v5176 = vadd.f32 %v4687, %v5104
        %v5177 = vadd.f32 %v4688, %v5107
        %v5178 = vadd.f32 %v4689, %v5112
        %v5179 = vadd.f32 %v4690, %v5115
        %v5180 = vadd.f32 %v4691, %v5120
        %v5181 = vadd.f32 %v4692, %v5123
        %v5182 = vadd.f32 %v4693, %v5128
        %v5183 = vadd.f32 %v4694, %v5131
        %v5184 = vadd.f32 %v4695, %v5136
        %v5185 = vadd.f32 %v4696, %v5139
        %v5186 = vadd.f32 %v4697, %v5144
        %v5187 = vadd.f32 %v4698, %v5147
        %v5188 = vadd.f32 %v4699, %v5152
        %v5189 = vadd.f32 %v4700, %v5155
        %v5190 = vld [vmem:[%s3] sm:$0x1]
        %v5192 = vlaneseq
        %v5193 = vshrl.u32 %v5192, 7
        %v5194 = vsub.s32 0, %v5193
        %v5195 = vrot.slane %v5190, %v5194
        %v5197 = vadd.f32 %v5158, %v5195
        %v5198 = vadd.f32 %v5159, %v5195
        %v5199 = vadd.f32 %v5160, %v5195
        %v5200 = vadd.f32 %v5161, %v5195
        %v5201 = vadd.f32 %v5162, %v5195
        %v5202 = vadd.f32 %v5163, %v5195
        %v5203 = vadd.f32 %v5164, %v5195
        %v5204 = vadd.f32 %v5165, %v5195
        %v5205 = vadd.f32 %v5166, %v5195
        %v5206 = vadd.f32 %v5167, %v5195
        %v5207 = vadd.f32 %v5168, %v5195
        %v5208 = vadd.f32 %v5169, %v5195
        %v5209 = vadd.f32 %v5170, %v5195
        %v5210 = vadd.f32 %v5171, %v5195
        %v5211 = vadd.f32 %v5172, %v5195
        %v5212 = vadd.f32 %v5173, %v5195
        %v5213 = vadd.f32 %v5174, %v5195
        %v5214 = vadd.f32 %v5175, %v5195
        %v5215 = vadd.f32 %v5176, %v5195
        %v5216 = vadd.f32 %v5177, %v5195
        %v5217 = vadd.f32 %v5178, %v5195
        %v5218 = vadd.f32 %v5179, %v5195
        %v5219 = vadd.f32 %v5180, %v5195
        %v5220 = vadd.f32 %v5181, %v5195
        %v5221 = vadd.f32 %v5182, %v5195
        %v5222 = vadd.f32 %v5183, %v5195
        %v5223 = vadd.f32 %v5184, %v5195
        %v5224 = vadd.f32 %v5185, %v5195
        %v5225 = vadd.f32 %v5186, %v5195
        %v5226 = vadd.f32 %v5187, %v5195
        %v5227 = vadd.f32 %v5188, %v5195
        %v5228 = vadd.f32 %v5189, %v5195
        %vm5229 = vcmp.gt.f32.partialorder %v5197, 0.0
        %vm5230 = vcmp.gt.f32.partialorder %v5198, 0.0
        %vm5231 = vcmp.gt.f32.partialorder %v5199, 0.0
        %vm5232 = vcmp.gt.f32.partialorder %v5200, 0.0
        %vm5233 = vcmp.gt.f32.partialorder %v5201, 0.0
        %vm5234 = vcmp.gt.f32.partialorder %v5202, 0.0
        %vm5235 = vcmp.gt.f32.partialorder %v5203, 0.0
        %vm5236 = vcmp.gt.f32.partialorder %v5204, 0.0
        %vm5237 = vcmp.gt.f32.partialorder %v5205, 0.0
        %vm5238 = vcmp.gt.f32.partialorder %v5206, 0.0
        %vm5239 = vcmp.gt.f32.partialorder %v5207, 0.0
        %vm5240 = vcmp.gt.f32.partialorder %v5208, 0.0
        %vm5241 = vcmp.gt.f32.partialorder %v5209, 0.0
        %vm5242 = vcmp.gt.f32.partialorder %v5210, 0.0
        %vm5243 = vcmp.gt.f32.partialorder %v5211, 0.0
        %vm5244 = vcmp.gt.f32.partialorder %v5212, 0.0
        %vm5245 = vcmp.gt.f32.partialorder %v5213, 0.0
        %vm5246 = vcmp.gt.f32.partialorder %v5214, 0.0
        %vm5247 = vcmp.gt.f32.partialorder %v5215, 0.0
        %vm5248 = vcmp.gt.f32.partialorder %v5216, 0.0
        %vm5249 = vcmp.gt.f32.partialorder %v5217, 0.0
        %vm5250 = vcmp.gt.f32.partialorder %v5218, 0.0
        %vm5251 = vcmp.gt.f32.partialorder %v5219, 0.0
        %vm5252 = vcmp.gt.f32.partialorder %v5220, 0.0
        %vm5253 = vcmp.gt.f32.partialorder %v5221, 0.0
        %vm5254 = vcmp.gt.f32.partialorder %v5222, 0.0
        %vm5255 = vcmp.gt.f32.partialorder %v5223, 0.0
        %vm5256 = vcmp.gt.f32.partialorder %v5224, 0.0
        %vm5257 = vcmp.gt.f32.partialorder %v5225, 0.0
        %vm5258 = vcmp.gt.f32.partialorder %v5226, 0.0
        %vm5259 = vcmp.gt.f32.partialorder %v5227, 0.0
        %vm5260 = vcmp.gt.f32.partialorder %v5228, 0.0
        %v5261 = vmul.f32 %v5197, 0.01
        %v5262 = vmul.f32 %v5198, 0.01
        %v5263 = vmul.f32 %v5199, 0.01
        %v5264 = vmul.f32 %v5200, 0.01
        %v5265 = vmul.f32 %v5201, 0.01
        %v5266 = vmul.f32 %v5202, 0.01
        %v5267 = vmul.f32 %v5203, 0.01
        %v5268 = vmul.f32 %v5204, 0.01
        %v5269 = vmul.f32 %v5205, 0.01
        %v5270 = vmul.f32 %v5206, 0.01
        %v5271 = vmul.f32 %v5207, 0.01
        %v5272 = vmul.f32 %v5208, 0.01
        %v5273 = vmul.f32 %v5209, 0.01
        %v5274 = vmul.f32 %v5210, 0.01
        %v5275 = vmul.f32 %v5211, 0.01
        %v5276 = vmul.f32 %v5212, 0.01
        %v5277 = vmul.f32 %v5213, 0.01
        %v5278 = vmul.f32 %v5214, 0.01
        %v5279 = vmul.f32 %v5215, 0.01
        %v5280 = vmul.f32 %v5216, 0.01
        %v5281 = vmul.f32 %v5217, 0.01
        %v5282 = vmul.f32 %v5218, 0.01
        %v5283 = vmul.f32 %v5219, 0.01
        %v5284 = vmul.f32 %v5220, 0.01
        %v5285 = vmul.f32 %v5221, 0.01
        %v5286 = vmul.f32 %v5222, 0.01
        %v5287 = vmul.f32 %v5223, 0.01
        %v5288 = vmul.f32 %v5224, 0.01
        %v5289 = vmul.f32 %v5225, 0.01
        %v5290 = vmul.f32 %v5226, 0.01
        %v5291 = vmul.f32 %v5227, 0.01
        %v5292 = vmul.f32 %v5228, 0.01
        %v5293 = vsel %vm5229, %v5197, %v5261
        %v5294 = vsel %vm5230, %v5198, %v5262
        %v5295 = vsel %vm5231, %v5199, %v5263
        %v5296 = vsel %vm5232, %v5200, %v5264
        %v5297 = vsel %vm5233, %v5201, %v5265
        %v5298 = vsel %vm5234, %v5202, %v5266
        %v5299 = vsel %vm5235, %v5203, %v5267
        %v5300 = vsel %vm5236, %v5204, %v5268
        %v5301 = vsel %vm5237, %v5205, %v5269
        %v5302 = vsel %vm5238, %v5206, %v5270
        %v5303 = vsel %vm5239, %v5207, %v5271
        %v5304 = vsel %vm5240, %v5208, %v5272
        %v5305 = vsel %vm5241, %v5209, %v5273
        %v5306 = vsel %vm5242, %v5210, %v5274
        %v5307 = vsel %vm5243, %v5211, %v5275
        %v5308 = vsel %vm5244, %v5212, %v5276
        %v5309 = vsel %vm5245, %v5213, %v5277
        %v5310 = vsel %vm5246, %v5214, %v5278
        %v5311 = vsel %vm5247, %v5215, %v5279
        %v5312 = vsel %vm5248, %v5216, %v5280
        %v5313 = vsel %vm5249, %v5217, %v5281
        %v5314 = vsel %vm5250, %v5218, %v5282
        %v5315 = vsel %vm5251, %v5219, %v5283
        %v5316 = vsel %vm5252, %v5220, %v5284
        %v5317 = vsel %vm5253, %v5221, %v5285
        %v5318 = vsel %vm5254, %v5222, %v5286
        %v5319 = vsel %vm5255, %v5223, %v5287
        %v5320 = vsel %vm5256, %v5224, %v5288
        %v5321 = vsel %vm5257, %v5225, %v5289
        %v5322 = vsel %vm5258, %v5226, %v5290
        %v5323 = vsel %vm5259, %v5227, %v5291
        %v5324 = vsel %vm5260, %v5228, %v5292
        %vm5325 = vcmask 130048
        %v5326 = vsel %vm5325, %v5293, 0.0
        %v5327 = vsel %vm5325, %v5294, 0.0
        %v5328 = vadd.f32 %v5326, %v5327
        %v5329 = vsel %vm5325, %v5295, 0.0
        %v5330 = vadd.f32 %v5328, %v5329
        %v5331 = vsel %vm5325, %v5296, 0.0
        %v5332 = vadd.f32 %v5330, %v5331
        %v5333 = vsel %vm5325, %v5297, 0.0
        %v5334 = vadd.f32 %v5332, %v5333
        %v5335 = vsel %vm5325, %v5298, 0.0
        %v5336 = vadd.f32 %v5334, %v5335
        %v5337 = vsel %vm5325, %v5299, 0.0
        %v5338 = vadd.f32 %v5336, %v5337
        %v5339 = vsel %vm5325, %v5300, 0.0
        %v5340 = vadd.f32 %v5338, %v5339
        %v5341 = vsel %vm5325, %v5301, 0.0
        %v5342 = vadd.f32 %v5340, %v5341
        %v5343 = vsel %vm5325, %v5302, 0.0
        %v5344 = vadd.f32 %v5342, %v5343
        %v5345 = vsel %vm5325, %v5303, 0.0
        %v5346 = vadd.f32 %v5344, %v5345
        %v5347 = vsel %vm5325, %v5304, 0.0
        %v5348 = vadd.f32 %v5346, %v5347
        %v5349 = vsel %vm5325, %v5305, 0.0
        %v5350 = vadd.f32 %v5348, %v5349
        %v5351 = vsel %vm5325, %v5306, 0.0
        %v5352 = vadd.f32 %v5350, %v5351
        %v5353 = vsel %vm5325, %v5307, 0.0
        %v5354 = vadd.f32 %v5352, %v5353
        %v5355 = vsel %vm5325, %v5308, 0.0
        %v5356 = vadd.f32 %v5354, %v5355
        %v5357 = vsel %vm5325, %v5309, 0.0
        %v5358 = vadd.f32 %v5356, %v5357
        %v5359 = vsel %vm5325, %v5310, 0.0
        %v5360 = vadd.f32 %v5358, %v5359
        %v5361 = vsel %vm5325, %v5311, 0.0
        %v5362 = vadd.f32 %v5360, %v5361
        %v5363 = vsel %vm5325, %v5312, 0.0
        %v5364 = vadd.f32 %v5362, %v5363
        %v5365 = vsel %vm5325, %v5313, 0.0
        %v5366 = vadd.f32 %v5364, %v5365
        %v5367 = vsel %vm5325, %v5314, 0.0
        %v5368 = vadd.f32 %v5366, %v5367
        %v5369 = vsel %vm5325, %v5315, 0.0
        %v5370 = vadd.f32 %v5368, %v5369
        %v5371 = vsel %vm5325, %v5316, 0.0
        %v5372 = vadd.f32 %v5370, %v5371
        %v5373 = vsel %vm5325, %v5317, 0.0
        %v5374 = vadd.f32 %v5372, %v5373
        %v5375 = vsel %vm5325, %v5318, 0.0
        %v5376 = vadd.f32 %v5374, %v5375
        %v5377 = vsel %vm5325, %v5319, 0.0
        %v5378 = vadd.f32 %v5376, %v5377
        %v5379 = vsel %vm5325, %v5320, 0.0
        %v5380 = vadd.f32 %v5378, %v5379
        %v5381 = vsel %vm5325, %v5321, 0.0
        %v5382 = vadd.f32 %v5380, %v5381
        %v5383 = vsel %vm5325, %v5322, 0.0
        %v5384 = vadd.f32 %v5382, %v5383
        %v5385 = vsel %vm5325, %v5323, 0.0
        %v5386 = vadd.f32 %v5384, %v5385
        %v5387 = vsel %vm5325, %v5324, 0.0
        %v5388 = vadd.f32 %v5386, %v5387
        %v5389 = vrot.slane %v5388, 4
        %v5390 = vadd.f32 %v5388, %v5389
        %v5391 = vrot.slane %v5390, 2
        %v5392 = vadd.f32 %v5390, %v5391
        %v5393 = vrot.slane %v5392, 1
        %v5394 = vadd.f32 %v5392, %v5393
        %v5395 = vmul.f32 %v5293, %v5293
        %v5396 = vmul.f32 %v5294, %v5294
        %v5397 = vmul.f32 %v5295, %v5295
        %v5398 = vmul.f32 %v5296, %v5296
        %v5399 = vmul.f32 %v5297, %v5297
        %v5400 = vmul.f32 %v5298, %v5298
        %v5401 = vmul.f32 %v5299, %v5299
        %v5402 = vmul.f32 %v5300, %v5300
        %v5403 = vmul.f32 %v5301, %v5301
        %v5404 = vmul.f32 %v5302, %v5302
        %v5405 = vmul.f32 %v5303, %v5303
        %v5406 = vmul.f32 %v5304, %v5304
        %v5407 = vmul.f32 %v5305, %v5305
        %v5408 = vmul.f32 %v5306, %v5306
        %v5409 = vmul.f32 %v5307, %v5307
        %v5410 = vmul.f32 %v5308, %v5308
        %v5411 = vmul.f32 %v5309, %v5309
        %v5412 = vmul.f32 %v5310, %v5310
        %v5413 = vmul.f32 %v5311, %v5311
        %v5414 = vmul.f32 %v5312, %v5312
        %v5415 = vmul.f32 %v5313, %v5313
        %v5416 = vmul.f32 %v5314, %v5314
        %v5417 = vmul.f32 %v5315, %v5315
        %v5418 = vmul.f32 %v5316, %v5316
        %v5419 = vmul.f32 %v5317, %v5317
        %v5420 = vmul.f32 %v5318, %v5318
        %v5421 = vmul.f32 %v5319, %v5319
        %v5422 = vmul.f32 %v5320, %v5320
        %v5423 = vmul.f32 %v5321, %v5321
        %v5424 = vmul.f32 %v5322, %v5322
        %v5425 = vmul.f32 %v5323, %v5323
        %v5426 = vmul.f32 %v5324, %v5324
        %v5427 = vsel %vm5325, %v5395, 0.0
        %v5428 = vsel %vm5325, %v5396, 0.0
        %v5429 = vadd.f32 %v5427, %v5428
        %v5430 = vsel %vm5325, %v5397, 0.0
        %v5431 = vadd.f32 %v5429, %v5430
        %v5432 = vsel %vm5325, %v5398, 0.0
        %v5433 = vadd.f32 %v5431, %v5432
        %v5434 = vsel %vm5325, %v5399, 0.0
        %v5435 = vadd.f32 %v5433, %v5434
        %v5436 = vsel %vm5325, %v5400, 0.0
        %v5437 = vadd.f32 %v5435, %v5436
        %v5438 = vsel %vm5325, %v5401, 0.0
        %v5439 = vadd.f32 %v5437, %v5438
        %v5440 = vsel %vm5325, %v5402, 0.0
        %v5441 = vadd.f32 %v5439, %v5440
        %v5442 = vsel %vm5325, %v5403, 0.0
        %v5443 = vadd.f32 %v5441, %v5442
        %v5444 = vsel %vm5325, %v5404, 0.0
        %v5445 = vadd.f32 %v5443, %v5444
        %v5446 = vsel %vm5325, %v5405, 0.0
        %v5447 = vadd.f32 %v5445, %v5446
        %v5448 = vsel %vm5325, %v5406, 0.0
        %v5449 = vadd.f32 %v5447, %v5448
        %v5450 = vsel %vm5325, %v5407, 0.0
        %v5451 = vadd.f32 %v5449, %v5450
        %v5452 = vsel %vm5325, %v5408, 0.0
        %v5453 = vadd.f32 %v5451, %v5452
        %v5454 = vsel %vm5325, %v5409, 0.0
        %v5455 = vadd.f32 %v5453, %v5454
        %v5456 = vsel %vm5325, %v5410, 0.0
        %v5457 = vadd.f32 %v5455, %v5456
        %v5458 = vsel %vm5325, %v5411, 0.0
        %v5459 = vadd.f32 %v5457, %v5458
        %v5460 = vsel %vm5325, %v5412, 0.0
        %v5461 = vadd.f32 %v5459, %v5460
        %v5462 = vsel %vm5325, %v5413, 0.0
        %v5463 = vadd.f32 %v5461, %v5462
        %v5464 = vsel %vm5325, %v5414, 0.0
        %v5465 = vadd.f32 %v5463, %v5464
        %v5466 = vsel %vm5325, %v5415, 0.0
        %v5467 = vadd.f32 %v5465, %v5466
        %v5468 = vsel %vm5325, %v5416, 0.0
        %v5469 = vadd.f32 %v5467, %v5468
        %v5470 = vsel %vm5325, %v5417, 0.0
        %v5471 = vadd.f32 %v5469, %v5470
        %v5472 = vsel %vm5325, %v5418, 0.0
        %v5473 = vadd.f32 %v5471, %v5472
        %v5474 = vsel %vm5325, %v5419, 0.0
        %v5475 = vadd.f32 %v5473, %v5474
        %v5476 = vsel %vm5325, %v5420, 0.0
        %v5477 = vadd.f32 %v5475, %v5476
        %v5478 = vsel %vm5325, %v5421, 0.0
        %v5479 = vadd.f32 %v5477, %v5478
        %v5480 = vsel %vm5325, %v5422, 0.0
        %v5481 = vadd.f32 %v5479, %v5480
        %v5482 = vsel %vm5325, %v5423, 0.0
        %v5483 = vadd.f32 %v5481, %v5482
        %v5484 = vsel %vm5325, %v5424, 0.0
        %v5485 = vadd.f32 %v5483, %v5484
        %v5486 = vsel %vm5325, %v5425, 0.0
        %v5487 = vadd.f32 %v5485, %v5486
        %v5488 = vsel %vm5325, %v5426, 0.0
        %v5489 = vadd.f32 %v5487, %v5488
        %v5490 = vrot.slane %v5489, 4
        %v5491 = vadd.f32 %v5489, %v5490
        %v5492 = vrot.slane %v5491, 2
        %v5493 = vadd.f32 %v5491, %v5492
        %v5494 = vrot.slane %v5493, 1
        %v5495 = vadd.f32 %v5493, %v5494
        %v5496 = vlaneseq
        %v5497 = vshrl.u32 %v5496, 7
        %vm5498 = vcmp.eq.s32.totalorder %v5497, 0
        %vm5499 = vcmp.eq.s32.totalorder %v5497, 1
        %v5500 = vsel %vm5499, %v5495, 0.0
        %v5501 = vsel %vm5498, %v5394, %v5500
        %5502 = vst.msk [vmem:[%s310] sm:$0xff] %vm5325, %v5501
        %5503 = vxpose.xlu0.b32.start [1/16] %v5293, 128
        %5504 = vxpose.xlu0.b32.cont [2/16] %v5294, 128
        %5505 = vxpose.xlu0.b32.cont [3/16] %v5295, 128
        %5506 = vxpose.xlu0.b32.cont [4/16] %v5296, 128
        %5507 = vxpose.xlu0.b32.cont [5/16] %v5297, 128
        %5508 = vxpose.xlu0.b32.cont [6/16] %v5298, 128
        %5509 = vxpose.xlu0.b32.cont [7/16] %v5299, 128
        %5510 = vxpose.xlu0.b32.cont [8/16] %v5300, 128
        %5511 = vxpose.xlu0.b32.cont [9/16] %v5301, 128
        %5512 = vxpose.xlu0.b32.cont [10/16] %v5302, 128
        %5513 = vxpose.xlu0.b32.cont [11/16] %v5303, 128
        %5514 = vxpose.xlu0.b32.cont [12/16] %v5304, 128
        %5515 = vxpose.xlu0.b32.cont [13/16] %v5305, 128
        %5516 = vxpose.xlu0.b32.cont [14/16] %v5306, 128
        %5517 = vxpose.xlu0.b32.cont [15/16] %v5307, 128
        %5518 = vxpose.xlu0.b32.end [16/16] %v5308, 128
        %v5519 = vpop.trf.xlu0
        %v5520 = vpop.trf.xlu0
        %v5521 = vpop.trf.xlu0
        %v5522 = vpop.trf.xlu0
        %v5523 = vpop.trf.xlu0
        %v5524 = vpop.trf.xlu0
        %v5525 = vpop.trf.xlu0
        %v5526 = vpop.trf.xlu0
        %v5527 = vpop.trf.xlu0
        %v5528 = vpop.trf.xlu0
        %v5529 = vpop.trf.xlu0
        %v5530 = vpop.trf.xlu0
        %v5531 = vpop.trf.xlu0
        %v5532 = vpop.trf.xlu0
        %v5533 = vpop.trf.xlu0
        %v5534 = vpop.trf.xlu0
        %5535 = vxpose.xlu0.b32.start [1/16] %v5309, 128
        %5536 = vxpose.xlu0.b32.cont [2/16] %v5310, 128
        %5537 = vxpose.xlu0.b32.cont [3/16] %v5311, 128
        %5538 = vxpose.xlu0.b32.cont [4/16] %v5312, 128
        %5539 = vxpose.xlu0.b32.cont [5/16] %v5313, 128
        %5540 = vxpose.xlu0.b32.cont [6/16] %v5314, 128
        %5541 = vxpose.xlu0.b32.cont [7/16] %v5315, 128
        %5542 = vxpose.xlu0.b32.cont [8/16] %v5316, 128
        %5543 = vxpose.xlu0.b32.cont [9/16] %v5317, 128
        %5544 = vxpose.xlu0.b32.cont [10/16] %v5318, 128
        %5545 = vxpose.xlu0.b32.cont [11/16] %v5319, 128
        %5546 = vxpose.xlu0.b32.cont [12/16] %v5320, 128
        %5547 = vxpose.xlu0.b32.cont [13/16] %v5321, 128
        %5548 = vxpose.xlu0.b32.cont [14/16] %v5322, 128
        %5549 = vxpose.xlu0.b32.cont [15/16] %v5323, 128
        %5550 = vxpose.xlu0.b32.end [16/16] %v5324, 128
        %v5551 = vpop.trf.xlu0
        %v5552 = vpop.trf.xlu0
        %v5553 = vpop.trf.xlu0
        %v5554 = vpop.trf.xlu0
        %v5555 = vpop.trf.xlu0
        %v5556 = vpop.trf.xlu0
        %v5557 = vpop.trf.xlu0
        %v5558 = vpop.trf.xlu0
        %v5559 = vpop.trf.xlu0
        %v5560 = vpop.trf.xlu0
        %v5561 = vpop.trf.xlu0
        %v5562 = vpop.trf.xlu0
        %v5563 = vpop.trf.xlu0
        %v5564 = vpop.trf.xlu0
        %v5565 = vpop.trf.xlu0
        %v5566 = vpop.trf.xlu0
        %v5567 = vpack.c.bf16 %v5520, %v5519
        %v5568 = vpack.c.bf16 %v5552, %v5551
        %v5571 = vunpack.c.l.b16 %v5567
        %v5572 = vunpack.c.l.b16 %v5568
        %v5573 = vunpack.c.h.b16 %v5567
        %v5574 = vunpack.c.h.b16 %v5568
        %v5575 = vpack.c.b16 %v5572, %v5571
        %v5576 = vpack.c.b16 %v5574, %v5573
        %5579 = vst [vmem:[%s303] sm:$0xff] %v5575
        %5580 = vst [vmem:[%s303 + $0x8] sm:$0xff] %v5576
        %s5581 = sand.u32 %s147, 1
        %s5582 = scalar_lea.sflag [#allocation4], %s5581
        %s5583 = sand.u32 %s147, 1
        %s5584 = smul.addr %s5583, 16
        %s5585 = scalar_lea.vmem [#allocation3], %s5584
        %s5586 = sand.u32 %s175, 1
        %s5587 = scalar_lea.sflag [#allocation6], %s5586
        %s5588 = sand.u32 %s175, 1
        %s5589 = smul.addr %s5588, 8
        %s5590 = scalar_lea.vmem [#allocation5], %s5589
        // Predicated region
        $region37: #{tpu_custom_call.1} parent=35 // pred_check
          %p5591 = pneg %p157
        $region38: #{tpu_custom_call.1} parent=35 // pred_check_branch
          %5593 = sbr.rel (%p5591) target = $region40
        $region39: #{tpu_custom_call.1} parent=35 // pred_region
          %s5594 = smul.u32 2, %s28
          %s5596 = ssub.s32 256, 256
          %5597 = vsyncadd %s5582, %s5596
          %s5598 = smul.addr %s27, 4
          %s5599 = sadd.s32 %s5594, %s5598
          %s5600 = smul.addr %s5599, 64
          %s5601 = scalar_lea.hbm %s4, %s5600
          %s5602 = sshll.u32 %s5585, 4
          %s5603 = int_to_ptr.vmem [resolvable:$true] %s5602
          %5608 = dma.vmem_to_hbm [thread:$0]  %s5603, 256, %s5601, %s5582, 128, 128, 8
        $region40: #{tpu_custom_call.1} parent=35 // pred_fallthru
          _
        // Predicated region
        $region41: #{tpu_custom_call.1} parent=35 // pred_check
          %p5609 = pneg %p185
        $region42: #{tpu_custom_call.1} parent=35 // pred_check_branch
          %5611 = sbr.rel (%p5609) target = $region44
        $region43: #{tpu_custom_call.1} parent=35 // pred_region
          %s5613 = ssub.s32 128, 128
          %5614 = vsyncadd %s5587, %s5613
          %s5615 = sadd.s32 %s28, %s27
          %s5616 = smul.addr %s5615, 128
          %s5617 = scalar_lea.hbm %s5, %s5616
          %s5619 = sshll.u32 %s5590, 4
          %s5620 = int_to_ptr.vmem [resolvable:$true] %s5619
          %5622 = dma.vmem_to_hbm [thread:$0]  %s5620, 128, %s5617, %s5587
        $region44: #{tpu_custom_call.1} parent=35 // pred_fallthru
          _
      $region36: #{tpu_custom_call.1} parent=5 // pred_fallthru
        _
      %p5623 = scmp.le.s32.totalorder 2, %s18
      // Predicated region
      $region45: #{tpu_custom_call.1} parent=5 // pred_check
        %p5624 = pneg %p5623
      $region46: #{tpu_custom_call.1} parent=5 // pred_check_branch
        %5626 = sbr.rel (%p5624) target = $region48
      $region47: #{tpu_custom_call.1} parent=5 // pred_region
        %s5627 = ssub.s32 %s18, 2
        // Predicated region
        $region49: #{tpu_custom_call.1} parent=47 // pred_check
          %p5628 = pneg %p163
        $region50: #{tpu_custom_call.1} parent=47 // pred_check_branch
          %5630 = sbr.rel (%p5628) target = $region52
        $region51: #{tpu_custom_call.1} parent=47 // pred_region
          %s5631 = sand.u32 %s148, 1
          %s5632 = scalar_lea.sflag [#allocation4], %s5631
          %s5633 = sand.u32 %s148, 1
          %s5634 = smul.addr %s5633, 16
          %s5635 = scalar_lea.vmem [#allocation3], %s5634
          %5636 = dma.done %s5632, 256
        $region52: #{tpu_custom_call.1} parent=47 // pred_fallthru
          _
        // Predicated region
        $region53: #{tpu_custom_call.1} parent=47 // pred_check
          %p5637 = pneg %p191
        $region54: #{tpu_custom_call.1} parent=47 // pred_check_branch
          %5639 = sbr.rel (%p5637) target = $region56
        $region55: #{tpu_custom_call.1} parent=47 // pred_region
          %s5640 = sand.u32 %s176, 1
          %s5641 = scalar_lea.sflag [#allocation6], %s5640
          %s5642 = sand.u32 %s176, 1
          %s5643 = smul.addr %s5642, 8
          %s5644 = scalar_lea.vmem [#allocation5], %s5643
          %5645 = dma.done %s5641, 128
        $region56: #{tpu_custom_call.1} parent=47 // pred_fallthru
          _
      $region48: #{tpu_custom_call.1} parent=5 // pred_fallthru
        _
    $region6: #{tpu_custom_call.1} parent=1 // loop_footer
      %s22 = sadd.s32 1, %s18
    $region7: #{tpu_custom_call.1} parent=1 // loop_footer_branch
      %17 = sbr.rel target = $region3
    $region8: #{tpu_custom_call.1} parent=1 // loop_exit
      _
    %5646 = vsyncpa [#allocation4], 1
    %s5647 = scalar_lea.sflag [#allocation4], 1
    %5648 = vsyncpa %s5647, 1
    %5649 = vsyncpa [#allocation6], 1
    %s5650 = scalar_lea.sflag [#allocation6], 1
    %5651 = vsyncpa %s5650, 1

</llo_original>
